<compile_context>
chip_gen: v7x
topology: tpu7x:2x2x1
jax: 0.10.0
libtpu: 0.0.40
codegen_flags: <defaults>
</compile_context>

<pallas_src>
import functools
import math

import jax
import jax.numpy as jnp
from jax.experimental import pallas as pl
from jax.experimental.pallas import tpu as pltpu


def _round_up(x, m):
    return (x + m - 1) // m * m


def _layernorm(x, g, b, eps):
    mean = jnp.mean(x, axis=-1, keepdims=True)
    var = jnp.mean(jnp.square(x - mean), axis=-1, keepdims=True)
    return (x - mean) * jax.lax.rsqrt(var + eps) * g + b


# ---------------- Fused whole-encoder kernel ----------------

def _vit_kernel(px_ref, pe_w_ref, pe_b_ref, cls_ref, pos_ref, npre_g_ref, npre_b_ref,
                n1g_ref, n1b_ref, wqkv_ref, bqkv_ref, wp_ref, bp_ref,
                n2g_ref, n2b_ref, w1_ref, b1_ref, w2_ref, b2_ref,
                o_ref, *, num_heads, n_patches, n_tokens, eps):
    """Grid = (batch, layer).  o_ref is the (1, T_pad, D) activation, resident across
    the layer axis (same block index), so it acts as the fp32 residual-stream carry."""
    layer = pl.program_id(1)
    t_pad, d = o_ref.shape[1], o_ref.shape[2]

    # ---- layer 0: patch-embed matmul + cls prepend + pos_embed + norm_pre ----
    @pl.when(layer == 0)
    def _():
        # (N, Kp) @ (Kp, D); Kp zero-padded to 128 lanes so padding contributes 0.
        tok = jnp.dot(px_ref[0], pe_w_ref[...],
                      preferred_element_type=jnp.float32) + pe_b_ref[...]
        parts = [cls_ref[...], tok]
        pad_rows = t_pad - 1 - n_patches
        if pad_rows > 0:
            parts.append(jnp.zeros((pad_rows, d), jnp.float32))  # keep pad rows finite
        x0 = jnp.concatenate(parts, axis=0) + pos_ref[...]       # (T_pad, D)
        o_ref[0] = _layernorm(x0, npre_g_ref[...], npre_b_ref[...], eps
                              ).astype(o_ref.dtype)

    x = o_ref[0]                                   # (T_pad, D) fp32 residual carry

    # ---- attention sub-block: x + proj(attn(norm1(x))) ----
    dh = d // num_heads
    scale = dh ** -0.5
    h = _layernorm(x, n1g_ref[0], n1b_ref[0], eps)
    qkv = jnp.dot(h.astype(jnp.bfloat16), wqkv_ref[0],
                  preferred_element_type=jnp.float32) + bqkv_ref[0]    # (T_pad, 3D)

    # mask padded key tokens out of the softmax
    key_valid = jax.lax.broadcasted_iota(jnp.int32, (1, t_pad), 1) < n_tokens

    heads_out = []
    for hh in range(num_heads):                    # static unroll; lane-contiguous slices
        q_h = qkv[:, hh * dh:(hh + 1) * dh]
        k_h = qkv[:, d + hh * dh:d + (hh + 1) * dh]
        v_h = qkv[:, 2 * d + hh * dh:2 * d + (hh + 1) * dh]
        # scores = q k^T (contract head_dim on both; no explicit transpose in VMEM)
        s = jax.lax.dot_general(q_h, k_h, (((1,), (1,)), ((), ())),
                                preferred_element_type=jnp.float32) * scale
        s = jnp.where(key_valid, s, -1e30)
        s = s - jnp.max(s, axis=-1, keepdims=True)
        p = jnp.exp(s)
        p = p * pl.reciprocal(jnp.sum(p, axis=-1, keepdims=True), approx=True)  # EUP
        heads_out.append(jnp.dot(p.astype(jnp.bfloat16), v_h.astype(jnp.bfloat16),
                                 preferred_element_type=jnp.float32))
    attn = jnp.concatenate(heads_out, axis=1)      # (T_pad, D), lane-dense

    proj = jnp.dot(attn.astype(jnp.bfloat16), wp_ref[0],
                   preferred_element_type=jnp.float32) + bp_ref[0]
    x = x + proj                                   # fp32 residual add

    # ---- MLP sub-block: x + fc2(gelu(fc1(norm2(x)))) ----
    h2 = _layernorm(x, n2g_ref[0], n2b_ref[0], eps)
    a = jnp.dot(h2.astype(jnp.bfloat16), w1_ref[0],
                preferred_element_type=jnp.float32) + b1_ref[0]
    # exact (erf) GELU in fp32 — matches torch.nn.GELU default used by timm ViT MLP
    a = 0.5 * a * (1.0 + jax.lax.erf(a * (1.0 / math.sqrt(2.0))))
    y = jnp.dot(a.astype(jnp.bfloat16), w2_ref[0],
                preferred_element_type=jnp.float32) + b2_ref[0]

    o_ref[0] = (x + y).astype(o_ref.dtype)         # carry for next layer / final output


# ---------------- pallas_call wrapper ----------------

def vit_encoder(patches, pe_w, pe_b, cls_tok, pos_pad, npre_g, npre_b, params, *,
                t_pad, num_heads, n_patches, n_tokens, n_layers, eps=1e-6):
    B = patches.shape[0]
    N, Kp = patches.shape[1], patches.shape[2]
    D = pe_w.shape[1]
    Dm = params["fc1_w"].shape[2]

    kern = functools.partial(_vit_kernel, num_heads=num_heads, n_patches=n_patches,
                             n_tokens=n_tokens, eps=eps)

    fixed2 = lambda b, l: (0, 0)          # embed-stage params: fetched once
    per_b = lambda b, l: (b, 0, 0)        # per-image inputs: fetched once per image
    per_l = lambda b, l: (l, 0, 0)        # layer-stacked weights: streamed per layer

    return pl.pallas_call(
        kern,
        out_shape=jax.ShapeDtypeStruct((B, t_pad, D), jnp.float32),
        grid=(B, n_layers),
        in_specs=[
            pl.BlockSpec((1, N, Kp), per_b),          # patchified pixels
            pl.BlockSpec((Kp, D), fixed2),            # patch-embed weight
            pl.BlockSpec((1, D), fixed2),             # patch-embed bias
            pl.BlockSpec((1, D), fixed2),             # cls token
            pl.BlockSpec((t_pad, D), fixed2),         # pos embed (padded)
            pl.BlockSpec((1, D), fixed2),             # norm_pre gamma
            pl.BlockSpec((1, D), fixed2),             # norm_pre beta
            pl.BlockSpec((1, 1, D), per_l),           # norm1 gamma
            pl.BlockSpec((1, 1, D), per_l),           # norm1 beta
            pl.BlockSpec((1, D, 3 * D), per_l),       # qkv weight (bf16)
            pl.BlockSpec((1, 1, 3 * D), per_l),       # qkv bias
            pl.BlockSpec((1, D, D), per_l),           # attn out-proj weight (bf16)
            pl.BlockSpec((1, 1, D), per_l),           # attn out-proj bias
            pl.BlockSpec((1, 1, D), per_l),           # norm2 gamma
            pl.BlockSpec((1, 1, D), per_l),           # norm2 beta
            pl.BlockSpec((1, D, Dm), per_l),          # fc1 weight (bf16)
            pl.BlockSpec((1, 1, Dm), per_l),          # fc1 bias
            pl.BlockSpec((1, Dm, D), per_l),          # fc2 weight (bf16)
            pl.BlockSpec((1, 1, D), per_l),           # fc2 bias
        ],
        # same block index across the layer axis -> activation stays resident in VMEM
        out_specs=pl.BlockSpec((1, t_pad, D), per_b),
        compiler_params=pltpu.CompilerParams(
            dimension_semantics=("parallel", "arbitrary"),
            vmem_limit_bytes=64 << 20),
    )(patches, pe_w, pe_b, cls_tok, pos_pad, npre_g, npre_b,
      params["norm1_g"], params["norm1_b"], params["qkv_w"], params["qkv_b"],
      params["proj_w"], params["proj_b"], params["norm2_g"], params["norm2_b"],
      params["fc1_w"], params["fc1_b"], params["fc2_w"], params["fc2_b"])


# ---------------- Synthetic ViT parameters (layer-stacked) ----------------

def init_params(key, *, in_chans, patch, embed_dim, depth, num_heads, mlp_ratio,
                num_patches):
    del num_heads
    D = embed_dim
    Dm = int(D * mlp_ratio)
    L = depth
    k = jax.random.split(key, 7)

    def nrm(kk, shape, std=0.02):
        return (std * jax.random.normal(kk, shape)).astype(jnp.float32)

    return {
        # conv patch-embed weights, PyTorch conv layout (D_out, C_in, p, p); kept fp32
        "patch_w": nrm(k[0], (D, in_chans, patch, patch)),
        "patch_b": jnp.zeros((1, D), jnp.float32),
        "cls_token": nrm(k[1], (1, 1, D)),
        "pos_embed": nrm(k[2], (1, 1 + num_patches, D)),
        "norm_pre_g": jnp.ones((1, D), jnp.float32),   # CLIP ViT: pre_norm=True
        "norm_pre_b": jnp.zeros((1, D), jnp.float32),
        # layer-stacked block params (leading axis = depth): matmul weights bf16 (MXU
        # inputs), biases / LN params fp32. Stacking happens at init time so there is
        # no per-call weight copy in the forward pass.
        "norm1_g": jnp.ones((L, 1, D), jnp.float32),
        "norm1_b": jnp.zeros((L, 1, D), jnp.float32),
        "qkv_w": nrm(k[3], (L, D, 3 * D)).astype(jnp.bfloat16),
        "qkv_b": jnp.zeros((L, 1, 3 * D), jnp.float32),
        "proj_w": nrm(k[4], (L, D, D)).astype(jnp.bfloat16),
        "proj_b": jnp.zeros((L, 1, D), jnp.float32),
        "norm2_g": jnp.ones((L, 1, D), jnp.float32),
        "norm2_b": jnp.zeros((L, 1, D), jnp.float32),
        "fc1_w": nrm(k[5], (L, D, Dm)).astype(jnp.bfloat16),
        "fc1_b": jnp.zeros((L, 1, Dm), jnp.float32),
        "fc2_w": nrm(k[6], (L, Dm, D)).astype(jnp.bfloat16),
        "fc2_b": jnp.zeros((L, 1, D), jnp.float32),
    }


# ---------------- Forward pass (TimmEncoder.forward semantics) ----------------

def timm_encoder_forward(params, pixel_values, *, patch, num_heads, output_layer=-1):
    B, C, H, W = pixel_values.shape
    p = patch
    Ty, Tx = H // p, W // p
    N = Ty * Tx
    D = params["patch_w"].shape[0]
    assert D % num_heads == 0
    T = N + 1
    t_pad = _round_up(T, 8)              # sublane-aligned token count (pad keys masked)
    Kp = _round_up(C * p * p, 128)       # lane-aligned patch-embed contraction dim

    # Patchify (one-time XLA glue): NCHW -> (B, N, C*p*p); (c, ph, pw) ordering matches
    # the conv weight flattening, so the conv patch-embed becomes one matmul.
    x = pixel_values.reshape(B, C, Ty, p, Tx, p).transpose(0, 2, 4, 1, 3, 5)
    x = x.reshape(B, N, C * p * p)
    x = jnp.pad(x, ((0, 0), (0, 0), (0, Kp - C * p * p)))
    w_pe = jnp.pad(params["patch_w"].reshape(D, C * p * p).T,
                   ((0, Kp - C * p * p), (0, 0)))
    pos = jnp.pad(params["pos_embed"][0], ((0, t_pad - T), (0, 0)))

    n_blocks = params["qkv_w"].shape[0]
    n_layers = (output_layer % n_blocks) + 1

    xf = vit_encoder(x, w_pe, params["patch_b"], params["cls_token"].reshape(1, D),
                     pos, params["norm_pre_g"], params["norm_pre_b"], params,
                     t_pad=t_pad, num_heads=num_heads, n_patches=N, n_tokens=T,
                     n_layers=n_layers)

    # forward_intermediates(norm=False): raw block output, drop prefix (cls) token and
    # padded rows, reshape to (B, num_patches_x, num_patches_y, C).
    return xf[:, 1:1 + N, :].reshape(B, Ty, Tx, D)


if __name__ == "__main__":
    # Small synthetic config consistent with a ViT: 16x16 image, patch 4 -> 4x4 patches.
    B, C_IN, IMG, PATCH = 2, 3, 16, 4
    EMBED_DIM, DEPTH, HEADS, MLP_RATIO = 32, 2, 4, 4.0
    NUM_PATCHES = (IMG // PATCH) ** 2

    key = jax.random.PRNGKey(0)
    k_param, k_img = jax.random.split(key)
    params = init_params(k_param, in_chans=C_IN, patch=PATCH, embed_dim=EMBED_DIM,
                         depth=DEPTH, num_heads=HEADS, mlp_ratio=MLP_RATIO,
                         num_patches=NUM_PATCHES)
    pixel_values = jax.random.normal(k_img, (B, C_IN, IMG, IMG), dtype=jnp.float32)

    # TODO(synk): PIL preprocessing / timm transform + pretrained weight loading are
    # host-side and have no Pallas equivalent; forward assumes a tensor input.
    fwd = jax.jit(timm_encoder_forward,
                  static_argnames=("patch", "num_heads", "output_layer"))
    out = fwd(params, pixel_values, patch=PATCH, num_heads=HEADS, output_layer=-1)
    out = jax.block_until_ready(out)
    assert out.shape == (B, IMG // PATCH, IMG // PATCH, EMBED_DIM), out.shape
    assert bool(jnp.all(jnp.isfinite(out)))
    print("KERNEL_OK")
</pallas_src>

<mosaic_0001>
module attributes {stable_mosaic.version = 11 : i64} {
  func.func @_vit_kernel(%arg0: i32, %arg1: i32, %arg2: memref<1x16x128xf32, #tpu.memory_space<vmem>>, %arg3: memref<128x32xf32, #tpu.memory_space<vmem>>, %arg4: memref<1x32xf32, #tpu.memory_space<vmem>>, %arg5: memref<1x32xf32, #tpu.memory_space<vmem>>, %arg6: memref<24x32xf32, #tpu.memory_space<vmem>>, %arg7: memref<1x32xf32, #tpu.memory_space<vmem>>, %arg8: memref<1x32xf32, #tpu.memory_space<vmem>>, %arg9: memref<1x1x32xf32, #tpu.memory_space<vmem>>, %arg10: memref<1x1x32xf32, #tpu.memory_space<vmem>>, %arg11: memref<1x32x96xbf16, #tpu.memory_space<vmem>>, %arg12: memref<1x1x96xf32, #tpu.memory_space<vmem>>, %arg13: memref<1x32x32xbf16, #tpu.memory_space<vmem>>, %arg14: memref<1x1x32xf32, #tpu.memory_space<vmem>>, %arg15: memref<1x1x32xf32, #tpu.memory_space<vmem>>, %arg16: memref<1x1x32xf32, #tpu.memory_space<vmem>>, %arg17: memref<1x32x128xbf16, #tpu.memory_space<vmem>>, %arg18: memref<1x1x128xf32, #tpu.memory_space<vmem>>, %arg19: memref<1x128x32xbf16, #tpu.memory_space<vmem>>, %arg20: memref<1x1x32xf32, #tpu.memory_space<vmem>>, %arg21: memref<1x24x32xf32, #tpu.memory_space<vmem>>) attributes {dimension_semantics = [#tpu.dimension_semantics<parallel>, #tpu.dimension_semantics<arbitrary>], iteration_bounds = array<i64: 2, 2>, scalar_prefetch = 0 : i64, scratch_operands = 0 : i64, tpu.core_type = #tpu.core_type<tc>, window_params = [{transform_indices = @transform_0, window_bounds = array<i64: 1, 16, 128>}, {pipeline_mode = #tpu.pipeline_mode<synchronous>, transform_indices = @transform_1, window_bounds = array<i64: 128, 32>}, {pipeline_mode = #tpu.pipeline_mode<synchronous>, transform_indices = @transform_2, window_bounds = array<i64: 1, 32>}, {pipeline_mode = #tpu.pipeline_mode<synchronous>, transform_indices = @transform_3, window_bounds = array<i64: 1, 32>}, {pipeline_mode = #tpu.pipeline_mode<synchronous>, transform_indices = @transform_4, window_bounds = array<i64: 24, 32>}, {pipeline_mode = #tpu.pipeline_mode<synchronous>, transform_indices = @transform_5, window_bounds = array<i64: 1, 32>}, {pipeline_mode = #tpu.pipeline_mode<synchronous>, transform_indices = @transform_6, window_bounds = array<i64: 1, 32>}, {transform_indices = @transform_7, window_bounds = array<i64: 1, 1, 32>}, {transform_indices = @transform_8, window_bounds = array<i64: 1, 1, 32>}, {transform_indices = @transform_9, window_bounds = array<i64: 1, 32, 96>}, {transform_indices = @transform_10, window_bounds = array<i64: 1, 1, 96>}, {transform_indices = @transform_11, window_bounds = array<i64: 1, 32, 32>}, {transform_indices = @transform_12, window_bounds = array<i64: 1, 1, 32>}, {transform_indices = @transform_13, window_bounds = array<i64: 1, 1, 32>}, {transform_indices = @transform_14, window_bounds = array<i64: 1, 1, 32>}, {transform_indices = @transform_15, window_bounds = array<i64: 1, 32, 128>}, {transform_indices = @transform_16, window_bounds = array<i64: 1, 1, 128>}, {transform_indices = @transform_17, window_bounds = array<i64: 1, 128, 32>}, {transform_indices = @transform_18, window_bounds = array<i64: 1, 1, 32>}, {transform_indices = @transform_19, window_bounds = array<i64: 1, 24, 32>}]} {
    %c0_i32 = arith.constant 0 : i32
    %0 = arith.cmpi eq, %arg1, %c0_i32 : i32
    %1 = arith.extui %0 : i1 to i32
    %c0_i32_0 = arith.constant 0 : i32
    %2 = arith.cmpi ne, %1, %c0_i32_0 : i32
    scf.if %2 {
      %c0_82 = arith.constant 0 : index
      %c0_83 = arith.constant 0 : index
      %c0_84 = arith.constant 0 : index
      %198 = vector.load %arg2[%c0_82, %c0_83, %c0_84] : memref<1x16x128xf32, #tpu.memory_space<vmem>>, vector<1x16x128xf32>
      %199 = vector.shape_cast %198 : vector<1x16x128xf32> to vector<16x128xf32>
      %c0_85 = arith.constant 0 : index
      %c0_86 = arith.constant 0 : index
      %200 = vector.load %arg3[%c0_85, %c0_86] : memref<128x32xf32, #tpu.memory_space<vmem>>, vector<128x32xf32>
      %cst_87 = arith.constant dense<0.000000e+00> : vector<16x32xf32>
      %201 = tpu.matmul %199, %200, %cst_87 {dimension_numbers = #tpu.dot_dimension_numbers<[1], [0], [0], [1], [0, 0, 1, 1], [], []>} : vector<16x128xf32>, vector<128x32xf32>, vector<16x32xf32> -> vector<16x32xf32>
      %c0_88 = arith.constant 0 : index
      %c0_89 = arith.constant 0 : index
      %202 = vector.load %arg4[%c0_88, %c0_89] : memref<1x32xf32, #tpu.memory_space<vmem>>, vector<1x32xf32>
      %203 = vector.broadcast %202 : vector<1x32xf32> to vector<16x32xf32>
      %204 = arith.addf %201, %203 : vector<16x32xf32>
      %c0_90 = arith.constant 0 : index
      %c0_91 = arith.constant 0 : index
      %205 = vector.load %arg5[%c0_90, %c0_91] : memref<1x32xf32, #tpu.memory_space<vmem>>, vector<1x32xf32>
      %cst_92 = arith.constant 0.000000e+00 : f32
      %206 = vector.broadcast %cst_92 : f32 to vector<7x32xf32>
      %207 = tpu.concatenate %205, %204, %206 in 0 : vector<1x32xf32>, vector<16x32xf32>, vector<7x32xf32> -> vector<24x32xf32>
      %c0_93 = arith.constant 0 : index
      %c0_94 = arith.constant 0 : index
      %208 = vector.load %arg6[%c0_93, %c0_94] : memref<24x32xf32, #tpu.memory_space<vmem>>, vector<24x32xf32>
      %209 = arith.addf %207, %208 : vector<24x32xf32>
      %c0_95 = arith.constant 0 : index
      %c0_96 = arith.constant 0 : index
      %210 = vector.load %arg7[%c0_95, %c0_96] : memref<1x32xf32, #tpu.memory_space<vmem>>, vector<1x32xf32>
      %c0_97 = arith.constant 0 : index
      %c0_98 = arith.constant 0 : index
      %211 = vector.load %arg8[%c0_97, %c0_98] : memref<1x32xf32, #tpu.memory_space<vmem>>, vector<1x32xf32>
      %cst_99 = arith.constant dense<0.000000e+00> : vector<24xf32>
      %212 = vector.multi_reduction <add>, %209, %cst_99 [1] : vector<24x32xf32> to vector<24xf32>
      %213 = vector.shape_cast %212 : vector<24xf32> to vector<24x1xf32>
      %cst_100 = arith.constant 3.200000e+01 : f32
      %214 = vector.broadcast %cst_100 : f32 to vector<24x1xf32>
      %215 = arith.divf %213, %214 : vector<24x1xf32>
      %216 = vector.broadcast %215 : vector<24x1xf32> to vector<24x32xf32>
      %217 = arith.subf %209, %216 : vector<24x32xf32>
      %218 = arith.mulf %217, %217 : vector<24x32xf32>
      %cst_101 = arith.constant dense<0.000000e+00> : vector<24xf32>
      %219 = vector.multi_reduction <add>, %218, %cst_101 [1] : vector<24x32xf32> to vector<24xf32>
      %220 = vector.shape_cast %219 : vector<24xf32> to vector<24x1xf32>
      %cst_102 = arith.constant 3.200000e+01 : f32
      %221 = vector.broadcast %cst_102 : f32 to vector<24x1xf32>
      %222 = arith.divf %220, %221 : vector<24x1xf32>
      %223 = vector.broadcast %215 : vector<24x1xf32> to vector<24x32xf32>
      %224 = arith.subf %209, %223 : vector<24x32xf32>
      %cst_103 = arith.constant 9.99999997E-7 : f32
      %225 = vector.broadcast %cst_103 : f32 to vector<24x1xf32>
      %226 = arith.addf %222, %225 : vector<24x1xf32>
      %227 = math.rsqrt %226 : vector<24x1xf32>
      %228 = vector.broadcast %227 : vector<24x1xf32> to vector<24x32xf32>
      %229 = arith.mulf %224, %228 : vector<24x32xf32>
      %230 = vector.broadcast %210 : vector<1x32xf32> to vector<24x32xf32>
      %231 = arith.mulf %229, %230 : vector<24x32xf32>
      %232 = vector.broadcast %211 : vector<1x32xf32> to vector<24x32xf32>
      %233 = arith.addf %231, %232 : vector<24x32xf32>
      %c0_104 = arith.constant 0 : index
      %c0_105 = arith.constant 0 : index
      %c0_106 = arith.constant 0 : index
      %234 = vector.load %arg21[%c0_104, %c0_105, %c0_106] : memref<1x24x32xf32, #tpu.memory_space<vmem>>, vector<1x24x32xf32>
      %235 = vector.shape_cast %234 : vector<1x24x32xf32> to vector<24x32xf32>
      %236 = vector.shape_cast %233 : vector<24x32xf32> to vector<1x24x32xf32>
      tpu.vector_store %arg21[%c0_104, %c0_105, %c0_106], %236 {strides = array<i32>} : memref<1x24x32xf32, #tpu.memory_space<vmem>>, vector<1x24x32xf32>,
    } else {
    }
    %c0 = arith.constant 0 : index
    %c0_1 = arith.constant 0 : index
    %c0_2 = arith.constant 0 : index
    %3 = vector.load %arg21[%c0, %c0_1, %c0_2] : memref<1x24x32xf32, #tpu.memory_space<vmem>>, vector<1x24x32xf32>
    %4 = vector.shape_cast %3 : vector<1x24x32xf32> to vector<24x32xf32>
    %c0_3 = arith.constant 0 : index
    %c0_4 = arith.constant 0 : index
    %c0_5 = arith.constant 0 : index
    %5 = vector.load %arg9[%c0_3, %c0_4, %c0_5] : memref<1x1x32xf32, #tpu.memory_space<vmem>>, vector<1x1x32xf32>
    %6 = vector.shape_cast %5 : vector<1x1x32xf32> to vector<1x32xf32>
    %c0_6 = arith.constant 0 : index
    %c0_7 = arith.constant 0 : index
    %c0_8 = arith.constant 0 : index
    %7 = vector.load %arg10[%c0_6, %c0_7, %c0_8] : memref<1x1x32xf32, #tpu.memory_space<vmem>>, vector<1x1x32xf32>
    %8 = vector.shape_cast %7 : vector<1x1x32xf32> to vector<1x32xf32>
    %cst = arith.constant dense<0.000000e+00> : vector<24xf32>
    %9 = vector.multi_reduction <add>, %4, %cst [1] : vector<24x32xf32> to vector<24xf32>
    %10 = vector.shape_cast %9 : vector<24xf32> to vector<24x1xf32>
    %cst_9 = arith.constant 3.200000e+01 : f32
    %11 = vector.broadcast %cst_9 : f32 to vector<24x1xf32>
    %12 = arith.divf %10, %11 : vector<24x1xf32>
    %13 = vector.broadcast %12 : vector<24x1xf32> to vector<24x32xf32>
    %14 = arith.subf %4, %13 : vector<24x32xf32>
    %15 = arith.mulf %14, %14 : vector<24x32xf32>
    %cst_10 = arith.constant dense<0.000000e+00> : vector<24xf32>
    %16 = vector.multi_reduction <add>, %15, %cst_10 [1] : vector<24x32xf32> to vector<24xf32>
    %17 = vector.shape_cast %16 : vector<24xf32> to vector<24x1xf32>
    %cst_11 = arith.constant 3.200000e+01 : f32
    %18 = vector.broadcast %cst_11 : f32 to vector<24x1xf32>
    %19 = arith.divf %17, %18 : vector<24x1xf32>
    %20 = vector.broadcast %12 : vector<24x1xf32> to vector<24x32xf32>
    %21 = arith.subf %4, %20 : vector<24x32xf32>
    %cst_12 = arith.constant 9.99999997E-7 : f32
    %22 = vector.broadcast %cst_12 : f32 to vector<24x1xf32>
    %23 = arith.addf %19, %22 : vector<24x1xf32>
    %24 = math.rsqrt %23 : vector<24x1xf32>
    %25 = vector.broadcast %24 : vector<24x1xf32> to vector<24x32xf32>
    %26 = arith.mulf %21, %25 : vector<24x32xf32>
    %27 = vector.broadcast %6 : vector<1x32xf32> to vector<24x32xf32>
    %28 = arith.mulf %26, %27 : vector<24x32xf32>
    %29 = vector.broadcast %8 : vector<1x32xf32> to vector<24x32xf32>
    %30 = arith.addf %28, %29 : vector<24x32xf32>
    %31 = arith.truncf %30 : vector<24x32xf32> to vector<24x32xbf16>
    %c0_13 = arith.constant 0 : index
    %c0_14 = arith.constant 0 : index
    %c0_15 = arith.constant 0 : index
    %32 = vector.load %arg11[%c0_13, %c0_14, %c0_15] : memref<1x32x96xbf16, #tpu.memory_space<vmem>>, vector<1x32x96xbf16>
    %33 = vector.shape_cast %32 : vector<1x32x96xbf16> to vector<32x96xbf16>
    %cst_16 = arith.constant dense<0.000000e+00> : vector<24x96xf32>
    %34 = tpu.matmul %31, %33, %cst_16 {dimension_numbers = #tpu.dot_dimension_numbers<[1], [0], [0], [1], [0, 0, 1, 1], [], []>} : vector<24x32xbf16>, vector<32x96xbf16>, vector<24x96xf32> -> vector<24x96xf32>
    %c0_17 = arith.constant 0 : index
    %c0_18 = arith.constant 0 : index
    %c0_19 = arith.constant 0 : index
    %35 = vector.load %arg12[%c0_17, %c0_18, %c0_19] : memref<1x1x96xf32, #tpu.memory_space<vmem>>, vector<1x1x96xf32>
    %36 = vector.shape_cast %35 : vector<1x1x96xf32> to vector<1x96xf32>
    %37 = vector.broadcast %36 : vector<1x96xf32> to vector<24x96xf32>
    %38 = arith.addf %34, %37 : vector<24x96xf32>
    %39 = tpu.iota {dimensions = array<i32: 1>} : vector<1x24xi32>
    %c17_i32 = arith.constant 17 : i32
    %40 = vector.broadcast %c17_i32 : i32 to vector<1x24xi32>
    %41 = arith.cmpi slt, %39, %40 : vector<1x24xi32>
    %42 = vector.extract_strided_slice %38 {offsets = [0, 0], sizes = [24, 8], strides = [1, 1]} : vector<24x96xf32> to vector<24x8xf32>
    %43 = vector.extract_strided_slice %38 {offsets = [0, 32], sizes = [24, 8], strides = [1, 1]} : vector<24x96xf32> to vector<24x8xf32>
    %44 = vector.extract_strided_slice %38 {offsets = [0, 64], sizes = [24, 8], strides = [1, 1]} : vector<24x96xf32> to vector<24x8xf32>
    %cst_20 = arith.constant dense<0.000000e+00> : vector<24x24xf32>
    %45 = tpu.matmul %42, %43, %cst_20 {dimension_numbers = #tpu.dot_dimension_numbers<[1], [1], [0], [0], [0, 0, 1, 0], [], []>} : vector<24x8xf32>, vector<24x8xf32>, vector<24x24xf32> -> vector<24x24xf32>
    %cst_21 = arith.constant 0.353553385 : f32
    %46 = vector.broadcast %cst_21 : f32 to vector<24x24xf32>
    %47 = arith.mulf %45, %46 : vector<24x24xf32>
    %cst_22 = arith.constant -1.000000e+30 : f32
    %48 = vector.shape_cast %41 : vector<1x24xi1> to vector<1x24xi1>
    %49 = vector.broadcast %48 : vector<1x24xi1> to vector<24x24xi1>
    %50 = vector.broadcast %cst_22 : f32 to vector<24x24xf32>
    %51 = arith.select %49, %47, %50 : vector<24x24xi1>, vector<24x24xf32>
    %cst_23 = arith.constant dense<0xFF800000> : vector<24xf32>
    %52 = vector.multi_reduction <maximumf>, %51, %cst_23 [1] : vector<24x24xf32> to vector<24xf32>
    %53 = vector.shape_cast %52 : vector<24xf32> to vector<24x1xf32>
    %54 = vector.broadcast %53 : vector<24x1xf32> to vector<24x24xf32>
    %55 = arith.subf %51, %54 : vector<24x24xf32>
    %56 = math.exp %55 : vector<24x24xf32>
    %cst_24 = arith.constant dense<0.000000e+00> : vector<24xf32>
    %57 = vector.multi_reduction <add>, %56, %cst_24 [1] : vector<24x24xf32> to vector<24xf32>
    %58 = vector.shape_cast %57 : vector<24xf32> to vector<24x1xf32>
    %59 = tpu.reciprocal %58 {approx = true} : vector<24x1xf32> -> vector<24x1xf32>
    %60 = vector.broadcast %59 : vector<24x1xf32> to vector<24x24xf32>
    %61 = arith.mulf %56, %60 : vector<24x24xf32>
    %62 = arith.truncf %61 : vector<24x24xf32> to vector<24x24xbf16>
    %63 = arith.truncf %44 : vector<24x8xf32> to vector<24x8xbf16>
    %cst_25 = arith.constant dense<0.000000e+00> : vector<24x8xf32>
    %64 = tpu.matmul %62, %63, %cst_25 {dimension_numbers = #tpu.dot_dimension_numbers<[1], [0], [0], [1], [0, 0, 1, 1], [], []>} : vector<24x24xbf16>, vector<24x8xbf16>, vector<24x8xf32> -> vector<24x8xf32>
    %65 = vector.extract_strided_slice %38 {offsets = [0, 8], sizes = [24, 8], strides = [1, 1]} : vector<24x96xf32> to vector<24x8xf32>
    %66 = vector.extract_strided_slice %38 {offsets = [0, 40], sizes = [24, 8], strides = [1, 1]} : vector<24x96xf32> to vector<24x8xf32>
    %67 = vector.extract_strided_slice %38 {offsets = [0, 72], sizes = [24, 8], strides = [1, 1]} : vector<24x96xf32> to vector<24x8xf32>
    %cst_26 = arith.constant dense<0.000000e+00> : vector<24x24xf32>
    %68 = tpu.matmul %65, %66, %cst_26 {dimension_numbers = #tpu.dot_dimension_numbers<[1], [1], [0], [0], [0, 0, 1, 0], [], []>} : vector<24x8xf32>, vector<24x8xf32>, vector<24x24xf32> -> vector<24x24xf32>
    %cst_27 = arith.constant 0.353553385 : f32
    %69 = vector.broadcast %cst_27 : f32 to vector<24x24xf32>
    %70 = arith.mulf %68, %69 : vector<24x24xf32>
    %cst_28 = arith.constant -1.000000e+30 : f32
    %71 = vector.shape_cast %41 : vector<1x24xi1> to vector<1x24xi1>
    %72 = vector.broadcast %71 : vector<1x24xi1> to vector<24x24xi1>
    %73 = vector.broadcast %cst_28 : f32 to vector<24x24xf32>
    %74 = arith.select %72, %70, %73 : vector<24x24xi1>, vector<24x24xf32>
    %cst_29 = arith.constant dense<0xFF800000> : vector<24xf32>
    %75 = vector.multi_reduction <maximumf>, %74, %cst_29 [1] : vector<24x24xf32> to vector<24xf32>
    %76 = vector.shape_cast %75 : vector<24xf32> to vector<24x1xf32>
    %77 = vector.broadcast %76 : vector<24x1xf32> to vector<24x24xf32>
    %78 = arith.subf %74, %77 : vector<24x24xf32>
    %79 = math.exp %78 : vector<24x24xf32>
    %cst_30 = arith.constant dense<0.000000e+00> : vector<24xf32>
    %80 = vector.multi_reduction <add>, %79, %cst_30 [1] : vector<24x24xf32> to vector<24xf32>
    %81 = vector.shape_cast %80 : vector<24xf32> to vector<24x1xf32>
    %82 = tpu.reciprocal %81 {approx = true} : vector<24x1xf32> -> vector<24x1xf32>
    %83 = vector.broadcast %82 : vector<24x1xf32> to vector<24x24xf32>
    %84 = arith.mulf %79, %83 : vector<24x24xf32>
    %85 = arith.truncf %84 : vector<24x24xf32> to vector<24x24xbf16>
    %86 = arith.truncf %67 : vector<24x8xf32> to vector<24x8xbf16>
    %cst_31 = arith.constant dense<0.000000e+00> : vector<24x8xf32>
    %87 = tpu.matmul %85, %86, %cst_31 {dimension_numbers = #tpu.dot_dimension_numbers<[1], [0], [0], [1], [0, 0, 1, 1], [], []>} : vector<24x24xbf16>, vector<24x8xbf16>, vector<24x8xf32> -> vector<24x8xf32>
    %88 = vector.extract_strided_slice %38 {offsets = [0, 16], sizes = [24, 8], strides = [1, 1]} : vector<24x96xf32> to vector<24x8xf32>
    %89 = vector.extract_strided_slice %38 {offsets = [0, 48], sizes = [24, 8], strides = [1, 1]} : vector<24x96xf32> to vector<24x8xf32>
    %90 = vector.extract_strided_slice %38 {offsets = [0, 80], sizes = [24, 8], strides = [1, 1]} : vector<24x96xf32> to vector<24x8xf32>
    %cst_32 = arith.constant dense<0.000000e+00> : vector<24x24xf32>
    %91 = tpu.matmul %88, %89, %cst_32 {dimension_numbers = #tpu.dot_dimension_numbers<[1], [1], [0], [0], [0, 0, 1, 0], [], []>} : vector<24x8xf32>, vector<24x8xf32>, vector<24x24xf32> -> vector<24x24xf32>
    %cst_33 = arith.constant 0.353553385 : f32
    %92 = vector.broadcast %cst_33 : f32 to vector<24x24xf32>
    %93 = arith.mulf %91, %92 : vector<24x24xf32>
    %cst_34 = arith.constant -1.000000e+30 : f32
    %94 = vector.shape_cast %41 : vector<1x24xi1> to vector<1x24xi1>
    %95 = vector.broadcast %94 : vector<1x24xi1> to vector<24x24xi1>
    %96 = vector.broadcast %cst_34 : f32 to vector<24x24xf32>
    %97 = arith.select %95, %93, %96 : vector<24x24xi1>, vector<24x24xf32>
    %cst_35 = arith.constant dense<0xFF800000> : vector<24xf32>
    %98 = vector.multi_reduction <maximumf>, %97, %cst_35 [1] : vector<24x24xf32> to vector<24xf32>
    %99 = vector.shape_cast %98 : vector<24xf32> to vector<24x1xf32>
    %100 = vector.broadcast %99 : vector<24x1xf32> to vector<24x24xf32>
    %101 = arith.subf %97, %100 : vector<24x24xf32>
    %102 = math.exp %101 : vector<24x24xf32>
    %cst_36 = arith.constant dense<0.000000e+00> : vector<24xf32>
    %103 = vector.multi_reduction <add>, %102, %cst_36 [1] : vector<24x24xf32> to vector<24xf32>
    %104 = vector.shape_cast %103 : vector<24xf32> to vector<24x1xf32>
    %105 = tpu.reciprocal %104 {approx = true} : vector<24x1xf32> -> vector<24x1xf32>
    %106 = vector.broadcast %105 : vector<24x1xf32> to vector<24x24xf32>
    %107 = arith.mulf %102, %106 : vector<24x24xf32>
    %108 = arith.truncf %107 : vector<24x24xf32> to vector<24x24xbf16>
    %109 = arith.truncf %90 : vector<24x8xf32> to vector<24x8xbf16>
    %cst_37 = arith.constant dense<0.000000e+00> : vector<24x8xf32>
    %110 = tpu.matmul %108, %109, %cst_37 {dimension_numbers = #tpu.dot_dimension_numbers<[1], [0], [0], [1], [0, 0, 1, 1], [], []>} : vector<24x24xbf16>, vector<24x8xbf16>, vector<24x8xf32> -> vector<24x8xf32>
    %111 = vector.extract_strided_slice %38 {offsets = [0, 24], sizes = [24, 8], strides = [1, 1]} : vector<24x96xf32> to vector<24x8xf32>
    %112 = vector.extract_strided_slice %38 {offsets = [0, 56], sizes = [24, 8], strides = [1, 1]} : vector<24x96xf32> to vector<24x8xf32>
    %113 = vector.extract_strided_slice %38 {offsets = [0, 88], sizes = [24, 8], strides = [1, 1]} : vector<24x96xf32> to vector<24x8xf32>
    %cst_38 = arith.constant dense<0.000000e+00> : vector<24x24xf32>
    %114 = tpu.matmul %111, %112, %cst_38 {dimension_numbers = #tpu.dot_dimension_numbers<[1], [1], [0], [0], [0, 0, 1, 0], [], []>} : vector<24x8xf32>, vector<24x8xf32>, vector<24x24xf32> -> vector<24x24xf32>
    %cst_39 = arith.constant 0.353553385 : f32
    %115 = vector.broadcast %cst_39 : f32 to vector<24x24xf32>
    %116 = arith.mulf %114, %115 : vector<24x24xf32>
    %cst_40 = arith.constant -1.000000e+30 : f32
    %117 = vector.shape_cast %41 : vector<1x24xi1> to vector<1x24xi1>
    %118 = vector.broadcast %117 : vector<1x24xi1> to vector<24x24xi1>
    %119 = vector.broadcast %cst_40 : f32 to vector<24x24xf32>
    %120 = arith.select %118, %116, %119 : vector<24x24xi1>, vector<24x24xf32>
    %cst_41 = arith.constant dense<0xFF800000> : vector<24xf32>
    %121 = vector.multi_reduction <maximumf>, %120, %cst_41 [1] : vector<24x24xf32> to vector<24xf32>
    %122 = vector.shape_cast %121 : vector<24xf32> to vector<24x1xf32>
    %123 = vector.broadcast %122 : vector<24x1xf32> to vector<24x24xf32>
    %124 = arith.subf %120, %123 : vector<24x24xf32>
    %125 = math.exp %124 : vector<24x24xf32>
    %cst_42 = arith.constant dense<0.000000e+00> : vector<24xf32>
    %126 = vector.multi_reduction <add>, %125, %cst_42 [1] : vector<24x24xf32> to vector<24xf32>
    %127 = vector.shape_cast %126 : vector<24xf32> to vector<24x1xf32>
    %128 = tpu.reciprocal %127 {approx = true} : vector<24x1xf32> -> vector<24x1xf32>
    %129 = vector.broadcast %128 : vector<24x1xf32> to vector<24x24xf32>
    %130 = arith.mulf %125, %129 : vector<24x24xf32>
    %131 = arith.truncf %130 : vector<24x24xf32> to vector<24x24xbf16>
    %132 = arith.truncf %113 : vector<24x8xf32> to vector<24x8xbf16>
    %cst_43 = arith.constant dense<0.000000e+00> : vector<24x8xf32>
    %133 = tpu.matmul %131, %132, %cst_43 {dimension_numbers = #tpu.dot_dimension_numbers<[1], [0], [0], [1], [0, 0, 1, 1], [], []>} : vector<24x24xbf16>, vector<24x8xbf16>, vector<24x8xf32> -> vector<24x8xf32>
    %134 = tpu.concatenate %64, %87, %110, %133 in 1 : vector<24x8xf32>, vector<24x8xf32>, vector<24x8xf32>, vector<24x8xf32> -> vector<24x32xf32>
    %135 = arith.truncf %134 : vector<24x32xf32> to vector<24x32xbf16>
    %c0_44 = arith.constant 0 : index
    %c0_45 = arith.constant 0 : index
    %c0_46 = arith.constant 0 : index
    %136 = vector.load %arg13[%c0_44, %c0_45, %c0_46] : memref<1x32x32xbf16, #tpu.memory_space<vmem>>, vector<1x32x32xbf16>
    %137 = vector.shape_cast %136 : vector<1x32x32xbf16> to vector<32x32xbf16>
    %cst_47 = arith.constant dense<0.000000e+00> : vector<24x32xf32>
    %138 = tpu.matmul %135, %137, %cst_47 {dimension_numbers = #tpu.dot_dimension_numbers<[1], [0], [0], [1], [0, 0, 1, 1], [], []>} : vector<24x32xbf16>, vector<32x32xbf16>, vector<24x32xf32> -> vector<24x32xf32>
    %c0_48 = arith.constant 0 : index
    %c0_49 = arith.constant 0 : index
    %c0_50 = arith.constant 0 : index
    %139 = vector.load %arg14[%c0_48, %c0_49, %c0_50] : memref<1x1x32xf32, #tpu.memory_space<vmem>>, vector<1x1x32xf32>
    %140 = vector.shape_cast %139 : vector<1x1x32xf32> to vector<1x32xf32>
    %141 = vector.broadcast %140 : vector<1x32xf32> to vector<24x32xf32>
    %142 = arith.addf %138, %141 : vector<24x32xf32>
    %143 = arith.addf %4, %142 : vector<24x32xf32>
    %c0_51 = arith.constant 0 : index
    %c0_52 = arith.constant 0 : index
    %c0_53 = arith.constant 0 : index
    %144 = vector.load %arg15[%c0_51, %c0_52, %c0_53] : memref<1x1x32xf32, #tpu.memory_space<vmem>>, vector<1x1x32xf32>
    %145 = vector.shape_cast %144 : vector<1x1x32xf32> to vector<1x32xf32>
    %c0_54 = arith.constant 0 : index
    %c0_55 = arith.constant 0 : index
    %c0_56 = arith.constant 0 : index
    %146 = vector.load %arg16[%c0_54, %c0_55, %c0_56] : memref<1x1x32xf32, #tpu.memory_space<vmem>>, vector<1x1x32xf32>
    %147 = vector.shape_cast %146 : vector<1x1x32xf32> to vector<1x32xf32>
    %cst_57 = arith.constant dense<0.000000e+00> : vector<24xf32>
    %148 = vector.multi_reduction <add>, %143, %cst_57 [1] : vector<24x32xf32> to vector<24xf32>
    %149 = vector.shape_cast %148 : vector<24xf32> to vector<24x1xf32>
    %cst_58 = arith.constant 3.200000e+01 : f32
    %150 = vector.broadcast %cst_58 : f32 to vector<24x1xf32>
    %151 = arith.divf %149, %150 : vector<24x1xf32>
    %152 = vector.broadcast %151 : vector<24x1xf32> to vector<24x32xf32>
    %153 = arith.subf %143, %152 : vector<24x32xf32>
    %154 = arith.mulf %153, %153 : vector<24x32xf32>
    %cst_59 = arith.constant dense<0.000000e+00> : vector<24xf32>
    %155 = vector.multi_reduction <add>, %154, %cst_59 [1] : vector<24x32xf32> to vector<24xf32>
    %156 = vector.shape_cast %155 : vector<24xf32> to vector<24x1xf32>
    %cst_60 = arith.constant 3.200000e+01 : f32
    %157 = vector.broadcast %cst_60 : f32 to vector<24x1xf32>
    %158 = arith.divf %156, %157 : vector<24x1xf32>
    %159 = vector.broadcast %151 : vector<24x1xf32> to vector<24x32xf32>
    %160 = arith.subf %143, %159 : vector<24x32xf32>
    %cst_61 = arith.constant 9.99999997E-7 : f32
    %161 = vector.broadcast %cst_61 : f32 to vector<24x1xf32>
    %162 = arith.addf %158, %161 : vector<24x1xf32>
    %163 = math.rsqrt %162 : vector<24x1xf32>
    %164 = vector.broadcast %163 : vector<24x1xf32> to vector<24x32xf32>
    %165 = arith.mulf %160, %164 : vector<24x32xf32>
    %166 = vector.broadcast %145 : vector<1x32xf32> to vector<24x32xf32>
    %167 = arith.mulf %165, %166 : vector<24x32xf32>
    %168 = vector.broadcast %147 : vector<1x32xf32> to vector<24x32xf32>
    %169 = arith.addf %167, %168 : vector<24x32xf32>
    %170 = arith.truncf %169 : vector<24x32xf32> to vector<24x32xbf16>
    %c0_62 = arith.constant 0 : index
    %c0_63 = arith.constant 0 : index
    %c0_64 = arith.constant 0 : index
    %171 = vector.load %arg17[%c0_62, %c0_63, %c0_64] : memref<1x32x128xbf16, #tpu.memory_space<vmem>>, vector<1x32x128xbf16>
    %172 = vector.shape_cast %171 : vector<1x32x128xbf16> to vector<32x128xbf16>
    %cst_65 = arith.constant dense<0.000000e+00> : vector<24x128xf32>
    %173 = tpu.matmul %170, %172, %cst_65 {dimension_numbers = #tpu.dot_dimension_numbers<[1], [0], [0], [1], [0, 0, 1, 1], [], []>} : vector<24x32xbf16>, vector<32x128xbf16>, vector<24x128xf32> -> vector<24x128xf32>
    %c0_66 = arith.constant 0 : index
    %c0_67 = arith.constant 0 : index
    %c0_68 = arith.constant 0 : index
    %174 = vector.load %arg18[%c0_66, %c0_67, %c0_68] : memref<1x1x128xf32, #tpu.memory_space<vmem>>, vector<1x1x128xf32>
    %175 = vector.shape_cast %174 : vector<1x1x128xf32> to vector<1x128xf32>
    %176 = vector.broadcast %175 : vector<1x128xf32> to vector<24x128xf32>
    %177 = arith.addf %173, %176 : vector<24x128xf32>
    %cst_69 = arith.constant 5.000000e-01 : f32
    %178 = vector.broadcast %cst_69 : f32 to vector<24x128xf32>
    %179 = arith.mulf %178, %177 : vector<24x128xf32>
    %cst_70 = arith.constant 0.707106769 : f32
    %180 = vector.broadcast %cst_70 : f32 to vector<24x128xf32>
    %181 = arith.mulf %177, %180 : vector<24x128xf32>
    %182 = math.erf %181 : vector<24x128xf32>
    %cst_71 = arith.constant 1.000000e+00 : f32
    %183 = vector.broadcast %cst_71 : f32 to vector<24x128xf32>
    %184 = arith.addf %183, %182 : vector<24x128xf32>
    %185 = arith.mulf %179, %184 : vector<24x128xf32>
    %186 = arith.truncf %185 : vector<24x128xf32> to vector<24x128xbf16>
    %c0_72 = arith.constant 0 : index
    %c0_73 = arith.constant 0 : index
    %c0_74 = arith.constant 0 : index
    %187 = vector.load %arg19[%c0_72, %c0_73, %c0_74] : memref<1x128x32xbf16, #tpu.memory_space<vmem>>, vector<1x128x32xbf16>
    %188 = vector.shape_cast %187 : vector<1x128x32xbf16> to vector<128x32xbf16>
    %cst_75 = arith.constant dense<0.000000e+00> : vector<24x32xf32>
    %189 = tpu.matmul %186, %188, %cst_75 {dimension_numbers = #tpu.dot_dimension_numbers<[1], [0], [0], [1], [0, 0, 1, 1], [], []>} : vector<24x128xbf16>, vector<128x32xbf16>, vector<24x32xf32> -> vector<24x32xf32>
    %c0_76 = arith.constant 0 : index
    %c0_77 = arith.constant 0 : index
    %c0_78 = arith.constant 0 : index
    %190 = vector.load %arg20[%c0_76, %c0_77, %c0_78] : memref<1x1x32xf32, #tpu.memory_space<vmem>>, vector<1x1x32xf32>
    %191 = vector.shape_cast %190 : vector<1x1x32xf32> to vector<1x32xf32>
    %192 = vector.broadcast %191 : vector<1x32xf32> to vector<24x32xf32>
    %193 = arith.addf %189, %192 : vector<24x32xf32>
    %194 = arith.addf %143, %193 : vector<24x32xf32>
    %c0_79 = arith.constant 0 : index
    %c0_80 = arith.constant 0 : index
    %c0_81 = arith.constant 0 : index
    %195 = vector.load %arg21[%c0_79, %c0_80, %c0_81] : memref<1x24x32xf32, #tpu.memory_space<vmem>>, vector<1x24x32xf32>
    %196 = vector.shape_cast %195 : vector<1x24x32xf32> to vector<24x32xf32>
    %197 = vector.shape_cast %194 : vector<24x32xf32> to vector<1x24x32xf32>
    tpu.vector_store %arg21[%c0_79, %c0_80, %c0_81], %197 {strides = array<i32>} : memref<1x24x32xf32, #tpu.memory_space<vmem>>, vector<1x24x32xf32>,
    return
  }
  func.func @transform_0(%arg0: i32, %arg1: i32) -> (i32, i32, i32) {
    %c0_i32 = arith.constant 0 : i32
    %c0_i32_0 = arith.constant 0 : i32
    %c0_i32_1 = arith.constant 0 : i32
    return %arg0, %c0_i32, %c0_i32_0 : i32, i32, i32
  }
  func.func @transform_1(%arg0: i32, %arg1: i32) -> (i32, i32) {
    %c0_i32 = arith.constant 0 : i32
    %c0_i32_0 = arith.constant 0 : i32
    %c0_i32_1 = arith.constant 0 : i32
    return %c0_i32, %c0_i32_0 : i32, i32
  }
  func.func @transform_2(%arg0: i32, %arg1: i32) -> (i32, i32) {
    %c0_i32 = arith.constant 0 : i32
    %c0_i32_0 = arith.constant 0 : i32
    %c0_i32_1 = arith.constant 0 : i32
    return %c0_i32, %c0_i32_0 : i32, i32
  }
  func.func @transform_3(%arg0: i32, %arg1: i32) -> (i32, i32) {
    %c0_i32 = arith.constant 0 : i32
    %c0_i32_0 = arith.constant 0 : i32
    %c0_i32_1 = arith.constant 0 : i32
    return %c0_i32, %c0_i32_0 : i32, i32
  }
  func.func @transform_4(%arg0: i32, %arg1: i32) -> (i32, i32) {
    %c0_i32 = arith.constant 0 : i32
    %c0_i32_0 = arith.constant 0 : i32
    %c0_i32_1 = arith.constant 0 : i32
    return %c0_i32, %c0_i32_0 : i32, i32
  }
  func.func @transform_5(%arg0: i32, %arg1: i32) -> (i32, i32) {
    %c0_i32 = arith.constant 0 : i32
    %c0_i32_0 = arith.constant 0 : i32
    %c0_i32_1 = arith.constant 0 : i32
    return %c0_i32, %c0_i32_0 : i32, i32
  }
  func.func @transform_6(%arg0: i32, %arg1: i32) -> (i32, i32) {
    %c0_i32 = arith.constant 0 : i32
    %c0_i32_0 = arith.constant 0 : i32
    %c0_i32_1 = arith.constant 0 : i32
    return %c0_i32, %c0_i32_0 : i32, i32
  }
  func.func @transform_7(%arg0: i32, %arg1: i32) -> (i32, i32, i32) {
    %c0_i32 = arith.constant 0 : i32
    %c0_i32_0 = arith.constant 0 : i32
    %c0_i32_1 = arith.constant 0 : i32
    return %arg1, %c0_i32, %c0_i32_0 : i32, i32, i32
  }
  func.func @transform_8(%arg0: i32, %arg1: i32) -> (i32, i32, i32) {
    %c0_i32 = arith.constant 0 : i32
    %c0_i32_0 = arith.constant 0 : i32
    %c0_i32_1 = arith.constant 0 : i32
    return %arg1, %c0_i32, %c0_i32_0 : i32, i32, i32
  }
  func.func @transform_9(%arg0: i32, %arg1: i32) -> (i32, i32, i32) {
    %c0_i32 = arith.constant 0 : i32
    %c0_i32_0 = arith.constant 0 : i32
    %c0_i32_1 = arith.constant 0 : i32
    return %arg1, %c0_i32, %c0_i32_0 : i32, i32, i32
  }
  func.func @transform_10(%arg0: i32, %arg1: i32) -> (i32, i32, i32) {
    %c0_i32 = arith.constant 0 : i32
    %c0_i32_0 = arith.constant 0 : i32
    %c0_i32_1 = arith.constant 0 : i32
    return %arg1, %c0_i32, %c0_i32_0 : i32, i32, i32
  }
  func.func @transform_11(%arg0: i32, %arg1: i32) -> (i32, i32, i32) {
    %c0_i32 = arith.constant 0 : i32
    %c0_i32_0 = arith.constant 0 : i32
    %c0_i32_1 = arith.constant 0 : i32
    return %arg1, %c0_i32, %c0_i32_0 : i32, i32, i32
  }
  func.func @transform_12(%arg0: i32, %arg1: i32) -> (i32, i32, i32) {
    %c0_i32 = arith.constant 0 : i32
    %c0_i32_0 = arith.constant 0 : i32
    %c0_i32_1 = arith.constant 0 : i32
    return %arg1, %c0_i32, %c0_i32_0 : i32, i32, i32
  }
  func.func @transform_13(%arg0: i32, %arg1: i32) -> (i32, i32, i32) {
    %c0_i32 = arith.constant 0 : i32
    %c0_i32_0 = arith.constant 0 : i32
    %c0_i32_1 = arith.constant 0 : i32
    return %arg1, %c0_i32, %c0_i32_0 : i32, i32, i32
  }
  func.func @transform_14(%arg0: i32, %arg1: i32) -> (i32, i32, i32) {
    %c0_i32 = arith.constant 0 : i32
    %c0_i32_0 = arith.constant 0 : i32
    %c0_i32_1 = arith.constant 0 : i32
    return %arg1, %c0_i32, %c0_i32_0 : i32, i32, i32
  }
  func.func @transform_15(%arg0: i32, %arg1: i32) -> (i32, i32, i32) {
    %c0_i32 = arith.constant 0 : i32
    %c0_i32_0 = arith.constant 0 : i32
    %c0_i32_1 = arith.constant 0 : i32
    return %arg1, %c0_i32, %c0_i32_0 : i32, i32, i32
  }
  func.func @transform_16(%arg0: i32, %arg1: i32) -> (i32, i32, i32) {
    %c0_i32 = arith.constant 0 : i32
    %c0_i32_0 = arith.constant 0 : i32
    %c0_i32_1 = arith.constant 0 : i32
    return %arg1, %c0_i32, %c0_i32_0 : i32, i32, i32
  }
  func.func @transform_17(%arg0: i32, %arg1: i32) -> (i32, i32, i32) {
    %c0_i32 = arith.constant 0 : i32
    %c0_i32_0 = arith.constant 0 : i32
    %c0_i32_1 = arith.constant 0 : i32
    return %arg1, %c0_i32, %c0_i32_0 : i32, i32, i32
  }
  func.func @transform_18(%arg0: i32, %arg1: i32) -> (i32, i32, i32) {
    %c0_i32 = arith.constant 0 : i32
    %c0_i32_0 = arith.constant 0 : i32
    %c0_i32_1 = arith.constant 0 : i32
    return %arg1, %c0_i32, %c0_i32_0 : i32, i32, i32
  }
  func.func @transform_19(%arg0: i32, %arg1: i32) -> (i32, i32, i32) {
    %c0_i32 = arith.constant 0 : i32
    %c0_i32_0 = arith.constant 0 : i32
    %c0_i32_1 = arith.constant 0 : i32
    return %arg0, %c0_i32, %c0_i32_0 : i32, i32, i32
  }
}

</mosaic_0001>

<llo_original>
// kernel: timm_encoder_forward.1
$region0: #{timm_encoder_forward.1}
  #allocation0 [shape = 'u32[]', space=smem, size = 0x4, offset = 0x4, fixed_abs, tag = 'smem constant byte address 0x4 - core index']
  #allocation1 [shape = 'u32[144,128]{1,0:T(1,128)}', space=vmem, size = 0x12000, scoped, tag = 'internal scratch']
  %s0 = inlined_call_operand.hbm [shape: f32[2,16,128], index: 0, kind: input, shape index: {}]
  %s1 = inlined_call_operand.hbm [shape: f32[128,32], index: 1, kind: input, shape index: {}]
  %s2 = inlined_call_operand.hbm [shape: f32[1,32], index: 2, kind: input, shape index: {}]
  %s3 = inlined_call_operand.hbm [shape: f32[1,32], index: 3, kind: input, shape index: {}]
  %s4 = inlined_call_operand.hbm [shape: f32[24,32], index: 4, kind: input, shape index: {}]
  %s5 = inlined_call_operand.hbm [shape: f32[1,32], index: 5, kind: input, shape index: {}]
  %s6 = inlined_call_operand.hbm [shape: f32[1,32], index: 6, kind: input, shape index: {}]
  %s7 = inlined_call_operand.hbm [shape: f32[2,1,32], index: 7, kind: input, shape index: {}]
  %s8 = inlined_call_operand.hbm [shape: f32[2,1,32], index: 8, kind: input, shape index: {}]
  %s9 = inlined_call_operand.hbm [shape: bf16[2,32,96], index: 9, kind: input, shape index: {}]
  %s10 = inlined_call_operand.hbm [shape: f32[2,1,96], index: 10, kind: input, shape index: {}]
  %s11 = inlined_call_operand.hbm [shape: bf16[2,32,32], index: 11, kind: input, shape index: {}]
  %s12 = inlined_call_operand.hbm [shape: f32[2,1,32], index: 12, kind: input, shape index: {}]
  %s13 = inlined_call_operand.hbm [shape: f32[2,1,32], index: 13, kind: input, shape index: {}]
  %s14 = inlined_call_operand.hbm [shape: f32[2,1,32], index: 14, kind: input, shape index: {}]
  %s15 = inlined_call_operand.hbm [shape: bf16[2,32,128], index: 15, kind: input, shape index: {}]
  %s16 = inlined_call_operand.hbm [shape: f32[2,1,128], index: 16, kind: input, shape index: {}]
  %s17 = inlined_call_operand.hbm [shape: bf16[2,128,32], index: 17, kind: input, shape index: {}]
  %s18 = inlined_call_operand.hbm [shape: f32[2,1,32], index: 18, kind: input, shape index: {}]
  %s19 = inlined_call_operand.hbm [shape: f32[2,24,32], index: 19, kind: output, shape index: {}]
  %s20 = sld [smem:[#allocation0]]
  $region189: #{timm_encoder_forward.1} parent=0
    _
  %s22 = ssub.s32 1, %s20
  %s23 = scalar_select 0, %s22, %s20
  $region1: #{timm_encoder_forward.1} parent=0
    #allocation2 [shape = 'u8[16384]{0}', space=vmem, size = 0x4000, scoped, tag = 'input window, operand 0']
    #allocation3 [shape = 's32[2]{0}', space=sflag, size = 0x8, scoped, tag = 'scoped memory for timm_encoder_forward.1']
    #allocation4 [shape = 's32[2]{0}', space=sflag, size = 0x8, scoped, tag = 'scoped memory for timm_encoder_forward.1']
    #allocation5 [shape = 'u8[65536]{0}', space=vmem, size = 0x10000, scoped, tag = 'input window, operand 1, single buffered']
    #allocation6 [shape = 's32[1]{0}', space=sflag, size = 0x4, scoped, tag = 'scoped memory for timm_encoder_forward.1']
    #allocation7 [shape = 'u8[512]{0}', space=vmem, size = 0x400, scoped, tag = 'input window, operand 2, single buffered']
    #allocation8 [shape = 'u8[512]{0}', space=vmem, size = 0x400, scoped, tag = 'input window, operand 3, single buffered']
    #allocation9 [shape = 's32[1]{0}', space=sflag, size = 0x4, scoped, tag = 'scoped memory for timm_encoder_forward.1']
    #allocation10 [shape = 'u8[12288]{0}', space=vmem, size = 0x3000, scoped, tag = 'input window, operand 4, single buffered']
    #allocation11 [shape = 'u8[512]{0}', space=vmem, size = 0x400, scoped, tag = 'input window, operand 5, single buffered']
    #allocation12 [shape = 's32[1]{0}', space=sflag, size = 0x4, scoped, tag = 'scoped memory for timm_encoder_forward.1']
    #allocation13 [shape = 'u8[512]{0}', space=vmem, size = 0x400, scoped, tag = 'input window, operand 6, single buffered']
    #allocation14 [shape = 'u8[1024]{0}', space=vmem, size = 0x400, scoped, tag = 'input window, operand 7']
    #allocation15 [shape = 's32[2]{0}', space=sflag, size = 0x8, scoped, tag = 'scoped memory for timm_encoder_forward.1']
    #allocation16 [shape = 'u8[1024]{0}', space=vmem, size = 0x400, scoped, tag = 'input window, operand 8']
    #allocation17 [shape = 'u8[16384]{0}', space=vmem, size = 0x4000, scoped, tag = 'input window, operand 9']
    #allocation18 [shape = 's32[2]{0}', space=sflag, size = 0x8, scoped, tag = 'scoped memory for timm_encoder_forward.1']
    #allocation19 [shape = 'u8[1024]{0}', space=vmem, size = 0x400, scoped, tag = 'input window, operand 10']
    #allocation20 [shape = 'u8[16384]{0}', space=vmem, size = 0x4000, scoped, tag = 'input window, operand 11']
    #allocation21 [shape = 's32[2]{0}', space=sflag, size = 0x8, scoped, tag = 'scoped memory for timm_encoder_forward.1']
    #allocation22 [shape = 'u8[1024]{0}', space=vmem, size = 0x400, scoped, tag = 'input window, operand 12']
    #allocation23 [shape = 'u8[1024]{0}', space=vmem, size = 0x400, scoped, tag = 'input window, operand 13']
    #allocation24 [shape = 's32[2]{0}', space=sflag, size = 0x8, scoped, tag = 'scoped memory for timm_encoder_forward.1']
    #allocation25 [shape = 'u8[1024]{0}', space=vmem, size = 0x400, scoped, tag = 'input window, operand 14']
    #allocation26 [shape = 'u8[16384]{0}', space=vmem, size = 0x4000, scoped, tag = 'input window, operand 15']
    #allocation27 [shape = 's32[2]{0}', space=sflag, size = 0x8, scoped, tag = 'scoped memory for timm_encoder_forward.1']
    #allocation28 [shape = 'u8[1024]{0}', space=vmem, size = 0x400, scoped, tag = 'input window, operand 16']
    #allocation29 [shape = 'u8[65536]{0}', space=vmem, size = 0x10000, scoped, tag = 'input window, operand 17']
    #allocation30 [shape = 's32[2]{0}', space=sflag, size = 0x8, scoped, tag = 'scoped memory for timm_encoder_forward.1']
    #allocation31 [shape = 'u8[1024]{0}', space=vmem, size = 0x400, scoped, tag = 'input window, operand 18']
    #allocation32 [shape = 'u8[24576]{0}', space=vmem, size = 0x6000, scoped, tag = 'output window, operand 0']
    %24 = vsyncpa [#allocation3], 0
    %s25 = scalar_lea.sflag [#allocation3], 1
    %26 = vsyncpa %s25, 0
    %27 = vsyncpa [#allocation6], 0
    %28 = vsyncpa [#allocation9], 0
    %29 = vsyncpa [#allocation12], 0
    %30 = vsyncpa [#allocation15], 0
    %s31 = scalar_lea.sflag [#allocation15], 1
    %32 = vsyncpa %s31, 0
    %33 = vsyncpa [#allocation18], 0
    %s34 = scalar_lea.sflag [#allocation18], 1
    %35 = vsyncpa %s34, 0
    %36 = vsyncpa [#allocation21], 0
    %s37 = scalar_lea.sflag [#allocation21], 1
    %38 = vsyncpa %s37, 0
    %39 = vsyncpa [#allocation24], 0
    %s40 = scalar_lea.sflag [#allocation24], 1
    %41 = vsyncpa %s40, 0
    %42 = vsyncpa [#allocation27], 0
    %s43 = scalar_lea.sflag [#allocation27], 1
    %44 = vsyncpa %s43, 0
    %45 = vsyncpa [#allocation30], 0
    %s46 = scalar_lea.sflag [#allocation30], 1
    %47 = vsyncpa %s46, 0
    %48 = vsyncpa [#allocation4], 0
    %s49 = scalar_lea.sflag [#allocation4], 1
    %50 = vsyncpa %s49, 0
    loop: start=0, step=1, limit=6
    $region2: #{timm_encoder_forward.1} parent=1 // loop_pre_header
      _
    $region3: #{timm_encoder_forward.1} parent=1 // loop_header
      %s52 = sphi 0, %s56
      %p53 = scmp.ge.s32.totalorder %s52, 6
      %s59 = sphi 0, %s71
      %s60 = sphi 0, %s67
      %s61 = sphi 0, %s59
      %s62 = sphi 0, %s60
      %s63 = sphi 0, %s61
      %s64 = sphi 0, %s62
      %s74 = sphi 0, %s76
      %s77 = sphi 0, %s74
      %s78 = sphi 0, %s77
      %s94 = sphi 0, %s78
      %s98 = sphi 0, %s98
      %s100 = sphi 0, %s98
      %s101 = sphi 0, %s100
      %s115 = sphi 0, %s101
      %s119 = sphi 0, %s119
      %s121 = sphi 0, %s119
      %s122 = sphi 0, %s121
      %s136 = sphi 0, %s122
      %s140 = sphi 0, %s140
      %s142 = sphi 0, %s140
      %s143 = sphi 0, %s142
      %s157 = sphi 0, %s143
      %s161 = sphi 0, %s161
      %s163 = sphi 0, %s161
      %s164 = sphi 0, %s163
      %s178 = sphi 0, %s164
      %s182 = sphi 0, %s182
      %s184 = sphi 0, %s182
      %s185 = sphi 0, %s184
      %s199 = sphi 0, %s185
      %s203 = sphi 0, %s203
      %s205 = sphi 0, %s203
      %s206 = sphi 0, %s205
      %s220 = sphi 0, %s206
      %s226 = sphi 0, %s228
      %s229 = sphi 0, %s226
      %s230 = sphi 0, %s229
      %s246 = sphi 0, %s230
      %s252 = sphi 0, %s254
      %s255 = sphi 0, %s252
      %s256 = sphi 0, %s255
      %s272 = sphi 0, %s256
      %s278 = sphi 0, %s280
      %s281 = sphi 0, %s278
      %s282 = sphi 0, %s281
      %s298 = sphi 0, %s282
      %s304 = sphi 0, %s306
      %s307 = sphi 0, %s304
      %s308 = sphi 0, %s307
      %s324 = sphi 0, %s308
      %s330 = sphi 0, %s332
      %s333 = sphi 0, %s330
      %s334 = sphi 0, %s333
      %s350 = sphi 0, %s334
      %s356 = sphi 0, %s358
      %s359 = sphi 0, %s356
      %s360 = sphi 0, %s359
      %s376 = sphi 0, %s360
      %s382 = sphi 0, %s384
      %s385 = sphi 0, %s382
      %s386 = sphi 0, %s385
      %s402 = sphi 0, %s386
      %s408 = sphi 0, %s410
      %s411 = sphi 0, %s408
      %s412 = sphi 0, %s411
      %s428 = sphi 0, %s412
      %s434 = sphi 0, %s436
      %s437 = sphi 0, %s434
      %s438 = sphi 0, %s437
      %s454 = sphi 0, %s438
      %s460 = sphi 0, %s462
      %s463 = sphi 0, %s460
      %s464 = sphi 0, %s463
      %s480 = sphi 0, %s464
      %s486 = sphi 0, %s488
      %s489 = sphi 0, %s486
      %s490 = sphi 0, %s489
      %s506 = sphi 0, %s490
      %s512 = sphi 0, %s514
      %s515 = sphi 0, %s512
      %s516 = sphi 0, %s515
      %s532 = sphi 0, %s516
      %s538 = sphi 0, %s540
      %s541 = sphi 0, %s538
      %s542 = sphi 0, %s541
      %s558 = sphi 0, %s542
    $region4: #{timm_encoder_forward.1} parent=1 // loop_header_branch
      %55 = sbr.rel (%p53) target = $region8
    $region5: #{timm_encoder_forward.1} parent=1 // loop_body
      %s57 = ssub.s32 %s52, 1
      %s58 = ssub.s32 %s52, 2
      %s65 = sadd.s32 1, %s60
      %p66 = scmp.ge.s32.totalorder %s65, 2
      %s67 = scalar_select %p66, 0, %s65
      %s68 = sadd.s32 1, %s59
      %s69 = scalar_select %p66, %s68, %s59
      %p70 = scmp.ge.s32.totalorder %s69, 2
      %s71 = scalar_select %p70, 0, %s69
      %s72 = ssub.s32 %s59, %s71
      %p73 = scmp.eq.s32.totalorder %s72, 0
      %s75 = sadd.s32 %s74, 1
      %s76 = scalar_select %p73, %s74, %s75
      %p79 = pneg %p73
      %p80 = scmp.eq.s32.totalorder %s52, 3
      %p81 = por %p79, %p80
      %p82 = scmp.ne.s32.totalorder %s74, %s77
      %p83 = scmp.eq.s32.totalorder %s52, 0
      %p84 = por %p82, %p83
      %p85 = scmp.ne.s32.totalorder %s74, %s77
      %p86 = scmp.eq.s32.totalorder %s57, 3
      %p87 = por %p85, %p86
      %p88 = scmp.ne.s32.totalorder %s77, %s78
      %p89 = scmp.eq.s32.totalorder %s57, 0
      %p90 = por %p88, %p89
      %p91 = scmp.ne.s32.totalorder %s77, %s78
      %p92 = scmp.eq.s32.totalorder %s58, 3
      %p93 = por %p91, %p92
      %p95 = scmp.ne.s32.totalorder %s78, %s94
      %p96 = scmp.eq.s32.totalorder %s58, 0
      %p97 = por %p95, %p96
      %s99 = sadd.s32 %s98, 1
      %p102 = scmp.eq.s32.totalorder %s52, 3
      %p103 = scmp.ne.s32.totalorder %s98, %s100
      %p104 = scmp.eq.s32.totalorder %s52, 0
      %p105 = por %p103, %p104
      %p106 = scmp.ne.s32.totalorder %s98, %s100
      %p107 = scmp.eq.s32.totalorder %s57, 3
      %p108 = por %p106, %p107
      %p109 = scmp.ne.s32.totalorder %s100, %s101
      %p110 = scmp.eq.s32.totalorder %s57, 0
      %p111 = por %p109, %p110
      %p112 = scmp.ne.s32.totalorder %s100, %s101
      %p113 = scmp.eq.s32.totalorder %s58, 3
      %p114 = por %p112, %p113
      %p116 = scmp.ne.s32.totalorder %s101, %s115
      %p117 = scmp.eq.s32.totalorder %s58, 0
      %p118 = por %p116, %p117
      %s120 = sadd.s32 %s119, 1
      %p123 = scmp.eq.s32.totalorder %s52, 3
      %p124 = scmp.ne.s32.totalorder %s119, %s121
      %p125 = scmp.eq.s32.totalorder %s52, 0
      %p126 = por %p124, %p125
      %p127 = scmp.ne.s32.totalorder %s119, %s121
      %p128 = scmp.eq.s32.totalorder %s57, 3
      %p129 = por %p127, %p128
      %p130 = scmp.ne.s32.totalorder %s121, %s122
      %p131 = scmp.eq.s32.totalorder %s57, 0
      %p132 = por %p130, %p131
      %p133 = scmp.ne.s32.totalorder %s121, %s122
      %p134 = scmp.eq.s32.totalorder %s58, 3
      %p135 = por %p133, %p134
      %p137 = scmp.ne.s32.totalorder %s122, %s136
      %p138 = scmp.eq.s32.totalorder %s58, 0
      %p139 = por %p137, %p138
      %s141 = sadd.s32 %s140, 1
      %p144 = scmp.eq.s32.totalorder %s52, 3
      %p145 = scmp.ne.s32.totalorder %s140, %s142
      %p146 = scmp.eq.s32.totalorder %s52, 0
      %p147 = por %p145, %p146
      %p148 = scmp.ne.s32.totalorder %s140, %s142
      %p149 = scmp.eq.s32.totalorder %s57, 3
      %p150 = por %p148, %p149
      %p151 = scmp.ne.s32.totalorder %s142, %s143
      %p152 = scmp.eq.s32.totalorder %s57, 0
      %p153 = por %p151, %p152
      %p154 = scmp.ne.s32.totalorder %s142, %s143
      %p155 = scmp.eq.s32.totalorder %s58, 3
      %p156 = por %p154, %p155
      %p158 = scmp.ne.s32.totalorder %s143, %s157
      %p159 = scmp.eq.s32.totalorder %s58, 0
      %p160 = por %p158, %p159
      %s162 = sadd.s32 %s161, 1
      %p165 = scmp.eq.s32.totalorder %s52, 3
      %p166 = scmp.ne.s32.totalorder %s161, %s163
      %p167 = scmp.eq.s32.totalorder %s52, 0
      %p168 = por %p166, %p167
      %p169 = scmp.ne.s32.totalorder %s161, %s163
      %p170 = scmp.eq.s32.totalorder %s57, 3
      %p171 = por %p169, %p170
      %p172 = scmp.ne.s32.totalorder %s163, %s164
      %p173 = scmp.eq.s32.totalorder %s57, 0
      %p174 = por %p172, %p173
      %p175 = scmp.ne.s32.totalorder %s163, %s164
      %p176 = scmp.eq.s32.totalorder %s58, 3
      %p177 = por %p175, %p176
      %p179 = scmp.ne.s32.totalorder %s164, %s178
      %p180 = scmp.eq.s32.totalorder %s58, 0
      %p181 = por %p179, %p180
      %s183 = sadd.s32 %s182, 1
      %p186 = scmp.eq.s32.totalorder %s52, 3
      %p187 = scmp.ne.s32.totalorder %s182, %s184
      %p188 = scmp.eq.s32.totalorder %s52, 0
      %p189 = por %p187, %p188
      %p190 = scmp.ne.s32.totalorder %s182, %s184
      %p191 = scmp.eq.s32.totalorder %s57, 3
      %p192 = por %p190, %p191
      %p193 = scmp.ne.s32.totalorder %s184, %s185
      %p194 = scmp.eq.s32.totalorder %s57, 0
      %p195 = por %p193, %p194
      %p196 = scmp.ne.s32.totalorder %s184, %s185
      %p197 = scmp.eq.s32.totalorder %s58, 3
      %p198 = por %p196, %p197
      %p200 = scmp.ne.s32.totalorder %s185, %s199
      %p201 = scmp.eq.s32.totalorder %s58, 0
      %p202 = por %p200, %p201
      %s204 = sadd.s32 %s203, 1
      %p207 = scmp.eq.s32.totalorder %s52, 3
      %p208 = scmp.ne.s32.totalorder %s203, %s205
      %p209 = scmp.eq.s32.totalorder %s52, 0
      %p210 = por %p208, %p209
      %p211 = scmp.ne.s32.totalorder %s203, %s205
      %p212 = scmp.eq.s32.totalorder %s57, 3
      %p213 = por %p211, %p212
      %p214 = scmp.ne.s32.totalorder %s205, %s206
      %p215 = scmp.eq.s32.totalorder %s57, 0
      %p216 = por %p214, %p215
      %p217 = scmp.ne.s32.totalorder %s205, %s206
      %p218 = scmp.eq.s32.totalorder %s58, 3
      %p219 = por %p217, %p218
      %p221 = scmp.ne.s32.totalorder %s206, %s220
      %p222 = scmp.eq.s32.totalorder %s58, 0
      %p223 = por %p221, %p222
      %s224 = ssub.s32 %s60, %s67
      %p225 = scmp.eq.s32.totalorder %s224, 0
      %s227 = sadd.s32 %s226, 1
      %s228 = scalar_select %p225, %s226, %s227
      %p231 = pneg %p225
      %p232 = scmp.eq.s32.totalorder %s52, 3
      %p233 = por %p231, %p232
      %p234 = scmp.ne.s32.totalorder %s226, %s229
      %p235 = scmp.eq.s32.totalorder %s52, 0
      %p236 = por %p234, %p235
      %p237 = scmp.ne.s32.totalorder %s226, %s229
      %p238 = scmp.eq.s32.totalorder %s57, 3
      %p239 = por %p237, %p238
      %p240 = scmp.ne.s32.totalorder %s229, %s230
      %p241 = scmp.eq.s32.totalorder %s57, 0
      %p242 = por %p240, %p241
      %p243 = scmp.ne.s32.totalorder %s229, %s230
      %p244 = scmp.eq.s32.totalorder %s58, 3
      %p245 = por %p243, %p244
      %p247 = scmp.ne.s32.totalorder %s230, %s246
      %p248 = scmp.eq.s32.totalorder %s58, 0
      %p249 = por %p247, %p248
      %s250 = ssub.s32 %s60, %s67
      %p251 = scmp.eq.s32.totalorder %s250, 0
      %s253 = sadd.s32 %s252, 1
      %s254 = scalar_select %p251, %s252, %s253
      %p257 = pneg %p251
      %p258 = scmp.eq.s32.totalorder %s52, 3
      %p259 = por %p257, %p258
      %p260 = scmp.ne.s32.totalorder %s252, %s255
      %p261 = scmp.eq.s32.totalorder %s52, 0
      %p262 = por %p260, %p261
      %p263 = scmp.ne.s32.totalorder %s252, %s255
      %p264 = scmp.eq.s32.totalorder %s57, 3
      %p265 = por %p263, %p264
      %p266 = scmp.ne.s32.totalorder %s255, %s256
      %p267 = scmp.eq.s32.totalorder %s57, 0
      %p268 = por %p266, %p267
      %p269 = scmp.ne.s32.totalorder %s255, %s256
      %p270 = scmp.eq.s32.totalorder %s58, 3
      %p271 = por %p269, %p270
      %p273 = scmp.ne.s32.totalorder %s256, %s272
      %p274 = scmp.eq.s32.totalorder %s58, 0
      %p275 = por %p273, %p274
      %s276 = ssub.s32 %s60, %s67
      %p277 = scmp.eq.s32.totalorder %s276, 0
      %s279 = sadd.s32 %s278, 1
      %s280 = scalar_select %p277, %s278, %s279
      %p283 = pneg %p277
      %p284 = scmp.eq.s32.totalorder %s52, 3
      %p285 = por %p283, %p284
      %p286 = scmp.ne.s32.totalorder %s278, %s281
      %p287 = scmp.eq.s32.totalorder %s52, 0
      %p288 = por %p286, %p287
      %p289 = scmp.ne.s32.totalorder %s278, %s281
      %p290 = scmp.eq.s32.totalorder %s57, 3
      %p291 = por %p289, %p290
      %p292 = scmp.ne.s32.totalorder %s281, %s282
      %p293 = scmp.eq.s32.totalorder %s57, 0
      %p294 = por %p292, %p293
      %p295 = scmp.ne.s32.totalorder %s281, %s282
      %p296 = scmp.eq.s32.totalorder %s58, 3
      %p297 = por %p295, %p296
      %p299 = scmp.ne.s32.totalorder %s282, %s298
      %p300 = scmp.eq.s32.totalorder %s58, 0
      %p301 = por %p299, %p300
      %s302 = ssub.s32 %s60, %s67
      %p303 = scmp.eq.s32.totalorder %s302, 0
      %s305 = sadd.s32 %s304, 1
      %s306 = scalar_select %p303, %s304, %s305
      %p309 = pneg %p303
      %p310 = scmp.eq.s32.totalorder %s52, 3
      %p311 = por %p309, %p310
      %p312 = scmp.ne.s32.totalorder %s304, %s307
      %p313 = scmp.eq.s32.totalorder %s52, 0
      %p314 = por %p312, %p313
      %p315 = scmp.ne.s32.totalorder %s304, %s307
      %p316 = scmp.eq.s32.totalorder %s57, 3
      %p317 = por %p315, %p316
      %p318 = scmp.ne.s32.totalorder %s307, %s308
      %p319 = scmp.eq.s32.totalorder %s57, 0
      %p320 = por %p318, %p319
      %p321 = scmp.ne.s32.totalorder %s307, %s308
      %p322 = scmp.eq.s32.totalorder %s58, 3
      %p323 = por %p321, %p322
      %p325 = scmp.ne.s32.totalorder %s308, %s324
      %p326 = scmp.eq.s32.totalorder %s58, 0
      %p327 = por %p325, %p326
      %s328 = ssub.s32 %s60, %s67
      %p329 = scmp.eq.s32.totalorder %s328, 0
      %s331 = sadd.s32 %s330, 1
      %s332 = scalar_select %p329, %s330, %s331
      %p335 = pneg %p329
      %p336 = scmp.eq.s32.totalorder %s52, 3
      %p337 = por %p335, %p336
      %p338 = scmp.ne.s32.totalorder %s330, %s333
      %p339 = scmp.eq.s32.totalorder %s52, 0
      %p340 = por %p338, %p339
      %p341 = scmp.ne.s32.totalorder %s330, %s333
      %p342 = scmp.eq.s32.totalorder %s57, 3
      %p343 = por %p341, %p342
      %p344 = scmp.ne.s32.totalorder %s333, %s334
      %p345 = scmp.eq.s32.totalorder %s57, 0
      %p346 = por %p344, %p345
      %p347 = scmp.ne.s32.totalorder %s333, %s334
      %p348 = scmp.eq.s32.totalorder %s58, 3
      %p349 = por %p347, %p348
      %p351 = scmp.ne.s32.totalorder %s334, %s350
      %p352 = scmp.eq.s32.totalorder %s58, 0
      %p353 = por %p351, %p352
      %s354 = ssub.s32 %s60, %s67
      %p355 = scmp.eq.s32.totalorder %s354, 0
      %s357 = sadd.s32 %s356, 1
      %s358 = scalar_select %p355, %s356, %s357
      %p361 = pneg %p355
      %p362 = scmp.eq.s32.totalorder %s52, 3
      %p363 = por %p361, %p362
      %p364 = scmp.ne.s32.totalorder %s356, %s359
      %p365 = scmp.eq.s32.totalorder %s52, 0
      %p366 = por %p364, %p365
      %p367 = scmp.ne.s32.totalorder %s356, %s359
      %p368 = scmp.eq.s32.totalorder %s57, 3
      %p369 = por %p367, %p368
      %p370 = scmp.ne.s32.totalorder %s359, %s360
      %p371 = scmp.eq.s32.totalorder %s57, 0
      %p372 = por %p370, %p371
      %p373 = scmp.ne.s32.totalorder %s359, %s360
      %p374 = scmp.eq.s32.totalorder %s58, 3
      %p375 = por %p373, %p374
      %p377 = scmp.ne.s32.totalorder %s360, %s376
      %p378 = scmp.eq.s32.totalorder %s58, 0
      %p379 = por %p377, %p378
      %s380 = ssub.s32 %s60, %s67
      %p381 = scmp.eq.s32.totalorder %s380, 0
      %s383 = sadd.s32 %s382, 1
      %s384 = scalar_select %p381, %s382, %s383
      %p387 = pneg %p381
      %p388 = scmp.eq.s32.totalorder %s52, 3
      %p389 = por %p387, %p388
      %p390 = scmp.ne.s32.totalorder %s382, %s385
      %p391 = scmp.eq.s32.totalorder %s52, 0
      %p392 = por %p390, %p391
      %p393 = scmp.ne.s32.totalorder %s382, %s385
      %p394 = scmp.eq.s32.totalorder %s57, 3
      %p395 = por %p393, %p394
      %p396 = scmp.ne.s32.totalorder %s385, %s386
      %p397 = scmp.eq.s32.totalorder %s57, 0
      %p398 = por %p396, %p397
      %p399 = scmp.ne.s32.totalorder %s385, %s386
      %p400 = scmp.eq.s32.totalorder %s58, 3
      %p401 = por %p399, %p400
      %p403 = scmp.ne.s32.totalorder %s386, %s402
      %p404 = scmp.eq.s32.totalorder %s58, 0
      %p405 = por %p403, %p404
      %s406 = ssub.s32 %s60, %s67
      %p407 = scmp.eq.s32.totalorder %s406, 0
      %s409 = sadd.s32 %s408, 1
      %s410 = scalar_select %p407, %s408, %s409
      %p413 = pneg %p407
      %p414 = scmp.eq.s32.totalorder %s52, 3
      %p415 = por %p413, %p414
      %p416 = scmp.ne.s32.totalorder %s408, %s411
      %p417 = scmp.eq.s32.totalorder %s52, 0
      %p418 = por %p416, %p417
      %p419 = scmp.ne.s32.totalorder %s408, %s411
      %p420 = scmp.eq.s32.totalorder %s57, 3
      %p421 = por %p419, %p420
      %p422 = scmp.ne.s32.totalorder %s411, %s412
      %p423 = scmp.eq.s32.totalorder %s57, 0
      %p424 = por %p422, %p423
      %p425 = scmp.ne.s32.totalorder %s411, %s412
      %p426 = scmp.eq.s32.totalorder %s58, 3
      %p427 = por %p425, %p426
      %p429 = scmp.ne.s32.totalorder %s412, %s428
      %p430 = scmp.eq.s32.totalorder %s58, 0
      %p431 = por %p429, %p430
      %s432 = ssub.s32 %s60, %s67
      %p433 = scmp.eq.s32.totalorder %s432, 0
      %s435 = sadd.s32 %s434, 1
      %s436 = scalar_select %p433, %s434, %s435
      %p439 = pneg %p433
      %p440 = scmp.eq.s32.totalorder %s52, 3
      %p441 = por %p439, %p440
      %p442 = scmp.ne.s32.totalorder %s434, %s437
      %p443 = scmp.eq.s32.totalorder %s52, 0
      %p444 = por %p442, %p443
      %p445 = scmp.ne.s32.totalorder %s434, %s437
      %p446 = scmp.eq.s32.totalorder %s57, 3
      %p447 = por %p445, %p446
      %p448 = scmp.ne.s32.totalorder %s437, %s438
      %p449 = scmp.eq.s32.totalorder %s57, 0
      %p450 = por %p448, %p449
      %p451 = scmp.ne.s32.totalorder %s437, %s438
      %p452 = scmp.eq.s32.totalorder %s58, 3
      %p453 = por %p451, %p452
      %p455 = scmp.ne.s32.totalorder %s438, %s454
      %p456 = scmp.eq.s32.totalorder %s58, 0
      %p457 = por %p455, %p456
      %s458 = ssub.s32 %s60, %s67
      %p459 = scmp.eq.s32.totalorder %s458, 0
      %s461 = sadd.s32 %s460, 1
      %s462 = scalar_select %p459, %s460, %s461
      %p465 = pneg %p459
      %p466 = scmp.eq.s32.totalorder %s52, 3
      %p467 = por %p465, %p466
      %p468 = scmp.ne.s32.totalorder %s460, %s463
      %p469 = scmp.eq.s32.totalorder %s52, 0
      %p470 = por %p468, %p469
      %p471 = scmp.ne.s32.totalorder %s460, %s463
      %p472 = scmp.eq.s32.totalorder %s57, 3
      %p473 = por %p471, %p472
      %p474 = scmp.ne.s32.totalorder %s463, %s464
      %p475 = scmp.eq.s32.totalorder %s57, 0
      %p476 = por %p474, %p475
      %p477 = scmp.ne.s32.totalorder %s463, %s464
      %p478 = scmp.eq.s32.totalorder %s58, 3
      %p479 = por %p477, %p478
      %p481 = scmp.ne.s32.totalorder %s464, %s480
      %p482 = scmp.eq.s32.totalorder %s58, 0
      %p483 = por %p481, %p482
      %s484 = ssub.s32 %s60, %s67
      %p485 = scmp.eq.s32.totalorder %s484, 0
      %s487 = sadd.s32 %s486, 1
      %s488 = scalar_select %p485, %s486, %s487
      %p491 = pneg %p485
      %p492 = scmp.eq.s32.totalorder %s52, 3
      %p493 = por %p491, %p492
      %p494 = scmp.ne.s32.totalorder %s486, %s489
      %p495 = scmp.eq.s32.totalorder %s52, 0
      %p496 = por %p494, %p495
      %p497 = scmp.ne.s32.totalorder %s486, %s489
      %p498 = scmp.eq.s32.totalorder %s57, 3
      %p499 = por %p497, %p498
      %p500 = scmp.ne.s32.totalorder %s489, %s490
      %p501 = scmp.eq.s32.totalorder %s57, 0
      %p502 = por %p500, %p501
      %p503 = scmp.ne.s32.totalorder %s489, %s490
      %p504 = scmp.eq.s32.totalorder %s58, 3
      %p505 = por %p503, %p504
      %p507 = scmp.ne.s32.totalorder %s490, %s506
      %p508 = scmp.eq.s32.totalorder %s58, 0
      %p509 = por %p507, %p508
      %s510 = ssub.s32 %s60, %s67
      %p511 = scmp.eq.s32.totalorder %s510, 0
      %s513 = sadd.s32 %s512, 1
      %s514 = scalar_select %p511, %s512, %s513
      %p517 = pneg %p511
      %p518 = scmp.eq.s32.totalorder %s52, 3
      %p519 = por %p517, %p518
      %p520 = scmp.ne.s32.totalorder %s512, %s515
      %p521 = scmp.eq.s32.totalorder %s52, 0
      %p522 = por %p520, %p521
      %p523 = scmp.ne.s32.totalorder %s512, %s515
      %p524 = scmp.eq.s32.totalorder %s57, 3
      %p525 = por %p523, %p524
      %p526 = scmp.ne.s32.totalorder %s515, %s516
      %p527 = scmp.eq.s32.totalorder %s57, 0
      %p528 = por %p526, %p527
      %p529 = scmp.ne.s32.totalorder %s515, %s516
      %p530 = scmp.eq.s32.totalorder %s58, 3
      %p531 = por %p529, %p530
      %p533 = scmp.ne.s32.totalorder %s516, %s532
      %p534 = scmp.eq.s32.totalorder %s58, 0
      %p535 = por %p533, %p534
      %s536 = ssub.s32 %s59, %s71
      %p537 = scmp.eq.s32.totalorder %s536, 0
      %s539 = sadd.s32 %s538, 1
      %s540 = scalar_select %p537, %s538, %s539
      %p543 = pneg %p537
      %p544 = scmp.eq.s32.totalorder %s52, 3
      %p545 = por %p543, %p544
      %p546 = scmp.ne.s32.totalorder %s538, %s541
      %p547 = scmp.eq.s32.totalorder %s52, 0
      %p548 = por %p546, %p547
      %p549 = scmp.ne.s32.totalorder %s538, %s541
      %p550 = scmp.eq.s32.totalorder %s57, 3
      %p551 = por %p549, %p550
      %p552 = scmp.ne.s32.totalorder %s541, %s542
      %p553 = scmp.eq.s32.totalorder %s57, 0
      %p554 = por %p552, %p553
      %p555 = scmp.ne.s32.totalorder %s541, %s542
      %p556 = scmp.eq.s32.totalorder %s58, 3
      %p557 = por %p555, %p556
      %p559 = scmp.ne.s32.totalorder %s542, %s558
      %p560 = scmp.eq.s32.totalorder %s58, 0
      %p561 = por %p559, %p560
      %p562 = scmp.le.s32.totalorder 1, %s52
      %p563 = scmp.lt.s32.totalorder %s52, 5
      %p564 = pnand %p562, %p563
      %p565 = pneg %p564
      // Predicated region
      $region9: #{timm_encoder_forward.1} parent=5 // pred_check
        _
      $region10: #{timm_encoder_forward.1} parent=5 // pred_check_branch
        %567 = sbr.rel (%p564) target = $region12
      $region11: #{timm_encoder_forward.1} parent=5 // pred_region
        %s568 = ssub.s32 %s52, 1
        // Predicated region
        $region13: #{timm_encoder_forward.1} parent=11 // pred_check
          %p569 = pneg %p111
        $region14: #{timm_encoder_forward.1} parent=11 // pred_check_branch
          %571 = sbr.rel (%p569) target = $region16
        $region15: #{timm_encoder_forward.1} parent=11 // pred_region
          %s573 = ssub.s32 2048, 2048
          %574 = vsyncadd [#allocation6], %s573
          %s575 = sshll.u32 [#allocation5], 4
          %s576 = int_to_ptr.vmem [resolvable:$true] %s575
          %581 = dma.hbm_to_vmem [thread:$0]  %s1, 2048, %s576, [#allocation6], 128, 128, 8
        $region16: #{timm_encoder_forward.1} parent=11 // pred_fallthru
          _
        // Predicated region
        $region17: #{timm_encoder_forward.1} parent=11 // pred_check
          %p582 = pneg %p132
        $region18: #{timm_encoder_forward.1} parent=11 // pred_check_branch
          %584 = sbr.rel (%p582) target = $region20
        $region19: #{timm_encoder_forward.1} parent=11 // pred_region
          %s586 = ssub.s32 16, 16
          %587 = vsyncadd [#allocation6], %s586
          %s589 = sshll.u32 [#allocation7], 4
          %s590 = int_to_ptr.vmem [resolvable:$true] %s589
          %592 = dma.hbm_to_vmem [thread:$0]  %s2, 16, %s590, [#allocation6]
        $region20: #{timm_encoder_forward.1} parent=11 // pred_fallthru
          _
        // Predicated region
        $region21: #{timm_encoder_forward.1} parent=11 // pred_check
          %p593 = pneg %p153
        $region22: #{timm_encoder_forward.1} parent=11 // pred_check_branch
          %595 = sbr.rel (%p593) target = $region24
        $region23: #{timm_encoder_forward.1} parent=11 // pred_region
          %s597 = ssub.s32 16, 16
          %598 = vsyncadd [#allocation9], %s597
          %s600 = sshll.u32 [#allocation8], 4
          %s601 = int_to_ptr.vmem [resolvable:$true] %s600
          %603 = dma.hbm_to_vmem [thread:$0]  %s3, 16, %s601, [#allocation9]
        $region24: #{timm_encoder_forward.1} parent=11 // pred_fallthru
          _
        // Predicated region
        $region25: #{timm_encoder_forward.1} parent=11 // pred_check
          %p604 = pneg %p174
        $region26: #{timm_encoder_forward.1} parent=11 // pred_check_branch
          %606 = sbr.rel (%p604) target = $region28
        $region27: #{timm_encoder_forward.1} parent=11 // pred_region
          %s608 = ssub.s32 384, 384
          %609 = vsyncadd [#allocation9], %s608
          %s610 = sshll.u32 [#allocation10], 4
          %s611 = int_to_ptr.vmem [resolvable:$true] %s610
          %616 = dma.hbm_to_vmem [thread:$0]  %s4, 384, %s611, [#allocation9], 128, 128, 8
        $region28: #{timm_encoder_forward.1} parent=11 // pred_fallthru
          _
        // Predicated region
        $region29: #{timm_encoder_forward.1} parent=11 // pred_check
          %p617 = pneg %p195
        $region30: #{timm_encoder_forward.1} parent=11 // pred_check_branch
          %619 = sbr.rel (%p617) target = $region32
        $region31: #{timm_encoder_forward.1} parent=11 // pred_region
          %s621 = ssub.s32 16, 16
          %622 = vsyncadd [#allocation12], %s621
          %s624 = sshll.u32 [#allocation11], 4
          %s625 = int_to_ptr.vmem [resolvable:$true] %s624
          %627 = dma.hbm_to_vmem [thread:$0]  %s5, 16, %s625, [#allocation12]
        $region32: #{timm_encoder_forward.1} parent=11 // pred_fallthru
          _
        // Predicated region
        $region33: #{timm_encoder_forward.1} parent=11 // pred_check
          %p628 = pneg %p216
        $region34: #{timm_encoder_forward.1} parent=11 // pred_check_branch
          %630 = sbr.rel (%p628) target = $region36
        $region35: #{timm_encoder_forward.1} parent=11 // pred_region
          %s632 = ssub.s32 16, 16
          %633 = vsyncadd [#allocation12], %s632
          %s635 = sshll.u32 [#allocation13], 4
          %s636 = int_to_ptr.vmem [resolvable:$true] %s635
          %638 = dma.hbm_to_vmem [thread:$0]  %s6, 16, %s636, [#allocation12]
        $region36: #{timm_encoder_forward.1} parent=11 // pred_fallthru
          _
      $region12: #{timm_encoder_forward.1} parent=5 // pred_fallthru
        _
      %p639 = scmp.lt.s32.totalorder %s52, 4
      // Predicated region
      $region37: #{timm_encoder_forward.1} parent=5 // pred_check
        %p640 = pneg %p639
      $region38: #{timm_encoder_forward.1} parent=5 // pred_check_branch
        %642 = sbr.rel (%p640) target = $region40
      $region39: #{timm_encoder_forward.1} parent=5 // pred_region
        // Predicated region
        $region41: #{timm_encoder_forward.1} parent=39 // pred_check
          %p643 = pneg %p84
        $region42: #{timm_encoder_forward.1} parent=39 // pred_check_branch
          %645 = sbr.rel (%p643) target = $region44
        $region43: #{timm_encoder_forward.1} parent=39 // pred_region
          %s646 = sand.u32 %s74, 1
          %s647 = scalar_lea.sflag [#allocation3], %s646
          %s648 = sand.u32 %s74, 1
          %s649 = smul.addr %s648, 16
          %s650 = scalar_lea.vmem [#allocation2], %s649
          %s652 = ssub.s32 256, 256
          %653 = vsyncadd %s647, %s652
          %s654 = smul.addr %s59, 2
          %s655 = smul.addr %s654, 128
          %s656 = scalar_lea.hbm %s0, %s655
          %s657 = sshll.u32 %s650, 4
          %s658 = int_to_ptr.vmem [resolvable:$true] %s657
          %663 = dma.hbm_to_vmem [thread:$0]  %s656, 256, %s658, %s647, 128, 128, 8
        $region44: #{timm_encoder_forward.1} parent=39 // pred_fallthru
          _
        // Predicated region
        $region45: #{timm_encoder_forward.1} parent=39 // pred_check
          %p664 = pneg %p236
        $region46: #{timm_encoder_forward.1} parent=39 // pred_check_branch
          %666 = sbr.rel (%p664) target = $region48
        $region47: #{timm_encoder_forward.1} parent=39 // pred_region
          %s667 = sand.u32 %s52, 1
          %s668 = scalar_lea.sflag [#allocation15], %s667
          %s669 = sand.u32 %s226, 1
          %s670 = scalar_lea.vmem [#allocation14], %s669
          %s672 = ssub.s32 16, 16
          %673 = vsyncadd %s668, %s672
          %s674 = smul.addr %s60, 16
          %s675 = scalar_lea.hbm %s7, %s674
          %s677 = sshll.u32 %s670, 4
          %s678 = int_to_ptr.vmem [resolvable:$true] %s677
          %680 = dma.hbm_to_vmem [thread:$0]  %s675, 16, %s678, %s668
        $region48: #{timm_encoder_forward.1} parent=39 // pred_fallthru
          _
        // Predicated region
        $region49: #{timm_encoder_forward.1} parent=39 // pred_check
          %p681 = pneg %p262
        $region50: #{timm_encoder_forward.1} parent=39 // pred_check_branch
          %683 = sbr.rel (%p681) target = $region52
        $region51: #{timm_encoder_forward.1} parent=39 // pred_region
          %s684 = sand.u32 %s52, 1
          %s685 = scalar_lea.sflag [#allocation15], %s684
          %s686 = sand.u32 %s252, 1
          %s687 = scalar_lea.vmem [#allocation16], %s686
          %s689 = ssub.s32 16, 16
          %690 = vsyncadd %s685, %s689
          %s691 = smul.addr %s60, 16
          %s692 = scalar_lea.hbm %s8, %s691
          %s694 = sshll.u32 %s687, 4
          %s695 = int_to_ptr.vmem [resolvable:$true] %s694
          %697 = dma.hbm_to_vmem [thread:$0]  %s692, 16, %s695, %s685
        $region52: #{timm_encoder_forward.1} parent=39 // pred_fallthru
          _
        // Predicated region
        $region53: #{timm_encoder_forward.1} parent=39 // pred_check
          %p698 = pneg %p288
        $region54: #{timm_encoder_forward.1} parent=39 // pred_check_branch
          %700 = sbr.rel (%p698) target = $region56
        $region55: #{timm_encoder_forward.1} parent=39 // pred_region
          %s701 = sand.u32 %s52, 1
          %s702 = scalar_lea.sflag [#allocation18], %s701
          %s703 = sand.u32 %s278, 1
          %s704 = smul.addr %s703, 16
          %s705 = scalar_lea.vmem [#allocation17], %s704
          %s707 = ssub.s32 256, 256
          %708 = vsyncadd %s702, %s707
          %s709 = smul.addr %s60, 4
          %s710 = smul.addr %s709, 64
          %s711 = scalar_lea.hbm %s9, %s710
          %s712 = sshll.u32 %s705, 4
          %s713 = int_to_ptr.vmem [resolvable:$true] %s712
          %718 = dma.hbm_to_vmem [thread:$0]  %s711, 256, %s713, %s702, 64, 64, 4
        $region56: #{timm_encoder_forward.1} parent=39 // pred_fallthru
          _
        // Predicated region
        $region57: #{timm_encoder_forward.1} parent=39 // pred_check
          %p719 = pneg %p314
        $region58: #{timm_encoder_forward.1} parent=39 // pred_check_branch
          %721 = sbr.rel (%p719) target = $region60
        $region59: #{timm_encoder_forward.1} parent=39 // pred_region
          %s722 = sand.u32 %s52, 1
          %s723 = scalar_lea.sflag [#allocation18], %s722
          %s724 = sand.u32 %s304, 1
          %s725 = scalar_lea.vmem [#allocation19], %s724
          %s727 = ssub.s32 16, 16
          %728 = vsyncadd %s723, %s727
          %s729 = smul.addr %s60, 16
          %s730 = scalar_lea.hbm %s10, %s729
          %s732 = sshll.u32 %s725, 4
          %s733 = int_to_ptr.vmem [resolvable:$true] %s732
          %735 = dma.hbm_to_vmem [thread:$0]  %s730, 16, %s733, %s723
        $region60: #{timm_encoder_forward.1} parent=39 // pred_fallthru
          _
        // Predicated region
        $region61: #{timm_encoder_forward.1} parent=39 // pred_check
          %p736 = pneg %p340
        $region62: #{timm_encoder_forward.1} parent=39 // pred_check_branch
          %738 = sbr.rel (%p736) target = $region64
        $region63: #{timm_encoder_forward.1} parent=39 // pred_region
          %s739 = sand.u32 %s52, 1
          %s740 = scalar_lea.sflag [#allocation21], %s739
          %s741 = sand.u32 %s330, 1
          %s742 = smul.addr %s741, 16
          %s743 = scalar_lea.vmem [#allocation20], %s742
          %s745 = ssub.s32 256, 256
          %746 = vsyncadd %s740, %s745
          %s747 = smul.addr %s60, 4
          %s748 = smul.addr %s747, 64
          %s749 = scalar_lea.hbm %s11, %s748
          %s750 = sshll.u32 %s743, 4
          %s751 = int_to_ptr.vmem [resolvable:$true] %s750
          %756 = dma.hbm_to_vmem [thread:$0]  %s749, 256, %s751, %s740, 64, 64, 4
        $region64: #{timm_encoder_forward.1} parent=39 // pred_fallthru
          _
        // Predicated region
        $region65: #{timm_encoder_forward.1} parent=39 // pred_check
          %p757 = pneg %p366
        $region66: #{timm_encoder_forward.1} parent=39 // pred_check_branch
          %759 = sbr.rel (%p757) target = $region68
        $region67: #{timm_encoder_forward.1} parent=39 // pred_region
          %s760 = sand.u32 %s52, 1
          %s761 = scalar_lea.sflag [#allocation21], %s760
          %s762 = sand.u32 %s356, 1
          %s763 = scalar_lea.vmem [#allocation22], %s762
          %s765 = ssub.s32 16, 16
          %766 = vsyncadd %s761, %s765
          %s767 = smul.addr %s60, 16
          %s768 = scalar_lea.hbm %s12, %s767
          %s770 = sshll.u32 %s763, 4
          %s771 = int_to_ptr.vmem [resolvable:$true] %s770
          %773 = dma.hbm_to_vmem [thread:$0]  %s768, 16, %s771, %s761
        $region68: #{timm_encoder_forward.1} parent=39 // pred_fallthru
          _
        // Predicated region
        $region69: #{timm_encoder_forward.1} parent=39 // pred_check
          %p774 = pneg %p392
        $region70: #{timm_encoder_forward.1} parent=39 // pred_check_branch
          %776 = sbr.rel (%p774) target = $region72
        $region71: #{timm_encoder_forward.1} parent=39 // pred_region
          %s777 = sand.u32 %s52, 1
          %s778 = scalar_lea.sflag [#allocation24], %s777
          %s779 = sand.u32 %s382, 1
          %s780 = scalar_lea.vmem [#allocation23], %s779
          %s782 = ssub.s32 16, 16
          %783 = vsyncadd %s778, %s782
          %s784 = smul.addr %s60, 16
          %s785 = scalar_lea.hbm %s13, %s784
          %s787 = sshll.u32 %s780, 4
          %s788 = int_to_ptr.vmem [resolvable:$true] %s787
          %790 = dma.hbm_to_vmem [thread:$0]  %s785, 16, %s788, %s778
        $region72: #{timm_encoder_forward.1} parent=39 // pred_fallthru
          _
        // Predicated region
        $region73: #{timm_encoder_forward.1} parent=39 // pred_check
          %p791 = pneg %p418
        $region74: #{timm_encoder_forward.1} parent=39 // pred_check_branch
          %793 = sbr.rel (%p791) target = $region76
        $region75: #{timm_encoder_forward.1} parent=39 // pred_region
          %s794 = sand.u32 %s52, 1
          %s795 = scalar_lea.sflag [#allocation24], %s794
          %s796 = sand.u32 %s408, 1
          %s797 = scalar_lea.vmem [#allocation25], %s796
          %s799 = ssub.s32 16, 16
          %800 = vsyncadd %s795, %s799
          %s801 = smul.addr %s60, 16
          %s802 = scalar_lea.hbm %s14, %s801
          %s804 = sshll.u32 %s797, 4
          %s805 = int_to_ptr.vmem [resolvable:$true] %s804
          %807 = dma.hbm_to_vmem [thread:$0]  %s802, 16, %s805, %s795
        $region76: #{timm_encoder_forward.1} parent=39 // pred_fallthru
          _
        // Predicated region
        $region77: #{timm_encoder_forward.1} parent=39 // pred_check
          %p808 = pneg %p444
        $region78: #{timm_encoder_forward.1} parent=39 // pred_check_branch
          %810 = sbr.rel (%p808) target = $region80
        $region79: #{timm_encoder_forward.1} parent=39 // pred_region
          %s811 = sand.u32 %s52, 1
          %s812 = scalar_lea.sflag [#allocation27], %s811
          %s813 = sand.u32 %s434, 1
          %s814 = smul.addr %s813, 16
          %s815 = scalar_lea.vmem [#allocation26], %s814
          %s817 = ssub.s32 256, 256
          %818 = vsyncadd %s812, %s817
          %s819 = smul.addr %s60, 4
          %s820 = smul.addr %s819, 64
          %s821 = scalar_lea.hbm %s15, %s820
          %s822 = sshll.u32 %s815, 4
          %s823 = int_to_ptr.vmem [resolvable:$true] %s822
          %828 = dma.hbm_to_vmem [thread:$0]  %s821, 256, %s823, %s812, 64, 64, 4
        $region80: #{timm_encoder_forward.1} parent=39 // pred_fallthru
          _
        // Predicated region
        $region81: #{timm_encoder_forward.1} parent=39 // pred_check
          %p829 = pneg %p470
        $region82: #{timm_encoder_forward.1} parent=39 // pred_check_branch
          %831 = sbr.rel (%p829) target = $region84
        $region83: #{timm_encoder_forward.1} parent=39 // pred_region
          %s832 = sand.u32 %s52, 1
          %s833 = scalar_lea.sflag [#allocation27], %s832
          %s834 = sand.u32 %s460, 1
          %s835 = scalar_lea.vmem [#allocation28], %s834
          %s837 = ssub.s32 16, 16
          %838 = vsyncadd %s833, %s837
          %s839 = smul.addr %s60, 16
          %s840 = scalar_lea.hbm %s16, %s839
          %s842 = sshll.u32 %s835, 4
          %s843 = int_to_ptr.vmem [resolvable:$true] %s842
          %845 = dma.hbm_to_vmem [thread:$0]  %s840, 16, %s843, %s833
        $region84: #{timm_encoder_forward.1} parent=39 // pred_fallthru
          _
        // Predicated region
        $region85: #{timm_encoder_forward.1} parent=39 // pred_check
          %p846 = pneg %p496
        $region86: #{timm_encoder_forward.1} parent=39 // pred_check_branch
          %848 = sbr.rel (%p846) target = $region88
        $region87: #{timm_encoder_forward.1} parent=39 // pred_region
          %s849 = sand.u32 %s52, 1
          %s850 = scalar_lea.sflag [#allocation30], %s849
          %s851 = sand.u32 %s486, 1
          %s852 = smul.addr %s851, 64
          %s853 = scalar_lea.vmem [#allocation29], %s852
          %s855 = ssub.s32 1024, 1024
          %856 = vsyncadd %s850, %s855
          %s857 = smul.addr %s60, 16
          %s858 = smul.addr %s857, 64
          %s859 = scalar_lea.hbm %s17, %s858
          %s860 = sshll.u32 %s853, 4
          %s861 = int_to_ptr.vmem [resolvable:$true] %s860
          %866 = dma.hbm_to_vmem [thread:$0]  %s859, 1024, %s861, %s850, 64, 64, 4
        $region88: #{timm_encoder_forward.1} parent=39 // pred_fallthru
          _
        // Predicated region
        $region89: #{timm_encoder_forward.1} parent=39 // pred_check
          %p867 = pneg %p522
        $region90: #{timm_encoder_forward.1} parent=39 // pred_check_branch
          %869 = sbr.rel (%p867) target = $region92
        $region91: #{timm_encoder_forward.1} parent=39 // pred_region
          %s870 = sand.u32 %s52, 1
          %s871 = scalar_lea.sflag [#allocation30], %s870
          %s872 = sand.u32 %s512, 1
          %s873 = scalar_lea.vmem [#allocation31], %s872
          %s875 = ssub.s32 16, 16
          %876 = vsyncadd %s871, %s875
          %s877 = smul.addr %s60, 16
          %s878 = scalar_lea.hbm %s18, %s877
          %s880 = sshll.u32 %s873, 4
          %s881 = int_to_ptr.vmem [resolvable:$true] %s880
          %883 = dma.hbm_to_vmem [thread:$0]  %s878, 16, %s881, %s871
        $region92: #{timm_encoder_forward.1} parent=39 // pred_fallthru
          _
      $region40: #{timm_encoder_forward.1} parent=5 // pred_fallthru
        _
      %p884 = scmp.le.s32.totalorder 1, %s52
      %p885 = scmp.lt.s32.totalorder %s52, 5
      %p886 = pnand %p884, %p885
      %p887 = pneg %p886
      // Predicated region
      $region93: #{timm_encoder_forward.1} parent=5 // pred_check
        _
      $region94: #{timm_encoder_forward.1} parent=5 // pred_check_branch
        %889 = sbr.rel (%p886) target = $region96
      $region95: #{timm_encoder_forward.1} parent=5 // pred_region
        %s890 = ssub.s32 %s52, 1
        %s891 = sand.u32 %s77, 1
        %s892 = scalar_lea.sflag [#allocation3], %s891
        %s893 = sand.u32 %s77, 1
        %s894 = smul.addr %s893, 16
        %s895 = scalar_lea.vmem [#allocation2], %s894
        // Predicated region
        $region97: #{timm_encoder_forward.1} parent=95 // pred_check
          %p896 = pneg %p90
        $region98: #{timm_encoder_forward.1} parent=95 // pred_check_branch
          %898 = sbr.rel (%p896) target = $region100
        $region99: #{timm_encoder_forward.1} parent=95 // pred_region
          %899 = dma.done %s892, 256
        $region100: #{timm_encoder_forward.1} parent=95 // pred_fallthru
          _
        // Predicated region
        $region101: #{timm_encoder_forward.1} parent=95 // pred_check
          %p900 = pneg %p111
        $region102: #{timm_encoder_forward.1} parent=95 // pred_check_branch
          %902 = sbr.rel (%p900) target = $region104
        $region103: #{timm_encoder_forward.1} parent=95 // pred_region
          %903 = dma.done [#allocation6], 2048
        $region104: #{timm_encoder_forward.1} parent=95 // pred_fallthru
          _
        // Predicated region
        $region105: #{timm_encoder_forward.1} parent=95 // pred_check
          %p904 = pneg %p132
        $region106: #{timm_encoder_forward.1} parent=95 // pred_check_branch
          %906 = sbr.rel (%p904) target = $region108
        $region107: #{timm_encoder_forward.1} parent=95 // pred_region
          %907 = dma.done [#allocation6], 16
        $region108: #{timm_encoder_forward.1} parent=95 // pred_fallthru
          _
        // Predicated region
        $region109: #{timm_encoder_forward.1} parent=95 // pred_check
          %p908 = pneg %p153
        $region110: #{timm_encoder_forward.1} parent=95 // pred_check_branch
          %910 = sbr.rel (%p908) target = $region112
        $region111: #{timm_encoder_forward.1} parent=95 // pred_region
          %911 = dma.done [#allocation9], 16
        $region112: #{timm_encoder_forward.1} parent=95 // pred_fallthru
          _
        // Predicated region
        $region113: #{timm_encoder_forward.1} parent=95 // pred_check
          %p912 = pneg %p174
        $region114: #{timm_encoder_forward.1} parent=95 // pred_check_branch
          %914 = sbr.rel (%p912) target = $region116
        $region115: #{timm_encoder_forward.1} parent=95 // pred_region
          %915 = dma.done [#allocation9], 384
        $region116: #{timm_encoder_forward.1} parent=95 // pred_fallthru
          _
        // Predicated region
        $region117: #{timm_encoder_forward.1} parent=95 // pred_check
          %p916 = pneg %p195
        $region118: #{timm_encoder_forward.1} parent=95 // pred_check_branch
          %918 = sbr.rel (%p916) target = $region120
        $region119: #{timm_encoder_forward.1} parent=95 // pred_region
          %919 = dma.done [#allocation12], 16
        $region120: #{timm_encoder_forward.1} parent=95 // pred_fallthru
          _
        // Predicated region
        $region121: #{timm_encoder_forward.1} parent=95 // pred_check
          %p920 = pneg %p216
        $region122: #{timm_encoder_forward.1} parent=95 // pred_check_branch
          %922 = sbr.rel (%p920) target = $region124
        $region123: #{timm_encoder_forward.1} parent=95 // pred_region
          %923 = dma.done [#allocation12], 16
        $region124: #{timm_encoder_forward.1} parent=95 // pred_fallthru
          _
        %s924 = sand.u32 %s57, 1
        %s925 = scalar_lea.sflag [#allocation15], %s924
        %s926 = sand.u32 %s229, 1
        %s927 = scalar_lea.vmem [#allocation14], %s926
        // Predicated region
        $region125: #{timm_encoder_forward.1} parent=95 // pred_check
          %p928 = pneg %p242
        $region126: #{timm_encoder_forward.1} parent=95 // pred_check_branch
          %930 = sbr.rel (%p928) target = $region128
        $region127: #{timm_encoder_forward.1} parent=95 // pred_region
          %931 = dma.done %s925, 16
        $region128: #{timm_encoder_forward.1} parent=95 // pred_fallthru
          _
        %s932 = sand.u32 %s57, 1
        %s933 = scalar_lea.sflag [#allocation15], %s932
        %s934 = sand.u32 %s255, 1
        %s935 = scalar_lea.vmem [#allocation16], %s934
        // Predicated region
        $region129: #{timm_encoder_forward.1} parent=95 // pred_check
          %p936 = pneg %p268
        $region130: #{timm_encoder_forward.1} parent=95 // pred_check_branch
          %938 = sbr.rel (%p936) target = $region132
        $region131: #{timm_encoder_forward.1} parent=95 // pred_region
          %939 = dma.done %s933, 16
        $region132: #{timm_encoder_forward.1} parent=95 // pred_fallthru
          _
        %s940 = sand.u32 %s57, 1
        %s941 = scalar_lea.sflag [#allocation18], %s940
        %s942 = sand.u32 %s281, 1
        %s943 = smul.addr %s942, 16
        %s944 = scalar_lea.vmem [#allocation17], %s943
        // Predicated region
        $region133: #{timm_encoder_forward.1} parent=95 // pred_check
          %p945 = pneg %p294
        $region134: #{timm_encoder_forward.1} parent=95 // pred_check_branch
          %947 = sbr.rel (%p945) target = $region136
        $region135: #{timm_encoder_forward.1} parent=95 // pred_region
          %948 = dma.done %s941, 256
        $region136: #{timm_encoder_forward.1} parent=95 // pred_fallthru
          _
        %s949 = sand.u32 %s57, 1
        %s950 = scalar_lea.sflag [#allocation18], %s949
        %s951 = sand.u32 %s307, 1
        %s952 = scalar_lea.vmem [#allocation19], %s951
        // Predicated region
        $region137: #{timm_encoder_forward.1} parent=95 // pred_check
          %p953 = pneg %p320
        $region138: #{timm_encoder_forward.1} parent=95 // pred_check_branch
          %955 = sbr.rel (%p953) target = $region140
        $region139: #{timm_encoder_forward.1} parent=95 // pred_region
          %956 = dma.done %s950, 16
        $region140: #{timm_encoder_forward.1} parent=95 // pred_fallthru
          _
        %s957 = sand.u32 %s57, 1
        %s958 = scalar_lea.sflag [#allocation21], %s957
        %s959 = sand.u32 %s333, 1
        %s960 = smul.addr %s959, 16
        %s961 = scalar_lea.vmem [#allocation20], %s960
        // Predicated region
        $region141: #{timm_encoder_forward.1} parent=95 // pred_check
          %p962 = pneg %p346
        $region142: #{timm_encoder_forward.1} parent=95 // pred_check_branch
          %964 = sbr.rel (%p962) target = $region144
        $region143: #{timm_encoder_forward.1} parent=95 // pred_region
          %965 = dma.done %s958, 256
        $region144: #{timm_encoder_forward.1} parent=95 // pred_fallthru
          _
        %s966 = sand.u32 %s57, 1
        %s967 = scalar_lea.sflag [#allocation21], %s966
        %s968 = sand.u32 %s359, 1
        %s969 = scalar_lea.vmem [#allocation22], %s968
        // Predicated region
        $region145: #{timm_encoder_forward.1} parent=95 // pred_check
          %p970 = pneg %p372
        $region146: #{timm_encoder_forward.1} parent=95 // pred_check_branch
          %972 = sbr.rel (%p970) target = $region148
        $region147: #{timm_encoder_forward.1} parent=95 // pred_region
          %973 = dma.done %s967, 16
        $region148: #{timm_encoder_forward.1} parent=95 // pred_fallthru
          _
        %s974 = sand.u32 %s57, 1
        %s975 = scalar_lea.sflag [#allocation24], %s974
        %s976 = sand.u32 %s385, 1
        %s977 = scalar_lea.vmem [#allocation23], %s976
        // Predicated region
        $region149: #{timm_encoder_forward.1} parent=95 // pred_check
          %p978 = pneg %p398
        $region150: #{timm_encoder_forward.1} parent=95 // pred_check_branch
          %980 = sbr.rel (%p978) target = $region152
        $region151: #{timm_encoder_forward.1} parent=95 // pred_region
          %981 = dma.done %s975, 16
        $region152: #{timm_encoder_forward.1} parent=95 // pred_fallthru
          _
        %s982 = sand.u32 %s57, 1
        %s983 = scalar_lea.sflag [#allocation24], %s982
        %s984 = sand.u32 %s411, 1
        %s985 = scalar_lea.vmem [#allocation25], %s984
        // Predicated region
        $region153: #{timm_encoder_forward.1} parent=95 // pred_check
          %p986 = pneg %p424
        $region154: #{timm_encoder_forward.1} parent=95 // pred_check_branch
          %988 = sbr.rel (%p986) target = $region156
        $region155: #{timm_encoder_forward.1} parent=95 // pred_region
          %989 = dma.done %s983, 16
        $region156: #{timm_encoder_forward.1} parent=95 // pred_fallthru
          _
        %s990 = sand.u32 %s57, 1
        %s991 = scalar_lea.sflag [#allocation27], %s990
        %s992 = sand.u32 %s437, 1
        %s993 = smul.addr %s992, 16
        %s994 = scalar_lea.vmem [#allocation26], %s993
        // Predicated region
        $region157: #{timm_encoder_forward.1} parent=95 // pred_check
          %p995 = pneg %p450
        $region158: #{timm_encoder_forward.1} parent=95 // pred_check_branch
          %997 = sbr.rel (%p995) target = $region160
        $region159: #{timm_encoder_forward.1} parent=95 // pred_region
          %998 = dma.done %s991, 256
        $region160: #{timm_encoder_forward.1} parent=95 // pred_fallthru
          _
        %s999 = sand.u32 %s57, 1
        %s1000 = scalar_lea.sflag [#allocation27], %s999
        %s1001 = sand.u32 %s463, 1
        %s1002 = scalar_lea.vmem [#allocation28], %s1001
        // Predicated region
        $region161: #{timm_encoder_forward.1} parent=95 // pred_check
          %p1003 = pneg %p476
        $region162: #{timm_encoder_forward.1} parent=95 // pred_check_branch
          %1005 = sbr.rel (%p1003) target = $region164
        $region163: #{timm_encoder_forward.1} parent=95 // pred_region
          %1006 = dma.done %s1000, 16
        $region164: #{timm_encoder_forward.1} parent=95 // pred_fallthru
          _
        %s1007 = sand.u32 %s57, 1
        %s1008 = scalar_lea.sflag [#allocation30], %s1007
        %s1009 = sand.u32 %s489, 1
        %s1010 = smul.addr %s1009, 64
        %s1011 = scalar_lea.vmem [#allocation29], %s1010
        // Predicated region
        $region165: #{timm_encoder_forward.1} parent=95 // pred_check
          %p1012 = pneg %p502
        $region166: #{timm_encoder_forward.1} parent=95 // pred_check_branch
          %1014 = sbr.rel (%p1012) target = $region168
        $region167: #{timm_encoder_forward.1} parent=95 // pred_region
          %1015 = dma.done %s1008, 1024
        $region168: #{timm_encoder_forward.1} parent=95 // pred_fallthru
          _
        %s1016 = sand.u32 %s57, 1
        %s1017 = scalar_lea.sflag [#allocation30], %s1016
        %s1018 = sand.u32 %s515, 1
        %s1019 = scalar_lea.vmem [#allocation31], %s1018
        // Predicated region
        $region169: #{timm_encoder_forward.1} parent=95 // pred_check
          %p1020 = pneg %p528
        $region170: #{timm_encoder_forward.1} parent=95 // pred_check_branch
          %1022 = sbr.rel (%p1020) target = $region172
        $region171: #{timm_encoder_forward.1} parent=95 // pred_region
          %1023 = dma.done %s1017, 16
        $region172: #{timm_encoder_forward.1} parent=95 // pred_fallthru
          _
        %s1024 = sand.u32 %s77, 1
        %s1025 = scalar_lea.sflag [#allocation3], %s1024
        %s1026 = sand.u32 %s77, 1
        %s1027 = smul.addr %s1026, 16
        %s1028 = scalar_lea.vmem [#allocation2], %s1027
        %p1029 = pneg %p90
        %p1030 = pneg %p87
        %p1031 = pneg %p111
        %p1032 = pneg %p108
        %p1033 = pneg %p132
        %p1034 = pneg %p129
        %p1035 = pneg %p153
        %p1036 = pneg %p150
        %p1037 = pneg %p174
        %p1038 = pneg %p171
        %p1039 = pneg %p195
        %p1040 = pneg %p192
        %p1041 = pneg %p216
        %p1042 = pneg %p213
        %s1043 = sand.u32 %s57, 1
        %s1044 = scalar_lea.sflag [#allocation15], %s1043
        %s1045 = sand.u32 %s229, 1
        %s1046 = scalar_lea.vmem [#allocation14], %s1045
        %p1047 = pneg %p242
        %p1048 = pneg %p239
        %s1049 = sand.u32 %s57, 1
        %s1050 = scalar_lea.sflag [#allocation15], %s1049
        %s1051 = sand.u32 %s255, 1
        %s1052 = scalar_lea.vmem [#allocation16], %s1051
        %p1053 = pneg %p268
        %p1054 = pneg %p265
        %s1055 = sand.u32 %s57, 1
        %s1056 = scalar_lea.sflag [#allocation18], %s1055
        %s1057 = sand.u32 %s281, 1
        %s1058 = smul.addr %s1057, 16
        %s1059 = scalar_lea.vmem [#allocation17], %s1058
        %p1060 = pneg %p294
        %p1061 = pneg %p291
        %s1062 = sand.u32 %s57, 1
        %s1063 = scalar_lea.sflag [#allocation18], %s1062
        %s1064 = sand.u32 %s307, 1
        %s1065 = scalar_lea.vmem [#allocation19], %s1064
        %p1066 = pneg %p320
        %p1067 = pneg %p317
        %s1068 = sand.u32 %s57, 1
        %s1069 = scalar_lea.sflag [#allocation21], %s1068
        %s1070 = sand.u32 %s333, 1
        %s1071 = smul.addr %s1070, 16
        %s1072 = scalar_lea.vmem [#allocation20], %s1071
        %p1073 = pneg %p346
        %p1074 = pneg %p343
        %s1075 = sand.u32 %s57, 1
        %s1076 = scalar_lea.sflag [#allocation21], %s1075
        %s1077 = sand.u32 %s359, 1
        %s1078 = scalar_lea.vmem [#allocation22], %s1077
        %p1079 = pneg %p372
        %p1080 = pneg %p369
        %s1081 = sand.u32 %s57, 1
        %s1082 = scalar_lea.sflag [#allocation24], %s1081
        %s1083 = sand.u32 %s385, 1
        %s1084 = scalar_lea.vmem [#allocation23], %s1083
        %p1085 = pneg %p398
        %p1086 = pneg %p395
        %s1087 = sand.u32 %s57, 1
        %s1088 = scalar_lea.sflag [#allocation24], %s1087
        %s1089 = sand.u32 %s411, 1
        %s1090 = scalar_lea.vmem [#allocation25], %s1089
        %p1091 = pneg %p424
        %p1092 = pneg %p421
        %s1093 = sand.u32 %s57, 1
        %s1094 = scalar_lea.sflag [#allocation27], %s1093
        %s1095 = sand.u32 %s437, 1
        %s1096 = smul.addr %s1095, 16
        %s1097 = scalar_lea.vmem [#allocation26], %s1096
        %p1098 = pneg %p450
        %p1099 = pneg %p447
        %s1100 = sand.u32 %s57, 1
        %s1101 = scalar_lea.sflag [#allocation27], %s1100
        %s1102 = sand.u32 %s463, 1
        %s1103 = scalar_lea.vmem [#allocation28], %s1102
        %p1104 = pneg %p476
        %p1105 = pneg %p473
        %s1106 = sand.u32 %s57, 1
        %s1107 = scalar_lea.sflag [#allocation30], %s1106
        %s1108 = sand.u32 %s489, 1
        %s1109 = smul.addr %s1108, 64
        %s1110 = scalar_lea.vmem [#allocation29], %s1109
        %p1111 = pneg %p502
        %p1112 = pneg %p499
        %s1113 = sand.u32 %s57, 1
        %s1114 = scalar_lea.sflag [#allocation30], %s1113
        %s1115 = sand.u32 %s515, 1
        %s1116 = scalar_lea.vmem [#allocation31], %s1115
        %p1117 = pneg %p528
        %p1118 = pneg %p525
        %p1119 = pneg %p554
        %p1120 = pneg %p551
        %s1121 = sand.u32 %s541, 1
        %s1122 = scalar_lea.sflag [#allocation4], %s1121
        %s1123 = sand.u32 %s541, 1
        %s1124 = smul.addr %s1123, 24
        %s1125 = scalar_lea.vmem [#allocation32], %s1124
        %p1127 = scmp.eq.s32.totalorder %s62, 0
        // Predicated region
        $region173: #{timm_encoder_forward.1} parent=95 // pred_check
          %p1128 = pneg %p1127
        $region174: #{timm_encoder_forward.1} parent=95 // pred_check_branch
          %1130 = sbr.rel (%p1128) target = $region176
        $region175: #{timm_encoder_forward.1} parent=95 // pred_region
          %v1131 = vld [vmem:[%s895] sm:$0xff]
          %v1132 = vld [vmem:[%s895 + $0x8] sm:$0xff]
          %v1133 = vld [vmem:[#allocation5] sm:$0xff]
          %v1134 = vld [vmem:[#allocation5 + $0x8] sm:$0xff]
          %v1135 = vld [vmem:[#allocation5 + $0x10] sm:$0xff]
          %v1136 = vld [vmem:[#allocation5 + $0x18] sm:$0xff]
          %v1137 = vld [vmem:[#allocation5 + $0x20] sm:$0xff]
          %v1138 = vld [vmem:[#allocation5 + $0x28] sm:$0xff]
          %v1139 = vld [vmem:[#allocation5 + $0x30] sm:$0xff]
          %v1140 = vld [vmem:[#allocation5 + $0x38] sm:$0xff]
          %v1141 = vld [vmem:[#allocation5 + $0x40] sm:$0xff]
          %v1142 = vld [vmem:[#allocation5 + $0x48] sm:$0xff]
          %v1143 = vld [vmem:[#allocation5 + $0x50] sm:$0xff]
          %v1144 = vld [vmem:[#allocation5 + $0x58] sm:$0xff]
          %v1145 = vld [vmem:[#allocation5 + $0x60] sm:$0xff]
          %v1146 = vld [vmem:[#allocation5 + $0x68] sm:$0xff]
          %v1147 = vld [vmem:[#allocation5 + $0x70] sm:$0xff]
          %v1148 = vld [vmem:[#allocation5 + $0x78] sm:$0xff]
          %v1149 = vld [vmem:[#allocation7] sm:$0x1]
          %v1151 = vlaneseq
          %v1152 = vshrl.u32 %v1151, 7
          %v1153 = vsub.s32 0, %v1152
          %v1154 = vrot.slane %v1149, %v1153
          %1156 = vmatprep.subr.mxu0 0.0
          %1157 = vmatpush1.msra.mxu0 %v1133
          %1158 = vmatprep.subr.mxu0 0.0
          %1159 = vmatpush1.msra.mxu0 %v1134
          %1160 = vmatprep.subr.mxu0 0.0
          %1161 = vmatpush1.msra.mxu0 %v1135
          %1162 = vmatprep.subr.mxu0 0.0
          %1163 = vmatpush1.msra.mxu0 %v1136
          %1164 = vmatprep.subr.mxu0 0.0
          %1165 = vmatpush1.msra.mxu0 %v1137
          %1166 = vmatprep.subr.mxu0 0.0
          %1167 = vmatpush1.msra.mxu0 %v1138
          %1168 = vmatprep.subr.mxu0 0.0
          %1169 = vmatpush1.msra.mxu0 %v1139
          %1170 = vmatprep.subr.mxu0 0.0
          %1171 = vmatpush1.msra.mxu0 %v1140
          %1172 = vmatprep.subr.mxu0 0.0
          %1173 = vmatpush1.msra.mxu0 %v1141
          %1174 = vmatprep.subr.mxu0 0.0
          %1175 = vmatpush1.msra.mxu0 %v1142
          %1176 = vmatprep.subr.mxu0 0.0
          %1177 = vmatpush1.msra.mxu0 %v1143
          %1178 = vmatprep.subr.mxu0 0.0
          %1179 = vmatpush1.msra.mxu0 %v1144
          %1180 = vmatprep.subr.mxu0 0.0
          %1181 = vmatpush1.msra.mxu0 %v1145
          %1182 = vmatprep.subr.mxu0 0.0
          %1183 = vmatpush1.msra.mxu0 %v1146
          %1184 = vmatprep.subr.mxu0 0.0
          %1185 = vmatpush1.msra.mxu0 %v1147
          %1186 = vmatprep.subr.mxu0 0.0
          %1187 = vmatpush1.msra.mxu0 %v1148
          %1188 = vmatprep.subr.mxu0 0.0
          %1189 = vmatpush1.msra.mxu0 0.0
          %1190 = vmatprep.subr.mxu0 0.0
          %1191 = vmatpush1.msra.mxu0 0.0
          %1192 = vmatprep.subr.mxu0 0.0
          %1193 = vmatpush1.msra.mxu0 0.0
          %1194 = vmatprep.subr.mxu0 0.0
          %1195 = vmatpush1.msra.mxu0 0.0
          %1196 = vmatprep.subr.mxu0 0.0
          %1197 = vmatpush1.msra.mxu0 0.0
          %1198 = vmatprep.subr.mxu0 0.0
          %1199 = vmatpush1.msra.mxu0 0.0
          %1200 = vmatprep.subr.mxu0 0.0
          %1201 = vmatpush1.msra.mxu0 0.0
          %1202 = vmatprep.subr.mxu0 0.0
          %1203 = vmatpush1.msra.mxu0 0.0
          %1204 = vmatprep.subr.mxu0 0.0
          %1205 = vmatpush1.msra.mxu0 0.0
          %1206 = vmatprep.subr.mxu0 0.0
          %1207 = vmatpush1.msra.mxu0 0.0
          %1208 = vmatprep.subr.mxu0 0.0
          %1209 = vmatpush1.msra.mxu0 0.0
          %1210 = vmatprep.subr.mxu0 0.0
          %1211 = vmatpush1.msra.mxu0 0.0
          %1212 = vmatprep.subr.mxu0 0.0
          %1213 = vmatpush1.msra.mxu0 0.0
          %1214 = vmatprep.subr.mxu0 0.0
          %1215 = vmatpush1.msra.mxu0 0.0
          %1216 = vmatprep.subr.mxu0 0.0
          %1217 = vmatpush1.msra.mxu0 0.0
          %1218 = vmatprep.subr.mxu0 0.0
          %1219 = vmatpush1.msra.mxu0 0.0
          %1220 = vmatprep.mubr.f32.mxu0 0.0
          %1221 = vmatmul.mubr.f32.gmra.mrb[0].mxu0 %v1131
          %v1222 = vpop.f32.mrb[0].mxu0
          %v1223 = vadd.f32 %v1154, %v1222
          %v1224 = vpop.f32.mrb[0].mxu0
          %1225 = vmatprep.mubr.f32.mxu0 0.0
          %1226 = vmatmul.mubr.f32.gmra.mrb[0].mxu0 %v1132
          %v1227 = vpop.f32.mrb[0].mxu0
          %v1228 = vadd.f32 %v1154, %v1227
          %v1229 = vpop.f32.mrb[0].mxu0
          %1230 = vdwg.mxu0
          %v1231 = vld [vmem:[#allocation8] sm:$0x1]
          %vm1234 = vcmask 1040384
          %v1235 = vrot.slane %v1223, 7
          %v1236 = vrot.slane %v1228, 7
          %v1237 = vsel %vm1234, %v1235, %v1236
          %v1241 = vsel %vm1234, %v1231, %v1235
          %v1242 = vsel %vm1234, %v1236, 0.0
          %v1243 = vld [vmem:[#allocation10] sm:$0xff]
          %v1244 = vld [vmem:[#allocation10 + $0x8] sm:$0xff]
          %v1245 = vld [vmem:[#allocation10 + $0x10] sm:$0xff]
          %v1246 = vadd.f32 %v1241, %v1243
          %v1247 = vadd.f32 %v1237, %v1244
          %v1248 = vadd.f32 %v1242, %v1245
          %v1249 = vld [vmem:[#allocation11] sm:$0x1]
          %v1250 = vld [vmem:[#allocation13] sm:$0x1]
          %vm1251 = vcmask 261120
          %v1252 = vsel %vm1251, %v1246, 0.0
          %1253 = vadd.xlane.f32.xlu0 %v1252
          %v1254 = vpop.xlane.xlu0 %1253
          %v1255 = vsel %vm1251, %v1247, 0.0
          %1256 = vadd.xlane.f32.xlu0 %v1255
          %v1257 = vpop.xlane.xlu0 %1256
          %v1258 = vsel %vm1251, %v1248, 0.0
          %1259 = vadd.xlane.f32.xlu0 %v1258
          %v1260 = vpop.xlane.xlu0 %1259
          %v1261 = vrcp.pop 32.0
          %v1262 = vmul.f32 %v1254, %v1261
          %v1263 = vmul.f32 %v1257, %v1261
          %v1264 = vmul.f32 %v1260, %v1261
          %v1265 = vsub.f32 %v1246, %v1262
          %v1266 = vsub.f32 %v1247, %v1263
          %v1267 = vsub.f32 %v1248, %v1264
          %v1268 = vmul.f32 %v1265, %v1265
          %v1269 = vmul.f32 %v1266, %v1266
          %v1270 = vmul.f32 %v1267, %v1267
          %v1271 = vsel %vm1251, %v1268, 0.0
          %1272 = vadd.xlane.f32.xlu0 %v1271
          %v1273 = vpop.xlane.xlu0 %1272
          %v1274 = vsel %vm1251, %v1269, 0.0
          %1275 = vadd.xlane.f32.xlu0 %v1274
          %v1276 = vpop.xlane.xlu0 %1275
          %v1277 = vsel %vm1251, %v1270, 0.0
          %1278 = vadd.xlane.f32.xlu0 %v1277
          %v1279 = vpop.xlane.xlu0 %1278
          %v1280 = vmul.f32 %v1273, %v1261
          %v1281 = vmul.f32 %v1276, %v1261
          %v1282 = vmul.f32 %v1279, %v1261
          %v1283 = vadd.f32 %v1280, 1e-06
          %v1284 = vadd.f32 %v1281, 1e-06
          %v1285 = vadd.f32 %v1282, 1e-06
          %v1286 = vrsqrt.pop %v1283
          %v1287 = vrsqrt.pop %v1284
          %v1288 = vrsqrt.pop %v1285
          %v1289 = vmul.f32 %v1265, %v1286
          %v1290 = vmul.f32 %v1266, %v1287
          %v1291 = vmul.f32 %v1267, %v1288
          %v1293 = vlaneseq
          %v1294 = vshrl.u32 %v1293, 7
          %v1295 = vsub.s32 0, %v1294
          %v1296 = vrot.slane %v1249, %v1295
          %v1298 = vmul.f32 %v1289, %v1296
          %v1299 = vmul.f32 %v1290, %v1296
          %v1300 = vmul.f32 %v1291, %v1296
          %v1302 = vlaneseq
          %v1303 = vshrl.u32 %v1302, 7
          %v1304 = vsub.s32 0, %v1303
          %v1305 = vrot.slane %v1250, %v1304
          %v1307 = vadd.f32 %v1298, %v1305
          %v1308 = vadd.f32 %v1299, %v1305
          %v1309 = vadd.f32 %v1300, %v1305
          %1310 = vst.msk [vmem:[%s1125] sm:$0xff] %vm1251, %v1307
          %1311 = vst.msk [vmem:[%s1125 + $0x8] sm:$0xff] %vm1251, %v1308
          %1312 = vst.msk [vmem:[%s1125 + $0x10] sm:$0xff] %vm1251, %v1309
        $region176: #{timm_encoder_forward.1} parent=95 // pred_fallthru
          _
        %v1313 = vld [vmem:[%s1125] sm:$0xff]
        %v1314 = vld [vmem:[%s1125 + $0x8] sm:$0xff]
        %v1315 = vld [vmem:[%s1125 + $0x10] sm:$0xff]
        %v1316 = vld [vmem:[%s927] sm:$0x1]
        %v1317 = vld [vmem:[%s935] sm:$0x1]
        %vm1318 = vcmask 261120
        %v1319 = vsel %vm1318, %v1313, 0.0
        %1320 = vadd.xlane.f32.xlu0 %v1319
        %v1321 = vpop.xlane.xlu0 %1320
        %v1322 = vsel %vm1318, %v1314, 0.0
        %1323 = vadd.xlane.f32.xlu0 %v1322
        %v1324 = vpop.xlane.xlu0 %1323
        %v1325 = vsel %vm1318, %v1315, 0.0
        %1326 = vadd.xlane.f32.xlu0 %v1325
        %v1327 = vpop.xlane.xlu0 %1326
        %v1328 = vrcp.pop 32.0
        %v1329 = vmul.f32 %v1321, %v1328
        %v1330 = vmul.f32 %v1324, %v1328
        %v1331 = vmul.f32 %v1327, %v1328
        %v1332 = vsub.f32 %v1313, %v1329
        %v1333 = vsub.f32 %v1314, %v1330
        %v1334 = vsub.f32 %v1315, %v1331
        %v1335 = vmul.f32 %v1332, %v1332
        %v1336 = vmul.f32 %v1333, %v1333
        %v1337 = vmul.f32 %v1334, %v1334
        %v1338 = vsel %vm1318, %v1335, 0.0
        %1339 = vadd.xlane.f32.xlu0 %v1338
        %v1340 = vpop.xlane.xlu0 %1339
        %v1341 = vsel %vm1318, %v1336, 0.0
        %1342 = vadd.xlane.f32.xlu0 %v1341
        %v1343 = vpop.xlane.xlu0 %1342
        %v1344 = vsel %vm1318, %v1337, 0.0
        %1345 = vadd.xlane.f32.xlu0 %v1344
        %v1346 = vpop.xlane.xlu0 %1345
        %v1347 = vmul.f32 %v1340, %v1328
        %v1348 = vmul.f32 %v1343, %v1328
        %v1349 = vmul.f32 %v1346, %v1328
        %v1350 = vadd.f32 %v1347, 1e-06
        %v1351 = vadd.f32 %v1348, 1e-06
        %v1352 = vadd.f32 %v1349, 1e-06
        %v1353 = vrsqrt.pop %v1350
        %v1354 = vrsqrt.pop %v1351
        %v1355 = vrsqrt.pop %v1352
        %v1356 = vmul.f32 %v1332, %v1353
        %v1357 = vmul.f32 %v1333, %v1354
        %v1358 = vmul.f32 %v1334, %v1355
        %v1360 = vlaneseq
        %v1361 = vshrl.u32 %v1360, 7
        %v1362 = vsub.s32 0, %v1361
        %v1363 = vrot.slane %v1316, %v1362
        %v1365 = vmul.f32 %v1356, %v1363
        %v1366 = vmul.f32 %v1357, %v1363
        %v1367 = vmul.f32 %v1358, %v1363
        %v1369 = vlaneseq
        %v1370 = vshrl.u32 %v1369, 7
        %v1371 = vsub.s32 0, %v1370
        %v1372 = vrot.slane %v1317, %v1371
        %v1374 = vadd.f32 %v1365, %v1372
        %v1375 = vadd.f32 %v1366, %v1372
        %v1376 = vadd.f32 %v1367, %v1372
        %v1377 = vpack.c.bf16 %v1375, %v1374
        %v1378 = vpack.c.bf16 %v1376, %v1376
        %v1379 = vld [vmem:[%s944] sm:$0xf]
        %v1380 = vld [vmem:[%s944 + $0x4] sm:$0xf]
        %v1381 = vld [vmem:[%s944 + $0x8] sm:$0xf]
        %v1382 = vld [vmem:[%s944 + $0xc] sm:$0xf]
        %v1383 = vld [vmem:[%s952] sm:$0x1]
        %v1385 = vlaneseq
        %v1386 = vshrl.u32 %v1385, 7
        %v1387 = vsub.s32 0, %v1386
        %v1388 = vrot.slane %v1383, %v1387
        %v1394 = vunpack.c.l.b16 %v1379
        %v1395 = vunpack.c.l.b16 %v1380
        %v1396 = vunpack.c.l.b16 %v1381
        %v1397 = vunpack.c.l.b16 %v1382
        %v1398 = vpack.c.b16 %v1395, %v1394
        %v1399 = vpack.c.b16 %v1397, %v1396
        %v1403 = vsel %vm1318, %v1377, 0
        %v1406 = vsel %vm1318, %v1378, 0
        %1408 = vmatprep.subr.bf16.mxu0 0
        %1409 = vmatpush1.bf16.msra.mxu0 %v1398
        %1410 = vmatprep.subr.bf16.mxu0 0
        %1411 = vmatpush1.bf16.msra.mxu0 %v1399
        %1412 = vmatprep.subr.bf16.mxu0 0
        %1413 = vmatpush1.bf16.msra.mxu0 0
        %1414 = vmatprep.subr.bf16.mxu0 0
        %1415 = vmatpush1.bf16.msra.mxu0 0
        %1416 = vmatprep.subr.bf16.mxu0 0
        %1417 = vmatpush1.bf16.msra.mxu0 0
        %1418 = vmatprep.subr.bf16.mxu0 0
        %1419 = vmatpush1.bf16.msra.mxu0 0
        %1420 = vmatprep.subr.bf16.mxu0 0
        %1421 = vmatpush1.bf16.msra.mxu0 0
        %1422 = vmatprep.subr.bf16.mxu0 0
        %1423 = vmatpush1.bf16.msra.mxu0 0
        %1424 = vmatprep.subr.bf16.mxu0 0
        %1425 = vmatpush1.bf16.msra.mxu0 0
        %1426 = vmatprep.subr.bf16.mxu0 0
        %1427 = vmatpush1.bf16.msra.mxu0 0
        %1428 = vmatprep.subr.bf16.mxu0 0
        %1429 = vmatpush1.bf16.msra.mxu0 0
        %1430 = vmatprep.subr.bf16.mxu0 0
        %1431 = vmatpush1.bf16.msra.mxu0 0
        %1432 = vmatprep.subr.bf16.mxu0 0
        %1433 = vmatpush1.bf16.msra.mxu0 0
        %1434 = vmatprep.subr.bf16.mxu0 0
        %1435 = vmatpush1.bf16.msra.mxu0 0
        %1436 = vmatprep.subr.bf16.mxu0 0
        %1437 = vmatpush1.bf16.msra.mxu0 0
        %1438 = vmatprep.subr.bf16.mxu0 0
        %1439 = vmatpush1.bf16.msra.mxu0 0
        %1440 = vmatprep.mubr.bf16.mxu0 0
        %1441 = vmatmul.mubr.bf16.gmra.mrb[0].mxu0 %v1403
        %v1442 = vpop.f32.mrb[0].mxu0
        %v1443 = vadd.f32 %v1388, %v1442
        %v1444 = vpop.f32.mrb[0].mxu0
        %v1445 = vpop.f32.mrb[0].mxu0
        %v1446 = vadd.f32 %v1388, %v1445
        %v1447 = vpop.f32.mrb[0].mxu0
        %1448 = vmatprep.mubr.bf16.mxu0 0
        %1449 = vmatmul.mubr.bf16.gmra.mrb[0].mxu0 %v1406
        %v1450 = vpop.f32.mrb[0].mxu0
        %v1451 = vadd.f32 %v1388, %v1450
        %v1452 = vpop.f32.mrb[0].mxu0
        %v1453 = vpop.f32.mrb[0].mxu0
        %v1454 = vpop.f32.mrb[0].mxu0
        %1455 = vdwg.mxu0
        %v1456 = vlaneseq
        %v1457 = vand.u32 %v1456, 127
        %vm1458 = vcmp.lt.s32.totalorder %v1457, 17
        %1462 = vrot.lane.b32.xlu0 %v1443, 96
        %v1463 = vpop.permute.xlu0 %1462
        %1464 = vrot.lane.b32.xlu0 %v1446, 96
        %v1465 = vpop.permute.xlu0 %1464
        %1466 = vrot.lane.b32.xlu0 %v1451, 96
        %v1467 = vpop.permute.xlu0 %1466
        %vm1468 = vcmask 64512
        %v1469 = vsel %vm1468, %v1443, 0
        %v1471 = vsel %vm1468, %v1446, 0
        %v1473 = vsel %vm1468, %v1451, 0
        %v1475 = vsel %vm1468, %v1463, 0
        %v1477 = vsel %vm1468, %v1465, 0
        %v1479 = vsel %vm1468, %v1467, 0
        %1481 = vmatprep.subr.mxu0 0.0
        %1482 = vmatpush1.xpose.msra.mxu0 %v1475
        %1483 = vmatprep.subr.mxu0 0.0
        %1484 = vmatpush1.xpose.msra.mxu0 %v1477
        %1485 = vmatprep.subr.mxu0 0.0
        %1486 = vmatpush1.xpose.msra.mxu0 %v1479
        %1487 = vmatprep.subr.mxu0 0.0
        %1488 = vmatpush1.xpose.msra.mxu0 0.0
        %1489 = vmatprep.subr.mxu0 0.0
        %1490 = vmatpush1.xpose.msra.mxu0 0.0
        %1491 = vmatprep.subr.mxu0 0.0
        %1492 = vmatpush1.xpose.msra.mxu0 0.0
        %1493 = vmatprep.subr.mxu0 0.0
        %1494 = vmatpush1.xpose.msra.mxu0 0.0
        %1495 = vmatprep.subr.mxu0 0.0
        %1496 = vmatpush1.xpose.msra.mxu0 0.0
        %1497 = vmatprep.subr.mxu0 0.0
        %1498 = vmatpush1.xpose.msra.mxu0 0.0
        %1499 = vmatprep.subr.mxu0 0.0
        %1500 = vmatpush1.xpose.msra.mxu0 0.0
        %1501 = vmatprep.subr.mxu0 0.0
        %1502 = vmatpush1.xpose.msra.mxu0 0.0
        %1503 = vmatprep.subr.mxu0 0.0
        %1504 = vmatpush1.xpose.msra.mxu0 0.0
        %1505 = vmatprep.subr.mxu0 0.0
        %1506 = vmatpush1.xpose.msra.mxu0 0.0
        %1507 = vmatprep.subr.mxu0 0.0
        %1508 = vmatpush1.xpose.msra.mxu0 0.0
        %1509 = vmatprep.subr.mxu0 0.0
        %1510 = vmatpush1.xpose.msra.mxu0 0.0
        %1511 = vmatprep.subr.mxu0 0.0
        %1512 = vmatpush1.xpose.msra.mxu0 0.0
        %1513 = vmatprep.subr.mxu0 0.0
        %1514 = vmatpush1.xpose.msra.mxu0 0.0
        %1515 = vmatprep.subr.mxu0 0.0
        %1516 = vmatpush1.xpose.msra.mxu0 0.0
        %1517 = vmatprep.subr.mxu0 0.0
        %1518 = vmatpush1.xpose.msra.mxu0 0.0
        %1519 = vmatprep.subr.mxu0 0.0
        %1520 = vmatpush1.xpose.msra.mxu0 0.0
        %1521 = vmatprep.subr.mxu0 0.0
        %1522 = vmatpush1.xpose.msra.mxu0 0.0
        %1523 = vmatprep.subr.mxu0 0.0
        %1524 = vmatpush1.xpose.msra.mxu0 0.0
        %1525 = vmatprep.subr.mxu0 0.0
        %1526 = vmatpush1.xpose.msra.mxu0 0.0
        %1527 = vmatprep.subr.mxu0 0.0
        %1528 = vmatpush1.xpose.msra.mxu0 0.0
        %1529 = vmatprep.subr.mxu0 0.0
        %1530 = vmatpush1.xpose.msra.mxu0 0.0
        %1531 = vmatprep.subr.mxu0 0.0
        %1532 = vmatpush1.xpose.msra.mxu0 0.0
        %1533 = vmatprep.subr.mxu0 0.0
        %1534 = vmatpush1.xpose.msra.mxu0 0.0
        %1535 = vmatprep.subr.mxu0 0.0
        %1536 = vmatpush1.xpose.msra.mxu0 0.0
        %1537 = vmatprep.subr.mxu0 0.0
        %1538 = vmatpush1.xpose.msra.mxu0 0.0
        %1539 = vmatprep.subr.mxu0 0.0
        %1540 = vmatpush1.xpose.msra.mxu0 0.0
        %1541 = vmatprep.subr.mxu0 0.0
        %1542 = vmatpush1.xpose.msra.mxu0 0.0
        %1543 = vmatprep.subr.mxu0 0.0
        %1544 = vmatpush1.xpose.msra.mxu0 0.0
        %1545 = vmatprep.mubr.f32.mxu0 0.0
        %1546 = vmatmul.mubr.f32.gmra.mrb[0].mxu0 %v1469
        %v1547 = vpop.f32.mrb[0].mxu0
        %v1548 = vadd.f32 0.0, %v1547
        %v1549 = vpop.f32.mrb[0].mxu0
        %1550 = vmatprep.mubr.f32.mxu0 0.0
        %1551 = vmatmul.mubr.f32.gmra.mrb[0].mxu0 %v1471
        %v1552 = vpop.f32.mrb[0].mxu0
        %v1553 = vadd.f32 0.0, %v1552
        %v1554 = vpop.f32.mrb[0].mxu0
        %1555 = vmatprep.mubr.f32.mxu0 0.0
        %1556 = vmatmul.mubr.f32.gmra.mrb[0].mxu0 %v1473
        %v1557 = vpop.f32.mrb[0].mxu0
        %v1558 = vadd.f32 0.0, %v1557
        %v1559 = vpop.f32.mrb[0].mxu0
        %1560 = vdwg.mxu0
        %v1561 = vmul.f32 %v1548, 0.35355338
        %v1562 = vmul.f32 %v1553, 0.35355338
        %v1563 = vmul.f32 %v1558, 0.35355338
        %v1564 = vsel %vm1458, 1, 0
        %vm1565 = vcmp.eq.s32.totalorder %v1564, 1
        %v1566 = vsel %vm1565, %v1561, -1e+30
        %v1567 = vsel %vm1565, %v1562, -1e+30
        %v1568 = vsel %vm1565, %v1563, -1e+30
        %vm1569 = vcmask 195584
        %v1570 = vsel %vm1569, %v1566, -inf
        %1571 = vmax.xlane.f32.xlu0 %v1570
        %v1572 = vpop.xlane.xlu0 %1571
        %v1573 = vsel %vm1569, %v1567, -inf
        %1574 = vmax.xlane.f32.xlu0 %v1573
        %v1575 = vpop.xlane.xlu0 %1574
        %v1576 = vsel %vm1569, %v1568, -inf
        %1577 = vmax.xlane.f32.xlu0 %v1576
        %v1578 = vpop.xlane.xlu0 %1577
        %v1579 = vsub.f32 %v1566, %v1572
        %v1580 = vsub.f32 %v1567, %v1575
        %v1581 = vsub.f32 %v1568, %v1578
        %v1582 = vmul.f32 %v1579, 1.442695
        %v1583 = vpow.pop %v1582
        %v1584 = vmul.f32 %v1580, 1.442695
        %v1585 = vpow.pop %v1584
        %v1586 = vmul.f32 %v1581, 1.442695
        %v1587 = vpow.pop %v1586
        %v1588 = vsel %vm1569, %v1583, 0.0
        %1589 = vadd.xlane.f32.xlu0 %v1588
        %v1590 = vpop.xlane.xlu0 %1589
        %v1591 = vsel %vm1569, %v1585, 0.0
        %1592 = vadd.xlane.f32.xlu0 %v1591
        %v1593 = vpop.xlane.xlu0 %1592
        %v1594 = vsel %vm1569, %v1587, 0.0
        %1595 = vadd.xlane.f32.xlu0 %v1594
        %v1596 = vpop.xlane.xlu0 %1595
        %v1597 = vrcp.pop %v1590
        %v1598 = vrcp.pop %v1593
        %v1599 = vrcp.pop %v1596
        %v1600 = vmul.f32 %v1583, %v1597
        %v1601 = vmul.f32 %v1585, %v1598
        %v1602 = vmul.f32 %v1587, %v1599
        %v1603 = vpack.c.bf16 %v1601, %v1600
        %v1604 = vpack.c.bf16 %v1602, %v1602
        %v1605 = vpack.c.bf16 %v1446, %v1443
        %v1606 = vpack.c.bf16 %v1451, %v1451
        %1609 = vrot.lane.b32.xlu0 %v1605, 64
        %v1610 = vpop.permute.xlu0 %1609
        %1611 = vrot.lane.b32.xlu0 %v1606, 64
        %v1612 = vpop.permute.xlu0 %1611
        %v1615 = vsel %vm1569, %v1603, 0
        %v1618 = vsel %vm1569, %v1604, 0
        %vm1620 = vcmask 1043456
        %v1622 = vsel %vm1620, %v1612, 0
        %1624 = vmatprep.subr.bf16.mxu0 0
        %1625 = vmatpush1.bf16.msra.mxu0 %v1610
        %1626 = vmatprep.subr.bf16.mxu0 0
        %1627 = vmatpush1.bf16.msra.mxu0 %v1622
        %1628 = vmatprep.subr.bf16.mxu0 0
        %1629 = vmatpush1.bf16.msra.mxu0 0
        %1630 = vmatprep.subr.bf16.mxu0 0
        %1631 = vmatpush1.bf16.msra.mxu0 0
        %1632 = vmatprep.subr.bf16.mxu0 0
        %1633 = vmatpush1.bf16.msra.mxu0 0
        %1634 = vmatprep.subr.bf16.mxu0 0
        %1635 = vmatpush1.bf16.msra.mxu0 0
        %1636 = vmatprep.subr.bf16.mxu0 0
        %1637 = vmatpush1.bf16.msra.mxu0 0
        %1638 = vmatprep.subr.bf16.mxu0 0
        %1639 = vmatpush1.bf16.msra.mxu0 0
        %1640 = vmatprep.subr.bf16.mxu0 0
        %1641 = vmatpush1.bf16.msra.mxu0 0
        %1642 = vmatprep.subr.bf16.mxu0 0
        %1643 = vmatpush1.bf16.msra.mxu0 0
        %1644 = vmatprep.subr.bf16.mxu0 0
        %1645 = vmatpush1.bf16.msra.mxu0 0
        %1646 = vmatprep.subr.bf16.mxu0 0
        %1647 = vmatpush1.bf16.msra.mxu0 0
        %1648 = vmatprep.subr.bf16.mxu0 0
        %1649 = vmatpush1.bf16.msra.mxu0 0
        %1650 = vmatprep.subr.bf16.mxu0 0
        %1651 = vmatpush1.bf16.msra.mxu0 0
        %1652 = vmatprep.subr.bf16.mxu0 0
        %1653 = vmatpush1.bf16.msra.mxu0 0
        %1654 = vmatprep.subr.bf16.mxu0 0
        %1655 = vmatpush1.bf16.msra.mxu0 0
        %1656 = vmatprep.mubr.bf16.mxu0 0
        %1657 = vmatmul.mubr.bf16.gmra.mrb[0].mxu0 %v1615
        %v1658 = vpop.f32.mrb[0].mxu0
        %v1659 = vadd.f32 0.0, %v1658
        %v1660 = vpop.f32.mrb[0].mxu0
        %v1661 = vpop.f32.mrb[0].mxu0
        %v1662 = vadd.f32 0.0, %v1661
        %v1663 = vpop.f32.mrb[0].mxu0
        %1664 = vmatprep.mubr.bf16.mxu0 0
        %1665 = vmatmul.mubr.bf16.gmra.mrb[0].mxu0 %v1618
        %v1666 = vpop.f32.mrb[0].mxu0
        %v1667 = vadd.f32 0.0, %v1666
        %v1668 = vpop.f32.mrb[0].mxu0
        %v1669 = vpop.f32.mrb[0].mxu0
        %v1670 = vpop.f32.mrb[0].mxu0
        %1671 = vdwg.mxu0
        %1672 = vrot.lane.b32.xlu0 %v1443, 120
        %v1673 = vpop.permute.xlu0 %1672
        %1674 = vrot.lane.b32.xlu0 %v1446, 120
        %v1675 = vpop.permute.xlu0 %1674
        %1676 = vrot.lane.b32.xlu0 %v1451, 120
        %v1677 = vpop.permute.xlu0 %1676
        %1678 = vrot.lane.b32.xlu0 %v1443, 88
        %v1679 = vpop.permute.xlu0 %1678
        %1680 = vrot.lane.b32.xlu0 %v1446, 88
        %v1681 = vpop.permute.xlu0 %1680
        %1682 = vrot.lane.b32.xlu0 %v1451, 88
        %v1683 = vpop.permute.xlu0 %1682
        %v1684 = vsel %vm1468, %v1673, 0
        %v1686 = vsel %vm1468, %v1675, 0
        %v1688 = vsel %vm1468, %v1677, 0
        %v1690 = vsel %vm1468, %v1679, 0
        %v1692 = vsel %vm1468, %v1681, 0
        %v1694 = vsel %vm1468, %v1683, 0
        %1696 = vmatprep.subr.mxu0 0.0
        %1697 = vmatpush1.xpose.msra.mxu0 %v1690
        %1698 = vmatprep.subr.mxu0 0.0
        %1699 = vmatpush1.xpose.msra.mxu0 %v1692
        %1700 = vmatprep.subr.mxu0 0.0
        %1701 = vmatpush1.xpose.msra.mxu0 %v1694
        %1702 = vmatprep.subr.mxu0 0.0
        %1703 = vmatpush1.xpose.msra.mxu0 0.0
        %1704 = vmatprep.subr.mxu0 0.0
        %1705 = vmatpush1.xpose.msra.mxu0 0.0
        %1706 = vmatprep.subr.mxu0 0.0
        %1707 = vmatpush1.xpose.msra.mxu0 0.0
        %1708 = vmatprep.subr.mxu0 0.0
        %1709 = vmatpush1.xpose.msra.mxu0 0.0
        %1710 = vmatprep.subr.mxu0 0.0
        %1711 = vmatpush1.xpose.msra.mxu0 0.0
        %1712 = vmatprep.subr.mxu0 0.0
        %1713 = vmatpush1.xpose.msra.mxu0 0.0
        %1714 = vmatprep.subr.mxu0 0.0
        %1715 = vmatpush1.xpose.msra.mxu0 0.0
        %1716 = vmatprep.subr.mxu0 0.0
        %1717 = vmatpush1.xpose.msra.mxu0 0.0
        %1718 = vmatprep.subr.mxu0 0.0
        %1719 = vmatpush1.xpose.msra.mxu0 0.0
        %1720 = vmatprep.subr.mxu0 0.0
        %1721 = vmatpush1.xpose.msra.mxu0 0.0
        %1722 = vmatprep.subr.mxu0 0.0
        %1723 = vmatpush1.xpose.msra.mxu0 0.0
        %1724 = vmatprep.subr.mxu0 0.0
        %1725 = vmatpush1.xpose.msra.mxu0 0.0
        %1726 = vmatprep.subr.mxu0 0.0
        %1727 = vmatpush1.xpose.msra.mxu0 0.0
        %1728 = vmatprep.subr.mxu0 0.0
        %1729 = vmatpush1.xpose.msra.mxu0 0.0
        %1730 = vmatprep.subr.mxu0 0.0
        %1731 = vmatpush1.xpose.msra.mxu0 0.0
        %1732 = vmatprep.subr.mxu0 0.0
        %1733 = vmatpush1.xpose.msra.mxu0 0.0
        %1734 = vmatprep.subr.mxu0 0.0
        %1735 = vmatpush1.xpose.msra.mxu0 0.0
        %1736 = vmatprep.subr.mxu0 0.0
        %1737 = vmatpush1.xpose.msra.mxu0 0.0
        %1738 = vmatprep.subr.mxu0 0.0
        %1739 = vmatpush1.xpose.msra.mxu0 0.0
        %1740 = vmatprep.subr.mxu0 0.0
        %1741 = vmatpush1.xpose.msra.mxu0 0.0
        %1742 = vmatprep.subr.mxu0 0.0
        %1743 = vmatpush1.xpose.msra.mxu0 0.0
        %1744 = vmatprep.subr.mxu0 0.0
        %1745 = vmatpush1.xpose.msra.mxu0 0.0
        %1746 = vmatprep.subr.mxu0 0.0
        %1747 = vmatpush1.xpose.msra.mxu0 0.0
        %1748 = vmatprep.subr.mxu0 0.0
        %1749 = vmatpush1.xpose.msra.mxu0 0.0
        %1750 = vmatprep.subr.mxu0 0.0
        %1751 = vmatpush1.xpose.msra.mxu0 0.0
        %1752 = vmatprep.subr.mxu0 0.0
        %1753 = vmatpush1.xpose.msra.mxu0 0.0
        %1754 = vmatprep.subr.mxu0 0.0
        %1755 = vmatpush1.xpose.msra.mxu0 0.0
        %1756 = vmatprep.subr.mxu0 0.0
        %1757 = vmatpush1.xpose.msra.mxu0 0.0
        %1758 = vmatprep.subr.mxu0 0.0
        %1759 = vmatpush1.xpose.msra.mxu0 0.0
        %1760 = vmatprep.mubr.f32.mxu0 0.0
        %1761 = vmatmul.mubr.f32.gmra.mrb[0].mxu0 %v1684
        %v1762 = vpop.f32.mrb[0].mxu0
        %v1763 = vadd.f32 0.0, %v1762
        %v1764 = vpop.f32.mrb[0].mxu0
        %1765 = vmatprep.mubr.f32.mxu0 0.0
        %1766 = vmatmul.mubr.f32.gmra.mrb[0].mxu0 %v1686
        %v1767 = vpop.f32.mrb[0].mxu0
        %v1768 = vadd.f32 0.0, %v1767
        %v1769 = vpop.f32.mrb[0].mxu0
        %1770 = vmatprep.mubr.f32.mxu0 0.0
        %1771 = vmatmul.mubr.f32.gmra.mrb[0].mxu0 %v1688
        %v1772 = vpop.f32.mrb[0].mxu0
        %v1773 = vadd.f32 0.0, %v1772
        %v1774 = vpop.f32.mrb[0].mxu0
        %1775 = vdwg.mxu0
        %v1776 = vmul.f32 %v1763, 0.35355338
        %v1777 = vmul.f32 %v1768, 0.35355338
        %v1778 = vmul.f32 %v1773, 0.35355338
        %v1779 = vsel %vm1565, %v1776, -1e+30
        %v1780 = vsel %vm1565, %v1777, -1e+30
        %v1781 = vsel %vm1565, %v1778, -1e+30
        %v1782 = vsel %vm1569, %v1779, -inf
        %1783 = vmax.xlane.f32.xlu0 %v1782
        %v1784 = vpop.xlane.xlu0 %1783
        %v1785 = vsel %vm1569, %v1780, -inf
        %1786 = vmax.xlane.f32.xlu0 %v1785
        %v1787 = vpop.xlane.xlu0 %1786
        %v1788 = vsel %vm1569, %v1781, -inf
        %1789 = vmax.xlane.f32.xlu0 %v1788
        %v1790 = vpop.xlane.xlu0 %1789
        %v1791 = vsub.f32 %v1779, %v1784
        %v1792 = vsub.f32 %v1780, %v1787
        %v1793 = vsub.f32 %v1781, %v1790
        %v1794 = vmul.f32 %v1791, 1.442695
        %v1795 = vpow.pop %v1794
        %v1796 = vmul.f32 %v1792, 1.442695
        %v1797 = vpow.pop %v1796
        %v1798 = vmul.f32 %v1793, 1.442695
        %v1799 = vpow.pop %v1798
        %v1800 = vsel %vm1569, %v1795, 0.0
        %1801 = vadd.xlane.f32.xlu0 %v1800
        %v1802 = vpop.xlane.xlu0 %1801
        %v1803 = vsel %vm1569, %v1797, 0.0
        %1804 = vadd.xlane.f32.xlu0 %v1803
        %v1805 = vpop.xlane.xlu0 %1804
        %v1806 = vsel %vm1569, %v1799, 0.0
        %1807 = vadd.xlane.f32.xlu0 %v1806
        %v1808 = vpop.xlane.xlu0 %1807
        %v1809 = vrcp.pop %v1802
        %v1810 = vrcp.pop %v1805
        %v1811 = vrcp.pop %v1808
        %v1812 = vmul.f32 %v1795, %v1809
        %v1813 = vmul.f32 %v1797, %v1810
        %v1814 = vmul.f32 %v1799, %v1811
        %v1815 = vpack.c.bf16 %v1813, %v1812
        %v1816 = vpack.c.bf16 %v1814, %v1814
        %1817 = vrot.lane.b32.xlu0 %v1605, 56
        %v1818 = vpop.permute.xlu0 %1817
        %1819 = vrot.lane.b32.xlu0 %v1606, 56
        %v1820 = vpop.permute.xlu0 %1819
        %v1823 = vsel %vm1569, %v1815, 0
        %v1826 = vsel %vm1569, %v1816, 0
        %v1829 = vsel %vm1620, %v1820, 0
        %1831 = vmatprep.subr.bf16.mxu0 0
        %1832 = vmatpush1.bf16.msra.mxu0 %v1818
        %1833 = vmatprep.subr.bf16.mxu0 0
        %1834 = vmatpush1.bf16.msra.mxu0 %v1829
        %1835 = vmatprep.subr.bf16.mxu0 0
        %1836 = vmatpush1.bf16.msra.mxu0 0
        %1837 = vmatprep.subr.bf16.mxu0 0
        %1838 = vmatpush1.bf16.msra.mxu0 0
        %1839 = vmatprep.subr.bf16.mxu0 0
        %1840 = vmatpush1.bf16.msra.mxu0 0
        %1841 = vmatprep.subr.bf16.mxu0 0
        %1842 = vmatpush1.bf16.msra.mxu0 0
        %1843 = vmatprep.subr.bf16.mxu0 0
        %1844 = vmatpush1.bf16.msra.mxu0 0
        %1845 = vmatprep.subr.bf16.mxu0 0
        %1846 = vmatpush1.bf16.msra.mxu0 0
        %1847 = vmatprep.subr.bf16.mxu0 0
        %1848 = vmatpush1.bf16.msra.mxu0 0
        %1849 = vmatprep.subr.bf16.mxu0 0
        %1850 = vmatpush1.bf16.msra.mxu0 0
        %1851 = vmatprep.subr.bf16.mxu0 0
        %1852 = vmatpush1.bf16.msra.mxu0 0
        %1853 = vmatprep.subr.bf16.mxu0 0
        %1854 = vmatpush1.bf16.msra.mxu0 0
        %1855 = vmatprep.subr.bf16.mxu0 0
        %1856 = vmatpush1.bf16.msra.mxu0 0
        %1857 = vmatprep.subr.bf16.mxu0 0
        %1858 = vmatpush1.bf16.msra.mxu0 0
        %1859 = vmatprep.subr.bf16.mxu0 0
        %1860 = vmatpush1.bf16.msra.mxu0 0
        %1861 = vmatprep.subr.bf16.mxu0 0
        %1862 = vmatpush1.bf16.msra.mxu0 0
        %1863 = vmatprep.mubr.bf16.mxu0 0
        %1864 = vmatmul.mubr.bf16.gmra.mrb[0].mxu0 %v1823
        %v1865 = vpop.f32.mrb[0].mxu0
        %v1866 = vadd.f32 0.0, %v1865
        %v1867 = vpop.f32.mrb[0].mxu0
        %v1868 = vpop.f32.mrb[0].mxu0
        %v1869 = vadd.f32 0.0, %v1868
        %v1870 = vpop.f32.mrb[0].mxu0
        %1871 = vmatprep.mubr.bf16.mxu0 0
        %1872 = vmatmul.mubr.bf16.gmra.mrb[0].mxu0 %v1826
        %v1873 = vpop.f32.mrb[0].mxu0
        %v1874 = vadd.f32 0.0, %v1873
        %v1875 = vpop.f32.mrb[0].mxu0
        %v1876 = vpop.f32.mrb[0].mxu0
        %v1877 = vpop.f32.mrb[0].mxu0
        %1878 = vdwg.mxu0
        %1879 = vrot.lane.b32.xlu0 %v1443, 112
        %v1880 = vpop.permute.xlu0 %1879
        %1881 = vrot.lane.b32.xlu0 %v1446, 112
        %v1882 = vpop.permute.xlu0 %1881
        %1883 = vrot.lane.b32.xlu0 %v1451, 112
        %v1884 = vpop.permute.xlu0 %1883
        %1885 = vrot.lane.b32.xlu0 %v1443, 80
        %v1886 = vpop.permute.xlu0 %1885
        %1887 = vrot.lane.b32.xlu0 %v1446, 80
        %v1888 = vpop.permute.xlu0 %1887
        %1889 = vrot.lane.b32.xlu0 %v1451, 80
        %v1890 = vpop.permute.xlu0 %1889
        %v1891 = vsel %vm1468, %v1880, 0
        %v1893 = vsel %vm1468, %v1882, 0
        %v1895 = vsel %vm1468, %v1884, 0
        %v1897 = vsel %vm1468, %v1886, 0
        %v1899 = vsel %vm1468, %v1888, 0
        %v1901 = vsel %vm1468, %v1890, 0
        %1903 = vmatprep.subr.mxu0 0.0
        %1904 = vmatpush1.xpose.msra.mxu0 %v1897
        %1905 = vmatprep.subr.mxu0 0.0
        %1906 = vmatpush1.xpose.msra.mxu0 %v1899
        %1907 = vmatprep.subr.mxu0 0.0
        %1908 = vmatpush1.xpose.msra.mxu0 %v1901
        %1909 = vmatprep.subr.mxu0 0.0
        %1910 = vmatpush1.xpose.msra.mxu0 0.0
        %1911 = vmatprep.subr.mxu0 0.0
        %1912 = vmatpush1.xpose.msra.mxu0 0.0
        %1913 = vmatprep.subr.mxu0 0.0
        %1914 = vmatpush1.xpose.msra.mxu0 0.0
        %1915 = vmatprep.subr.mxu0 0.0
        %1916 = vmatpush1.xpose.msra.mxu0 0.0
        %1917 = vmatprep.subr.mxu0 0.0
        %1918 = vmatpush1.xpose.msra.mxu0 0.0
        %1919 = vmatprep.subr.mxu0 0.0
        %1920 = vmatpush1.xpose.msra.mxu0 0.0
        %1921 = vmatprep.subr.mxu0 0.0
        %1922 = vmatpush1.xpose.msra.mxu0 0.0
        %1923 = vmatprep.subr.mxu0 0.0
        %1924 = vmatpush1.xpose.msra.mxu0 0.0
        %1925 = vmatprep.subr.mxu0 0.0
        %1926 = vmatpush1.xpose.msra.mxu0 0.0
        %1927 = vmatprep.subr.mxu0 0.0
        %1928 = vmatpush1.xpose.msra.mxu0 0.0
        %1929 = vmatprep.subr.mxu0 0.0
        %1930 = vmatpush1.xpose.msra.mxu0 0.0
        %1931 = vmatprep.subr.mxu0 0.0
        %1932 = vmatpush1.xpose.msra.mxu0 0.0
        %1933 = vmatprep.subr.mxu0 0.0
        %1934 = vmatpush1.xpose.msra.mxu0 0.0
        %1935 = vmatprep.subr.mxu0 0.0
        %1936 = vmatpush1.xpose.msra.mxu0 0.0
        %1937 = vmatprep.subr.mxu0 0.0
        %1938 = vmatpush1.xpose.msra.mxu0 0.0
        %1939 = vmatprep.subr.mxu0 0.0
        %1940 = vmatpush1.xpose.msra.mxu0 0.0
        %1941 = vmatprep.subr.mxu0 0.0
        %1942 = vmatpush1.xpose.msra.mxu0 0.0
        %1943 = vmatprep.subr.mxu0 0.0
        %1944 = vmatpush1.xpose.msra.mxu0 0.0
        %1945 = vmatprep.subr.mxu0 0.0
        %1946 = vmatpush1.xpose.msra.mxu0 0.0
        %1947 = vmatprep.subr.mxu0 0.0
        %1948 = vmatpush1.xpose.msra.mxu0 0.0
        %1949 = vmatprep.subr.mxu0 0.0
        %1950 = vmatpush1.xpose.msra.mxu0 0.0
        %1951 = vmatprep.subr.mxu0 0.0
        %1952 = vmatpush1.xpose.msra.mxu0 0.0
        %1953 = vmatprep.subr.mxu0 0.0
        %1954 = vmatpush1.xpose.msra.mxu0 0.0
        %1955 = vmatprep.subr.mxu0 0.0
        %1956 = vmatpush1.xpose.msra.mxu0 0.0
        %1957 = vmatprep.subr.mxu0 0.0
        %1958 = vmatpush1.xpose.msra.mxu0 0.0
        %1959 = vmatprep.subr.mxu0 0.0
        %1960 = vmatpush1.xpose.msra.mxu0 0.0
        %1961 = vmatprep.subr.mxu0 0.0
        %1962 = vmatpush1.xpose.msra.mxu0 0.0
        %1963 = vmatprep.subr.mxu0 0.0
        %1964 = vmatpush1.xpose.msra.mxu0 0.0
        %1965 = vmatprep.subr.mxu0 0.0
        %1966 = vmatpush1.xpose.msra.mxu0 0.0
        %1967 = vmatprep.mubr.f32.mxu0 0.0
        %1968 = vmatmul.mubr.f32.gmra.mrb[0].mxu0 %v1891
        %v1969 = vpop.f32.mrb[0].mxu0
        %v1970 = vadd.f32 0.0, %v1969
        %v1971 = vpop.f32.mrb[0].mxu0
        %1972 = vmatprep.mubr.f32.mxu0 0.0
        %1973 = vmatmul.mubr.f32.gmra.mrb[0].mxu0 %v1893
        %v1974 = vpop.f32.mrb[0].mxu0
        %v1975 = vadd.f32 0.0, %v1974
        %v1976 = vpop.f32.mrb[0].mxu0
        %1977 = vmatprep.mubr.f32.mxu0 0.0
        %1978 = vmatmul.mubr.f32.gmra.mrb[0].mxu0 %v1895
        %v1979 = vpop.f32.mrb[0].mxu0
        %v1980 = vadd.f32 0.0, %v1979
        %v1981 = vpop.f32.mrb[0].mxu0
        %1982 = vdwg.mxu0
        %v1983 = vmul.f32 %v1970, 0.35355338
        %v1984 = vmul.f32 %v1975, 0.35355338
        %v1985 = vmul.f32 %v1980, 0.35355338
        %v1986 = vsel %vm1565, %v1983, -1e+30
        %v1987 = vsel %vm1565, %v1984, -1e+30
        %v1988 = vsel %vm1565, %v1985, -1e+30
        %v1989 = vsel %vm1569, %v1986, -inf
        %1990 = vmax.xlane.f32.xlu0 %v1989
        %v1991 = vpop.xlane.xlu0 %1990
        %v1992 = vsel %vm1569, %v1987, -inf
        %1993 = vmax.xlane.f32.xlu0 %v1992
        %v1994 = vpop.xlane.xlu0 %1993
        %v1995 = vsel %vm1569, %v1988, -inf
        %1996 = vmax.xlane.f32.xlu0 %v1995
        %v1997 = vpop.xlane.xlu0 %1996
        %v1998 = vsub.f32 %v1986, %v1991
        %v1999 = vsub.f32 %v1987, %v1994
        %v2000 = vsub.f32 %v1988, %v1997
        %v2001 = vmul.f32 %v1998, 1.442695
        %v2002 = vpow.pop %v2001
        %v2003 = vmul.f32 %v1999, 1.442695
        %v2004 = vpow.pop %v2003
        %v2005 = vmul.f32 %v2000, 1.442695
        %v2006 = vpow.pop %v2005
        %v2007 = vsel %vm1569, %v2002, 0.0
        %2008 = vadd.xlane.f32.xlu0 %v2007
        %v2009 = vpop.xlane.xlu0 %2008
        %v2010 = vsel %vm1569, %v2004, 0.0
        %2011 = vadd.xlane.f32.xlu0 %v2010
        %v2012 = vpop.xlane.xlu0 %2011
        %v2013 = vsel %vm1569, %v2006, 0.0
        %2014 = vadd.xlane.f32.xlu0 %v2013
        %v2015 = vpop.xlane.xlu0 %2014
        %v2016 = vrcp.pop %v2009
        %v2017 = vrcp.pop %v2012
        %v2018 = vrcp.pop %v2015
        %v2019 = vmul.f32 %v2002, %v2016
        %v2020 = vmul.f32 %v2004, %v2017
        %v2021 = vmul.f32 %v2006, %v2018
        %v2022 = vpack.c.bf16 %v2020, %v2019
        %v2023 = vpack.c.bf16 %v2021, %v2021
        %2024 = vrot.lane.b32.xlu0 %v1605, 48
        %v2025 = vpop.permute.xlu0 %2024
        %2026 = vrot.lane.b32.xlu0 %v1606, 48
        %v2027 = vpop.permute.xlu0 %2026
        %v2030 = vsel %vm1569, %v2022, 0
        %v2033 = vsel %vm1569, %v2023, 0
        %v2036 = vsel %vm1620, %v2027, 0
        %2038 = vmatprep.subr.bf16.mxu0 0
        %2039 = vmatpush1.bf16.msra.mxu0 %v2025
        %2040 = vmatprep.subr.bf16.mxu0 0
        %2041 = vmatpush1.bf16.msra.mxu0 %v2036
        %2042 = vmatprep.subr.bf16.mxu0 0
        %2043 = vmatpush1.bf16.msra.mxu0 0
        %2044 = vmatprep.subr.bf16.mxu0 0
        %2045 = vmatpush1.bf16.msra.mxu0 0
        %2046 = vmatprep.subr.bf16.mxu0 0
        %2047 = vmatpush1.bf16.msra.mxu0 0
        %2048 = vmatprep.subr.bf16.mxu0 0
        %2049 = vmatpush1.bf16.msra.mxu0 0
        %2050 = vmatprep.subr.bf16.mxu0 0
        %2051 = vmatpush1.bf16.msra.mxu0 0
        %2052 = vmatprep.subr.bf16.mxu0 0
        %2053 = vmatpush1.bf16.msra.mxu0 0
        %2054 = vmatprep.subr.bf16.mxu0 0
        %2055 = vmatpush1.bf16.msra.mxu0 0
        %2056 = vmatprep.subr.bf16.mxu0 0
        %2057 = vmatpush1.bf16.msra.mxu0 0
        %2058 = vmatprep.subr.bf16.mxu0 0
        %2059 = vmatpush1.bf16.msra.mxu0 0
        %2060 = vmatprep.subr.bf16.mxu0 0
        %2061 = vmatpush1.bf16.msra.mxu0 0
        %2062 = vmatprep.subr.bf16.mxu0 0
        %2063 = vmatpush1.bf16.msra.mxu0 0
        %2064 = vmatprep.subr.bf16.mxu0 0
        %2065 = vmatpush1.bf16.msra.mxu0 0
        %2066 = vmatprep.subr.bf16.mxu0 0
        %2067 = vmatpush1.bf16.msra.mxu0 0
        %2068 = vmatprep.subr.bf16.mxu0 0
        %2069 = vmatpush1.bf16.msra.mxu0 0
        %2070 = vmatprep.mubr.bf16.mxu0 0
        %2071 = vmatmul.mubr.bf16.gmra.mrb[0].mxu0 %v2030
        %v2072 = vpop.f32.mrb[0].mxu0
        %v2073 = vadd.f32 0.0, %v2072
        %v2074 = vpop.f32.mrb[0].mxu0
        %v2075 = vpop.f32.mrb[0].mxu0
        %v2076 = vadd.f32 0.0, %v2075
        %v2077 = vpop.f32.mrb[0].mxu0
        %2078 = vmatprep.mubr.bf16.mxu0 0
        %2079 = vmatmul.mubr.bf16.gmra.mrb[0].mxu0 %v2033
        %v2080 = vpop.f32.mrb[0].mxu0
        %v2081 = vadd.f32 0.0, %v2080
        %v2082 = vpop.f32.mrb[0].mxu0
        %v2083 = vpop.f32.mrb[0].mxu0
        %v2084 = vpop.f32.mrb[0].mxu0
        %2085 = vdwg.mxu0
        %2086 = vrot.lane.b32.xlu0 %v1443, 104
        %v2087 = vpop.permute.xlu0 %2086
        %2088 = vrot.lane.b32.xlu0 %v1446, 104
        %v2089 = vpop.permute.xlu0 %2088
        %2090 = vrot.lane.b32.xlu0 %v1451, 104
        %v2091 = vpop.permute.xlu0 %2090
        %2092 = vrot.lane.b32.xlu0 %v1443, 72
        %v2093 = vpop.permute.xlu0 %2092
        %2094 = vrot.lane.b32.xlu0 %v1446, 72
        %v2095 = vpop.permute.xlu0 %2094
        %2096 = vrot.lane.b32.xlu0 %v1451, 72
        %v2097 = vpop.permute.xlu0 %2096
        %v2098 = vsel %vm1468, %v2087, 0
        %v2100 = vsel %vm1468, %v2089, 0
        %v2102 = vsel %vm1468, %v2091, 0
        %v2104 = vsel %vm1468, %v2093, 0
        %v2106 = vsel %vm1468, %v2095, 0
        %v2108 = vsel %vm1468, %v2097, 0
        %2110 = vmatprep.subr.mxu0 0.0
        %2111 = vmatpush1.xpose.msra.mxu0 %v2104
        %2112 = vmatprep.subr.mxu0 0.0
        %2113 = vmatpush1.xpose.msra.mxu0 %v2106
        %2114 = vmatprep.subr.mxu0 0.0
        %2115 = vmatpush1.xpose.msra.mxu0 %v2108
        %2116 = vmatprep.subr.mxu0 0.0
        %2117 = vmatpush1.xpose.msra.mxu0 0.0
        %2118 = vmatprep.subr.mxu0 0.0
        %2119 = vmatpush1.xpose.msra.mxu0 0.0
        %2120 = vmatprep.subr.mxu0 0.0
        %2121 = vmatpush1.xpose.msra.mxu0 0.0
        %2122 = vmatprep.subr.mxu0 0.0
        %2123 = vmatpush1.xpose.msra.mxu0 0.0
        %2124 = vmatprep.subr.mxu0 0.0
        %2125 = vmatpush1.xpose.msra.mxu0 0.0
        %2126 = vmatprep.subr.mxu0 0.0
        %2127 = vmatpush1.xpose.msra.mxu0 0.0
        %2128 = vmatprep.subr.mxu0 0.0
        %2129 = vmatpush1.xpose.msra.mxu0 0.0
        %2130 = vmatprep.subr.mxu0 0.0
        %2131 = vmatpush1.xpose.msra.mxu0 0.0
        %2132 = vmatprep.subr.mxu0 0.0
        %2133 = vmatpush1.xpose.msra.mxu0 0.0
        %2134 = vmatprep.subr.mxu0 0.0
        %2135 = vmatpush1.xpose.msra.mxu0 0.0
        %2136 = vmatprep.subr.mxu0 0.0
        %2137 = vmatpush1.xpose.msra.mxu0 0.0
        %2138 = vmatprep.subr.mxu0 0.0
        %2139 = vmatpush1.xpose.msra.mxu0 0.0
        %2140 = vmatprep.subr.mxu0 0.0
        %2141 = vmatpush1.xpose.msra.mxu0 0.0
        %2142 = vmatprep.subr.mxu0 0.0
        %2143 = vmatpush1.xpose.msra.mxu0 0.0
        %2144 = vmatprep.subr.mxu0 0.0
        %2145 = vmatpush1.xpose.msra.mxu0 0.0
        %2146 = vmatprep.subr.mxu0 0.0
        %2147 = vmatpush1.xpose.msra.mxu0 0.0
        %2148 = vmatprep.subr.mxu0 0.0
        %2149 = vmatpush1.xpose.msra.mxu0 0.0
        %2150 = vmatprep.subr.mxu0 0.0
        %2151 = vmatpush1.xpose.msra.mxu0 0.0
        %2152 = vmatprep.subr.mxu0 0.0
        %2153 = vmatpush1.xpose.msra.mxu0 0.0
        %2154 = vmatprep.subr.mxu0 0.0
        %2155 = vmatpush1.xpose.msra.mxu0 0.0
        %2156 = vmatprep.subr.mxu0 0.0
        %2157 = vmatpush1.xpose.msra.mxu0 0.0
        %2158 = vmatprep.subr.mxu0 0.0
        %2159 = vmatpush1.xpose.msra.mxu0 0.0
        %2160 = vmatprep.subr.mxu0 0.0
        %2161 = vmatpush1.xpose.msra.mxu0 0.0
        %2162 = vmatprep.subr.mxu0 0.0
        %2163 = vmatpush1.xpose.msra.mxu0 0.0
        %2164 = vmatprep.subr.mxu0 0.0
        %2165 = vmatpush1.xpose.msra.mxu0 0.0
        %2166 = vmatprep.subr.mxu0 0.0
        %2167 = vmatpush1.xpose.msra.mxu0 0.0
        %2168 = vmatprep.subr.mxu0 0.0
        %2169 = vmatpush1.xpose.msra.mxu0 0.0
        %2170 = vmatprep.subr.mxu0 0.0
        %2171 = vmatpush1.xpose.msra.mxu0 0.0
        %2172 = vmatprep.subr.mxu0 0.0
        %2173 = vmatpush1.xpose.msra.mxu0 0.0
        %2174 = vmatprep.mubr.f32.mxu0 0.0
        %2175 = vmatmul.mubr.f32.gmra.mrb[0].mxu0 %v2098
        %v2176 = vpop.f32.mrb[0].mxu0
        %v2177 = vadd.f32 0.0, %v2176
        %v2178 = vpop.f32.mrb[0].mxu0
        %2179 = vmatprep.mubr.f32.mxu0 0.0
        %2180 = vmatmul.mubr.f32.gmra.mrb[0].mxu0 %v2100
        %v2181 = vpop.f32.mrb[0].mxu0
        %v2182 = vadd.f32 0.0, %v2181
        %v2183 = vpop.f32.mrb[0].mxu0
        %2184 = vmatprep.mubr.f32.mxu0 0.0
        %2185 = vmatmul.mubr.f32.gmra.mrb[0].mxu0 %v2102
        %v2186 = vpop.f32.mrb[0].mxu0
        %v2187 = vadd.f32 0.0, %v2186
        %v2188 = vpop.f32.mrb[0].mxu0
        %2189 = vdwg.mxu0
        %v2190 = vmul.f32 %v2177, 0.35355338
        %v2191 = vmul.f32 %v2182, 0.35355338
        %v2192 = vmul.f32 %v2187, 0.35355338
        %v2193 = vsel %vm1565, %v2190, -1e+30
        %v2194 = vsel %vm1565, %v2191, -1e+30
        %v2195 = vsel %vm1565, %v2192, -1e+30
        %v2196 = vsel %vm1569, %v2193, -inf
        %2197 = vmax.xlane.f32.xlu0 %v2196
        %v2198 = vpop.xlane.xlu0 %2197
        %v2199 = vsel %vm1569, %v2194, -inf
        %2200 = vmax.xlane.f32.xlu0 %v2199
        %v2201 = vpop.xlane.xlu0 %2200
        %v2202 = vsel %vm1569, %v2195, -inf
        %2203 = vmax.xlane.f32.xlu0 %v2202
        %v2204 = vpop.xlane.xlu0 %2203
        %v2205 = vsub.f32 %v2193, %v2198
        %v2206 = vsub.f32 %v2194, %v2201
        %v2207 = vsub.f32 %v2195, %v2204
        %v2208 = vmul.f32 %v2205, 1.442695
        %v2209 = vpow.pop %v2208
        %v2210 = vmul.f32 %v2206, 1.442695
        %v2211 = vpow.pop %v2210
        %v2212 = vmul.f32 %v2207, 1.442695
        %v2213 = vpow.pop %v2212
        %v2214 = vsel %vm1569, %v2209, 0.0
        %2215 = vadd.xlane.f32.xlu0 %v2214
        %v2216 = vpop.xlane.xlu0 %2215
        %v2217 = vsel %vm1569, %v2211, 0.0
        %2218 = vadd.xlane.f32.xlu0 %v2217
        %v2219 = vpop.xlane.xlu0 %2218
        %v2220 = vsel %vm1569, %v2213, 0.0
        %2221 = vadd.xlane.f32.xlu0 %v2220
        %v2222 = vpop.xlane.xlu0 %2221
        %v2223 = vrcp.pop %v2216
        %v2224 = vrcp.pop %v2219
        %v2225 = vrcp.pop %v2222
        %v2226 = vmul.f32 %v2209, %v2223
        %v2227 = vmul.f32 %v2211, %v2224
        %v2228 = vmul.f32 %v2213, %v2225
        %v2229 = vpack.c.bf16 %v2227, %v2226
        %v2230 = vpack.c.bf16 %v2228, %v2228
        %2231 = vrot.lane.b32.xlu0 %v1605, 40
        %v2232 = vpop.permute.xlu0 %2231
        %2233 = vrot.lane.b32.xlu0 %v1606, 40
        %v2234 = vpop.permute.xlu0 %2233
        %v2237 = vsel %vm1569, %v2229, 0
        %v2240 = vsel %vm1569, %v2230, 0
        %v2243 = vsel %vm1620, %v2234, 0
        %2245 = vmatprep.subr.bf16.mxu0 0
        %2246 = vmatpush1.bf16.msra.mxu0 %v2232
        %2247 = vmatprep.subr.bf16.mxu0 0
        %2248 = vmatpush1.bf16.msra.mxu0 %v2243
        %2249 = vmatprep.subr.bf16.mxu0 0
        %2250 = vmatpush1.bf16.msra.mxu0 0
        %2251 = vmatprep.subr.bf16.mxu0 0
        %2252 = vmatpush1.bf16.msra.mxu0 0
        %2253 = vmatprep.subr.bf16.mxu0 0
        %2254 = vmatpush1.bf16.msra.mxu0 0
        %2255 = vmatprep.subr.bf16.mxu0 0
        %2256 = vmatpush1.bf16.msra.mxu0 0
        %2257 = vmatprep.subr.bf16.mxu0 0
        %2258 = vmatpush1.bf16.msra.mxu0 0
        %2259 = vmatprep.subr.bf16.mxu0 0
        %2260 = vmatpush1.bf16.msra.mxu0 0
        %2261 = vmatprep.subr.bf16.mxu0 0
        %2262 = vmatpush1.bf16.msra.mxu0 0
        %2263 = vmatprep.subr.bf16.mxu0 0
        %2264 = vmatpush1.bf16.msra.mxu0 0
        %2265 = vmatprep.subr.bf16.mxu0 0
        %2266 = vmatpush1.bf16.msra.mxu0 0
        %2267 = vmatprep.subr.bf16.mxu0 0
        %2268 = vmatpush1.bf16.msra.mxu0 0
        %2269 = vmatprep.subr.bf16.mxu0 0
        %2270 = vmatpush1.bf16.msra.mxu0 0
        %2271 = vmatprep.subr.bf16.mxu0 0
        %2272 = vmatpush1.bf16.msra.mxu0 0
        %2273 = vmatprep.subr.bf16.mxu0 0
        %2274 = vmatpush1.bf16.msra.mxu0 0
        %2275 = vmatprep.subr.bf16.mxu0 0
        %2276 = vmatpush1.bf16.msra.mxu0 0
        %2277 = vmatprep.mubr.bf16.mxu0 0
        %2278 = vmatmul.mubr.bf16.gmra.mrb[0].mxu0 %v2237
        %v2279 = vpop.f32.mrb[0].mxu0
        %v2280 = vadd.f32 0.0, %v2279
        %v2281 = vpop.f32.mrb[0].mxu0
        %v2282 = vpop.f32.mrb[0].mxu0
        %v2283 = vadd.f32 0.0, %v2282
        %v2284 = vpop.f32.mrb[0].mxu0
        %2285 = vmatprep.mubr.bf16.mxu0 0
        %2286 = vmatmul.mubr.bf16.gmra.mrb[0].mxu0 %v2240
        %v2287 = vpop.f32.mrb[0].mxu0
        %v2288 = vadd.f32 0.0, %v2287
        %v2289 = vpop.f32.mrb[0].mxu0
        %v2290 = vpop.f32.mrb[0].mxu0
        %v2291 = vpop.f32.mrb[0].mxu0
        %2292 = vdwg.mxu0
        %2296 = vrot.lane.b32.xlu0 %v1866, 8
        %v2297 = vpop.permute.xlu0 %2296
        %2298 = vrot.lane.b32.xlu0 %v1869, 8
        %v2299 = vpop.permute.xlu0 %2298
        %2300 = vrot.lane.b32.xlu0 %v1874, 8
        %v2301 = vpop.permute.xlu0 %2300
        %2308 = vrot.lane.b32.xlu0 %v2073, 16
        %v2309 = vpop.permute.xlu0 %2308
        %2310 = vrot.lane.b32.xlu0 %v2076, 16
        %v2311 = vpop.permute.xlu0 %2310
        %2312 = vrot.lane.b32.xlu0 %v2081, 16
        %v2313 = vpop.permute.xlu0 %2312
        %2320 = vrot.lane.b32.xlu0 %v2280, 24
        %v2321 = vpop.permute.xlu0 %2320
        %2322 = vrot.lane.b32.xlu0 %v2283, 24
        %v2323 = vpop.permute.xlu0 %2322
        %2324 = vrot.lane.b32.xlu0 %v2288, 24
        %v2325 = vpop.permute.xlu0 %2324
        %v2329 = vsel %vm1468, %v1659, %v2297
        %v2330 = vsel %vm1468, %v1662, %v2299
        %v2331 = vsel %vm1468, %v1667, %v2301
        %vm2332 = vcmask 130048
        %v2333 = vsel %vm2332, %v2329, %v2309
        %v2334 = vsel %vm2332, %v2330, %v2311
        %v2335 = vsel %vm2332, %v2331, %v2313
        %v2336 = vsel %vm1569, %v2333, %v2321
        %v2337 = vsel %vm1569, %v2334, %v2323
        %v2338 = vsel %vm1569, %v2335, %v2325
        %v2339 = vpack.c.bf16 %v2337, %v2336
        %v2340 = vpack.c.bf16 %v2338, %v2338
        %v2341 = vld [vmem:[%s961] sm:$0xf]
        %v2342 = vld [vmem:[%s961 + $0x4] sm:$0xf]
        %v2343 = vld [vmem:[%s961 + $0x8] sm:$0xf]
        %v2344 = vld [vmem:[%s961 + $0xc] sm:$0xf]
        %v2345 = vld [vmem:[%s969] sm:$0x1]
        %v2347 = vlaneseq
        %v2348 = vshrl.u32 %v2347, 7
        %v2349 = vsub.s32 0, %v2348
        %v2350 = vrot.slane %v2345, %v2349
        %v2356 = vunpack.c.l.b16 %v2341
        %v2357 = vunpack.c.l.b16 %v2342
        %v2358 = vunpack.c.l.b16 %v2343
        %v2359 = vunpack.c.l.b16 %v2344
        %v2360 = vpack.c.b16 %v2357, %v2356
        %v2361 = vpack.c.b16 %v2359, %v2358
        %v2365 = vsel %vm1318, %v2339, 0
        %v2368 = vsel %vm1318, %v2340, 0
        %2370 = vmatprep.subr.bf16.mxu0 0
        %2371 = vmatpush1.bf16.msra.mxu0 %v2360
        %2372 = vmatprep.subr.bf16.mxu0 0
        %2373 = vmatpush1.bf16.msra.mxu0 %v2361
        %2374 = vmatprep.subr.bf16.mxu0 0
        %2375 = vmatpush1.bf16.msra.mxu0 0
        %2376 = vmatprep.subr.bf16.mxu0 0
        %2377 = vmatpush1.bf16.msra.mxu0 0
        %2378 = vmatprep.subr.bf16.mxu0 0
        %2379 = vmatpush1.bf16.msra.mxu0 0
        %2380 = vmatprep.subr.bf16.mxu0 0
        %2381 = vmatpush1.bf16.msra.mxu0 0
        %2382 = vmatprep.subr.bf16.mxu0 0
        %2383 = vmatpush1.bf16.msra.mxu0 0
        %2384 = vmatprep.subr.bf16.mxu0 0
        %2385 = vmatpush1.bf16.msra.mxu0 0
        %2386 = vmatprep.subr.bf16.mxu0 0
        %2387 = vmatpush1.bf16.msra.mxu0 0
        %2388 = vmatprep.subr.bf16.mxu0 0
        %2389 = vmatpush1.bf16.msra.mxu0 0
        %2390 = vmatprep.subr.bf16.mxu0 0
        %2391 = vmatpush1.bf16.msra.mxu0 0
        %2392 = vmatprep.subr.bf16.mxu0 0
        %2393 = vmatpush1.bf16.msra.mxu0 0
        %2394 = vmatprep.subr.bf16.mxu0 0
        %2395 = vmatpush1.bf16.msra.mxu0 0
        %2396 = vmatprep.subr.bf16.mxu0 0
        %2397 = vmatpush1.bf16.msra.mxu0 0
        %2398 = vmatprep.subr.bf16.mxu0 0
        %2399 = vmatpush1.bf16.msra.mxu0 0
        %2400 = vmatprep.subr.bf16.mxu0 0
        %2401 = vmatpush1.bf16.msra.mxu0 0
        %2402 = vmatprep.mubr.bf16.mxu0 0
        %2403 = vmatmul.mubr.bf16.gmra.mrb[0].mxu0 %v2365
        %v2404 = vpop.f32.mrb[0].mxu0
        %v2405 = vadd.f32 %v2350, %v2404
        %v2406 = vpop.f32.mrb[0].mxu0
        %v2407 = vpop.f32.mrb[0].mxu0
        %v2408 = vadd.f32 %v2350, %v2407
        %v2409 = vpop.f32.mrb[0].mxu0
        %2410 = vmatprep.mubr.bf16.mxu0 0
        %2411 = vmatmul.mubr.bf16.gmra.mrb[0].mxu0 %v2368
        %v2412 = vpop.f32.mrb[0].mxu0
        %v2413 = vadd.f32 %v2350, %v2412
        %v2414 = vpop.f32.mrb[0].mxu0
        %v2415 = vpop.f32.mrb[0].mxu0
        %v2416 = vpop.f32.mrb[0].mxu0
        %2417 = vdwg.mxu0
        %v2418 = vadd.f32 %v1313, %v2405
        %v2419 = vadd.f32 %v1314, %v2408
        %v2420 = vadd.f32 %v1315, %v2413
        %v2421 = vld [vmem:[%s977] sm:$0x1]
        %v2422 = vld [vmem:[%s985] sm:$0x1]
        %v2423 = vsel %vm1318, %v2418, 0.0
        %2424 = vadd.xlane.f32.xlu0 %v2423
        %v2425 = vpop.xlane.xlu0 %2424
        %v2426 = vsel %vm1318, %v2419, 0.0
        %2427 = vadd.xlane.f32.xlu0 %v2426
        %v2428 = vpop.xlane.xlu0 %2427
        %v2429 = vsel %vm1318, %v2420, 0.0
        %2430 = vadd.xlane.f32.xlu0 %v2429
        %v2431 = vpop.xlane.xlu0 %2430
        %v2432 = vmul.f32 %v2425, %v1328
        %v2433 = vmul.f32 %v2428, %v1328
        %v2434 = vmul.f32 %v2431, %v1328
        %v2435 = vsub.f32 %v2418, %v2432
        %v2436 = vsub.f32 %v2419, %v2433
        %v2437 = vsub.f32 %v2420, %v2434
        %v2438 = vmul.f32 %v2435, %v2435
        %v2439 = vmul.f32 %v2436, %v2436
        %v2440 = vmul.f32 %v2437, %v2437
        %v2441 = vsel %vm1318, %v2438, 0.0
        %2442 = vadd.xlane.f32.xlu0 %v2441
        %v2443 = vpop.xlane.xlu0 %2442
        %v2444 = vsel %vm1318, %v2439, 0.0
        %2445 = vadd.xlane.f32.xlu0 %v2444
        %v2446 = vpop.xlane.xlu0 %2445
        %v2447 = vsel %vm1318, %v2440, 0.0
        %2448 = vadd.xlane.f32.xlu0 %v2447
        %v2449 = vpop.xlane.xlu0 %2448
        %v2450 = vmul.f32 %v2443, %v1328
        %v2451 = vmul.f32 %v2446, %v1328
        %v2452 = vmul.f32 %v2449, %v1328
        %v2453 = vadd.f32 %v2450, 1e-06
        %v2454 = vadd.f32 %v2451, 1e-06
        %v2455 = vadd.f32 %v2452, 1e-06
        %v2456 = vrsqrt.pop %v2453
        %v2457 = vrsqrt.pop %v2454
        %v2458 = vrsqrt.pop %v2455
        %v2459 = vmul.f32 %v2435, %v2456
        %v2460 = vmul.f32 %v2436, %v2457
        %v2461 = vmul.f32 %v2437, %v2458
        %v2463 = vlaneseq
        %v2464 = vshrl.u32 %v2463, 7
        %v2465 = vsub.s32 0, %v2464
        %v2466 = vrot.slane %v2421, %v2465
        %v2468 = vmul.f32 %v2459, %v2466
        %v2469 = vmul.f32 %v2460, %v2466
        %v2470 = vmul.f32 %v2461, %v2466
        %v2472 = vlaneseq
        %v2473 = vshrl.u32 %v2472, 7
        %v2474 = vsub.s32 0, %v2473
        %v2475 = vrot.slane %v2422, %v2474
        %v2477 = vadd.f32 %v2468, %v2475
        %v2478 = vadd.f32 %v2469, %v2475
        %v2479 = vadd.f32 %v2470, %v2475
        %v2480 = vpack.c.bf16 %v2478, %v2477
        %v2481 = vpack.c.bf16 %v2479, %v2479
        %v2482 = vld [vmem:[%s994] sm:$0xf]
        %v2483 = vld [vmem:[%s994 + $0x4] sm:$0xf]
        %v2484 = vld [vmem:[%s994 + $0x8] sm:$0xf]
        %v2485 = vld [vmem:[%s994 + $0xc] sm:$0xf]
        %v2486 = vld [vmem:[%s1002] sm:$0x1]
        %v2488 = vlaneseq
        %v2489 = vshrl.u32 %v2488, 7
        %v2490 = vsub.s32 0, %v2489
        %v2491 = vrot.slane %v2486, %v2490
        %v2497 = vunpack.c.l.b16 %v2482
        %v2498 = vunpack.c.l.b16 %v2483
        %v2499 = vunpack.c.l.b16 %v2484
        %v2500 = vunpack.c.l.b16 %v2485
        %v2501 = vpack.c.b16 %v2498, %v2497
        %v2502 = vpack.c.b16 %v2500, %v2499
        %v2506 = vsel %vm1318, %v2480, 0
        %v2509 = vsel %vm1318, %v2481, 0
        %2511 = vmatprep.subr.bf16.mxu0 0
        %2512 = vmatpush1.bf16.msra.mxu0 %v2501
        %2513 = vmatprep.subr.bf16.mxu0 0
        %2514 = vmatpush1.bf16.msra.mxu0 %v2502
        %2515 = vmatprep.subr.bf16.mxu0 0
        %2516 = vmatpush1.bf16.msra.mxu0 0
        %2517 = vmatprep.subr.bf16.mxu0 0
        %2518 = vmatpush1.bf16.msra.mxu0 0
        %2519 = vmatprep.subr.bf16.mxu0 0
        %2520 = vmatpush1.bf16.msra.mxu0 0
        %2521 = vmatprep.subr.bf16.mxu0 0
        %2522 = vmatpush1.bf16.msra.mxu0 0
        %2523 = vmatprep.subr.bf16.mxu0 0
        %2524 = vmatpush1.bf16.msra.mxu0 0
        %2525 = vmatprep.subr.bf16.mxu0 0
        %2526 = vmatpush1.bf16.msra.mxu0 0
        %2527 = vmatprep.subr.bf16.mxu0 0
        %2528 = vmatpush1.bf16.msra.mxu0 0
        %2529 = vmatprep.subr.bf16.mxu0 0
        %2530 = vmatpush1.bf16.msra.mxu0 0
        %2531 = vmatprep.subr.bf16.mxu0 0
        %2532 = vmatpush1.bf16.msra.mxu0 0
        %2533 = vmatprep.subr.bf16.mxu0 0
        %2534 = vmatpush1.bf16.msra.mxu0 0
        %2535 = vmatprep.subr.bf16.mxu0 0
        %2536 = vmatpush1.bf16.msra.mxu0 0
        %2537 = vmatprep.subr.bf16.mxu0 0
        %2538 = vmatpush1.bf16.msra.mxu0 0
        %2539 = vmatprep.subr.bf16.mxu0 0
        %2540 = vmatpush1.bf16.msra.mxu0 0
        %2541 = vmatprep.subr.bf16.mxu0 0
        %2542 = vmatpush1.bf16.msra.mxu0 0
        %2543 = vmatprep.mubr.bf16.mxu0 0
        %2544 = vmatmul.mubr.bf16.gmra.mrb[0].mxu0 %v2506
        %v2545 = vpop.f32.mrb[0].mxu0
        %v2546 = vadd.f32 %v2491, %v2545
        %v2547 = vpop.f32.mrb[0].mxu0
        %v2548 = vpop.f32.mrb[0].mxu0
        %v2549 = vadd.f32 %v2491, %v2548
        %v2550 = vpop.f32.mrb[0].mxu0
        %2551 = vmatprep.mubr.bf16.mxu0 0
        %2552 = vmatmul.mubr.bf16.gmra.mrb[0].mxu0 %v2509
        %v2553 = vpop.f32.mrb[0].mxu0
        %v2554 = vadd.f32 %v2491, %v2553
        %v2555 = vpop.f32.mrb[0].mxu0
        %v2556 = vpop.f32.mrb[0].mxu0
        %v2557 = vpop.f32.mrb[0].mxu0
        %2558 = vdwg.mxu0
        %v2559 = vmul.f32 %v2546, 0.5
        %v2560 = vmul.f32 %v2549, 0.5
        %v2561 = vmul.f32 %v2554, 0.5
        %v2562 = vmul.f32 %v2546, 0.70710677
        %v2563 = vmul.f32 %v2549, 0.70710677
        %v2564 = vmul.f32 %v2554, 0.70710677
        %v2565 = verf.f32.pop %v2562
        %v2566 = verf.f32.pop %v2563
        %v2567 = verf.f32.pop %v2564
        %v2568 = vadd.f32 %v2565, 1.0
        %v2569 = vadd.f32 %v2566, 1.0
        %v2570 = vadd.f32 %v2567, 1.0
        %v2571 = vmul.f32 %v2559, %v2568
        %v2572 = vmul.f32 %v2560, %v2569
        %v2573 = vmul.f32 %v2561, %v2570
        %v2574 = vpack.c.bf16 %v2572, %v2571
        %v2575 = vpack.c.bf16 %v2573, %v2573
        %v2576 = vld [vmem:[%s1011] sm:$0xf]
        %v2577 = vld [vmem:[%s1011 + $0x4] sm:$0xf]
        %v2578 = vld [vmem:[%s1011 + $0x8] sm:$0xf]
        %v2579 = vld [vmem:[%s1011 + $0xc] sm:$0xf]
        %v2580 = vld [vmem:[%s1011 + $0x10] sm:$0xf]
        %v2581 = vld [vmem:[%s1011 + $0x14] sm:$0xf]
        %v2582 = vld [vmem:[%s1011 + $0x18] sm:$0xf]
        %v2583 = vld [vmem:[%s1011 + $0x1c] sm:$0xf]
        %v2584 = vld [vmem:[%s1011 + $0x20] sm:$0xf]
        %v2585 = vld [vmem:[%s1011 + $0x24] sm:$0xf]
        %v2586 = vld [vmem:[%s1011 + $0x28] sm:$0xf]
        %v2587 = vld [vmem:[%s1011 + $0x2c] sm:$0xf]
        %v2588 = vld [vmem:[%s1011 + $0x30] sm:$0xf]
        %v2589 = vld [vmem:[%s1011 + $0x34] sm:$0xf]
        %v2590 = vld [vmem:[%s1011 + $0x38] sm:$0xf]
        %v2591 = vld [vmem:[%s1011 + $0x3c] sm:$0xf]
        %v2592 = vld [vmem:[%s1019] sm:$0x1]
        %v2594 = vlaneseq
        %v2595 = vshrl.u32 %v2594, 7
        %v2596 = vsub.s32 0, %v2595
        %v2597 = vrot.slane %v2592, %v2596
        %v2615 = vunpack.c.l.b16 %v2576
        %v2616 = vunpack.c.l.b16 %v2577
        %v2617 = vunpack.c.l.b16 %v2578
        %v2618 = vunpack.c.l.b16 %v2579
        %v2619 = vunpack.c.l.b16 %v2580
        %v2620 = vunpack.c.l.b16 %v2581
        %v2621 = vunpack.c.l.b16 %v2582
        %v2622 = vunpack.c.l.b16 %v2583
        %v2623 = vunpack.c.l.b16 %v2584
        %v2624 = vunpack.c.l.b16 %v2585
        %v2625 = vunpack.c.l.b16 %v2586
        %v2626 = vunpack.c.l.b16 %v2587
        %v2627 = vunpack.c.l.b16 %v2588
        %v2628 = vunpack.c.l.b16 %v2589
        %v2629 = vunpack.c.l.b16 %v2590
        %v2630 = vunpack.c.l.b16 %v2591
        %v2631 = vpack.c.b16 %v2616, %v2615
        %v2632 = vpack.c.b16 %v2618, %v2617
        %v2633 = vpack.c.b16 %v2620, %v2619
        %v2634 = vpack.c.b16 %v2622, %v2621
        %v2635 = vpack.c.b16 %v2624, %v2623
        %v2636 = vpack.c.b16 %v2626, %v2625
        %v2637 = vpack.c.b16 %v2628, %v2627
        %v2638 = vpack.c.b16 %v2630, %v2629
        %2647 = vmatprep.subr.bf16.mxu0 0
        %2648 = vmatpush1.bf16.msra.mxu0 %v2631
        %2649 = vmatprep.subr.bf16.mxu0 0
        %2650 = vmatpush1.bf16.msra.mxu0 %v2632
        %2651 = vmatprep.subr.bf16.mxu0 0
        %2652 = vmatpush1.bf16.msra.mxu0 %v2633
        %2653 = vmatprep.subr.bf16.mxu0 0
        %2654 = vmatpush1.bf16.msra.mxu0 %v2634
        %2655 = vmatprep.subr.bf16.mxu0 0
        %2656 = vmatpush1.bf16.msra.mxu0 %v2635
        %2657 = vmatprep.subr.bf16.mxu0 0
        %2658 = vmatpush1.bf16.msra.mxu0 %v2636
        %2659 = vmatprep.subr.bf16.mxu0 0
        %2660 = vmatpush1.bf16.msra.mxu0 %v2637
        %2661 = vmatprep.subr.bf16.mxu0 0
        %2662 = vmatpush1.bf16.msra.mxu0 %v2638
        %2663 = vmatprep.subr.bf16.mxu0 0
        %2664 = vmatpush1.bf16.msra.mxu0 0
        %2665 = vmatprep.subr.bf16.mxu0 0
        %2666 = vmatpush1.bf16.msra.mxu0 0
        %2667 = vmatprep.subr.bf16.mxu0 0
        %2668 = vmatpush1.bf16.msra.mxu0 0
        %2669 = vmatprep.subr.bf16.mxu0 0
        %2670 = vmatpush1.bf16.msra.mxu0 0
        %2671 = vmatprep.subr.bf16.mxu0 0
        %2672 = vmatpush1.bf16.msra.mxu0 0
        %2673 = vmatprep.subr.bf16.mxu0 0
        %2674 = vmatpush1.bf16.msra.mxu0 0
        %2675 = vmatprep.subr.bf16.mxu0 0
        %2676 = vmatpush1.bf16.msra.mxu0 0
        %2677 = vmatprep.subr.bf16.mxu0 0
        %2678 = vmatpush1.bf16.msra.mxu0 0
        %2679 = vmatprep.mubr.bf16.mxu0 0
        %2680 = vmatmul.mubr.bf16.gmra.mrb[0].mxu0 %v2574
        %v2681 = vpop.f32.mrb[0].mxu0
        %v2682 = vadd.f32 %v2597, %v2681
        %v2683 = vpop.f32.mrb[0].mxu0
        %v2684 = vpop.f32.mrb[0].mxu0
        %v2685 = vadd.f32 %v2597, %v2684
        %v2686 = vpop.f32.mrb[0].mxu0
        %2687 = vmatprep.mubr.bf16.mxu0 0
        %2688 = vmatmul.mubr.bf16.gmra.mrb[0].mxu0 %v2575
        %v2689 = vpop.f32.mrb[0].mxu0
        %v2690 = vadd.f32 %v2597, %v2689
        %v2691 = vpop.f32.mrb[0].mxu0
        %v2692 = vpop.f32.mrb[0].mxu0
        %v2693 = vpop.f32.mrb[0].mxu0
        %2694 = vdwg.mxu0
        %v2695 = vadd.f32 %v2418, %v2682
        %v2696 = vadd.f32 %v2419, %v2685
        %v2697 = vadd.f32 %v2420, %v2690
        %2698 = vst.msk [vmem:[%s1125] sm:$0xff] %vm1318, %v2695
        %2699 = vst.msk [vmem:[%s1125 + $0x8] sm:$0xff] %vm1318, %v2696
        %2700 = vst.msk [vmem:[%s1125 + $0x10] sm:$0xff] %vm1318, %v2697
        %s2701 = sand.u32 %s541, 1
        %s2702 = scalar_lea.sflag [#allocation4], %s2701
        %s2703 = sand.u32 %s541, 1
        %s2704 = smul.addr %s2703, 24
        %s2705 = scalar_lea.vmem [#allocation32], %s2704
        // Predicated region
        $region177: #{timm_encoder_forward.1} parent=95 // pred_check
          %p2706 = pneg %p551
        $region178: #{timm_encoder_forward.1} parent=95 // pred_check_branch
          %2708 = sbr.rel (%p2706) target = $region180
        $region179: #{timm_encoder_forward.1} parent=95 // pred_region
          %s2710 = ssub.s32 384, 384
          %2711 = vsyncadd %s2702, %s2710
          %s2712 = smul.addr %s61, 3
          %s2713 = smul.addr %s2712, 128
          %s2714 = scalar_lea.hbm %s19, %s2713
          %s2715 = sshll.u32 %s2705, 4
          %s2716 = int_to_ptr.vmem [resolvable:$true] %s2715
          %2721 = dma.vmem_to_hbm [thread:$0]  %s2716, 384, %s2714, %s2702, 128, 128, 8
        $region180: #{timm_encoder_forward.1} parent=95 // pred_fallthru
          _
      $region96: #{timm_encoder_forward.1} parent=5 // pred_fallthru
        _
      %p2722 = scmp.le.s32.totalorder 2, %s52
      // Predicated region
      $region181: #{timm_encoder_forward.1} parent=5 // pred_check
        %p2723 = pneg %p2722
      $region182: #{timm_encoder_forward.1} parent=5 // pred_check_branch
        %2725 = sbr.rel (%p2723) target = $region184
      $region183: #{timm_encoder_forward.1} parent=5 // pred_region
        %s2726 = ssub.s32 %s52, 2
        // Predicated region
        $region185: #{timm_encoder_forward.1} parent=183 // pred_check
          %p2727 = pneg %p557
        $region186: #{timm_encoder_forward.1} parent=183 // pred_check_branch
          %2729 = sbr.rel (%p2727) target = $region188
        $region187: #{timm_encoder_forward.1} parent=183 // pred_region
          %s2730 = sand.u32 %s542, 1
          %s2731 = scalar_lea.sflag [#allocation4], %s2730
          %s2732 = sand.u32 %s542, 1
          %s2733 = smul.addr %s2732, 24
          %s2734 = scalar_lea.vmem [#allocation32], %s2733
          %2735 = dma.done %s2731, 384
        $region188: #{timm_encoder_forward.1} parent=183 // pred_fallthru
          _
      $region184: #{timm_encoder_forward.1} parent=5 // pred_fallthru
        _
    $region6: #{timm_encoder_forward.1} parent=1 // loop_footer
      %s56 = sadd.s32 1, %s52
    $region7: #{timm_encoder_forward.1} parent=1 // loop_footer_branch
      %51 = sbr.rel target = $region3
    $region8: #{timm_encoder_forward.1} parent=1 // loop_exit
      _
    %2736 = vsyncpa [#allocation3], 1
    %s2737 = scalar_lea.sflag [#allocation3], 1
    %2738 = vsyncpa %s2737, 1
    %2739 = vsyncpa [#allocation6], 1
    %2740 = vsyncpa [#allocation9], 1
    %2741 = vsyncpa [#allocation12], 1
    %2742 = vsyncpa [#allocation15], 1
    %s2743 = scalar_lea.sflag [#allocation15], 1
    %2744 = vsyncpa %s2743, 1
    %2745 = vsyncpa [#allocation18], 1
    %s2746 = scalar_lea.sflag [#allocation18], 1
    %2747 = vsyncpa %s2746, 1
    %2748 = vsyncpa [#allocation21], 1
    %s2749 = scalar_lea.sflag [#allocation21], 1
    %2750 = vsyncpa %s2749, 1
    %2751 = vsyncpa [#allocation24], 1
    %s2752 = scalar_lea.sflag [#allocation24], 1
    %2753 = vsyncpa %s2752, 1
    %2754 = vsyncpa [#allocation27], 1
    %s2755 = scalar_lea.sflag [#allocation27], 1
    %2756 = vsyncpa %s2755, 1
    %2757 = vsyncpa [#allocation30], 1
    %s2758 = scalar_lea.sflag [#allocation30], 1
    %2759 = vsyncpa %s2758, 1
    %2760 = vsyncpa [#allocation4], 1
    %s2761 = scalar_lea.sflag [#allocation4], 1
    %2762 = vsyncpa %s2761, 1

</llo_original>
